<compile_context>
chip_gen: v5e
topology: v5e:2x2
jax: 0.10.0
libtpu: 0.0.40
codegen_flags: <defaults>
</compile_context>

<pallas_src>
import functools

import jax
import jax.numpy as jnp
from jax.experimental import pallas as pl
from jax.experimental.pallas import tpu as pltpu

K = 13                 # conv taps along L
PAD = (K - 1) // 2     # 'same' padding = 6


def _unfold_rows(a, lpos, L, out_dtype):
    """im2col along the per-sequence L axis of row-major (m, l) rows.

    a:    (R, D) array, rows ordered r = m*L + l.
    lpos: (R, 1) int32, l-index of each row.
    Returns (R, K*D); column block k holds a[r + (k - PAD)] when that offset
    stays inside the same length-L sequence, else 0 ('same' zero padding).
    """
    cols = []
    zero = jnp.zeros_like(a)
    for k in range(K):
        d = k - PAD
        if d == 0:
            piece = a
        else:
            # cyclic roll; rows pulled across a sequence (or tile) boundary are
            # exactly the ones masked to zero below, so wrap-around is harmless.
            shifted = jnp.roll(a, -d, axis=0)          # shifted[r] = a[(r+d) % R]
            valid = (lpos >= -d) & (lpos < L - d)      # stay inside this sequence
            piece = jnp.where(valid, shifted, zero)
        cols.append(piece.astype(out_dtype))
    return jnp.concatenate(cols, axis=1)               # (R, K*D)


def _mlp_kernel(lpos_ref, x_ref, w1_ref, b1_ref, w2_ref, b2_ref, out_ref, *, L):
    x = x_ref[...]                                     # (R, C)  f32
    lpos = lpos_ref[...]                               # (R, 1)  int32

    # ---- fc1: 13-tap 'same' conv as ONE deep MXU matmul (depth K*C) --------
    xu = _unfold_rows(x, lpos, L, jnp.bfloat16)        # (R, K*C) bf16
    h1 = jnp.dot(xu, w1_ref[...], preferred_element_type=jnp.float32)
    h1 = jnp.maximum(h1 + b1_ref[...], 0.0)            # bias + ReLU (f32)
    # Dropout(p=0.15) == identity at inference.
    # TODO(synk): training-mode dropout (pltpu.prng_* mask + 1/(1-p) scaling).

    # ---- fc2: second conv, same unfold, then residual on the f32 input -----
    hu = _unfold_rows(h1, lpos, L, jnp.bfloat16)       # (R, K*H) bf16
    y = jnp.dot(hu, w2_ref[...], preferred_element_type=jnp.float32)
    out_ref[...] = (y + b2_ref[...] + x).astype(out_ref.dtype)


def _pick_block_m(M, L, want):
    """Largest block_m <= want dividing M with block_m*L a multiple of 8."""
    for bm in range(min(want, M), 0, -1):
        if M % bm == 0 and (bm * L) % 8 == 0:
            return bm
    raise ValueError(f"cannot tile M={M}, L={L} into sublane-aligned blocks")


def mlp_forward(x_nchw, w1, b1, w2, b2, *, block_m=8):
    """x_nchw: [B, C, N, L]; w*: torch conv weights [out, in, 1, 13]; b*: [out]."""
    B, C, N, L = x_nchw.shape
    H = w1.shape[0]
    assert w1.shape == (H, C, 1, K) and w2.shape == (H, H, 1, K)
    assert b1.shape == (H,) and b2.shape == (H,)
    assert C == H, "residual add requires input_dim == hidden_dim"
    M = B * N
    block_m = _pick_block_m(M, L, block_m)
    tmL = block_m * L
    grid = (M // block_m,)

    # torch conv weight [out, in, 1, K] -> flattened im2col form [K*in, out], bf16
    w1_flat = jnp.transpose(w1[:, :, 0, :], (2, 1, 0)).reshape(K * C, H)
    w2_flat = jnp.transpose(w2[:, :, 0, :], (2, 1, 0)).reshape(K * H, H)
    w1_flat = w1_flat.astype(jnp.bfloat16)
    w2_flat = w2_flat.astype(jnp.bfloat16)

    # NCHW -> channel-last rows [(B*N)*L, C]  (f32: residual stays exact)
    x2d = jnp.transpose(x_nchw, (0, 2, 3, 1)).reshape(M * L, C).astype(jnp.float32)
    # per-row sequence position l = row mod L (tiny int32 column input)
    lpos = (jnp.arange(M * L, dtype=jnp.int32) % L).reshape(M * L, 1)

    flops = 2 * M * L * (K * C * H + K * H * H) + 4 * M * L * H
    bytes_accessed = (x2d.size * 4 + M * L * H * 4 + lpos.size * 4
                      + (w1_flat.size + w2_flat.size) * 2
                      + (b1.size + b2.size) * 4)

    kernel = functools.partial(_mlp_kernel, L=L)
    out2d = pl.pallas_call(
        kernel,
        out_shape=jax.ShapeDtypeStruct((M * L, H), x_nchw.dtype),
        grid_spec=pltpu.PrefetchScalarGridSpec(
            num_scalar_prefetch=0,
            grid=grid,
            in_specs=[
                pl.BlockSpec((tmL, 1), lambda i: (i, 0)),        # lpos column
                pl.BlockSpec((tmL, C), lambda i: (i, 0)),        # x tile
                pl.BlockSpec((K * C, H), lambda i: (0, 0)),      # w1 (resident)
                pl.BlockSpec((1, H), lambda i: (0, 0)),          # b1
                pl.BlockSpec((K * H, H), lambda i: (0, 0)),      # w2 (resident)
                pl.BlockSpec((1, H), lambda i: (0, 0)),          # b2
            ],
            out_specs=pl.BlockSpec((tmL, H), lambda i: (i, 0)),
        ),
        compiler_params=pltpu.CompilerParams(
            dimension_semantics=("parallel",),
            vmem_limit_bytes=32 * 1024 * 1024,
        ),
        cost_estimate=pl.CostEstimate(
            flops=flops, transcendentals=0, bytes_accessed=bytes_accessed),
    )(lpos, x2d, w1_flat, b1.reshape(1, H).astype(jnp.float32),
      w2_flat, b2.reshape(1, H).astype(jnp.float32))

    # [(B*N)*L, H] -> [B, H, N, L]
    return jnp.transpose(out2d.reshape(B, N, L, H), (0, 3, 1, 2))


def ref_forward(x, w1, b1, w2, b2):
    """Plain-JAX reference matching the PyTorch module (eval mode), f32."""
    def conv(inp, w, b):
        y = jax.lax.conv_general_dilated(
            inp, w, window_strides=(1, 1),
            padding=((0, 0), (PAD, PAD)),
            dimension_numbers=("NCHW", "OIHW", "NCHW"))
        return y + b[None, :, None, None]
    h = jax.nn.relu(conv(x, w1, b1))
    return conv(h, w2, b2) + x


if __name__ == "__main__":
    # input_dim == hidden_dim (required by the residual add)
    B, D, N, L = 2, 32, 8, 16
    H = D

    key = jax.random.PRNGKey(0)
    kx, kw1, kb1, kw2, kb2 = jax.random.split(key, 5)
    x = jax.random.normal(kx, (B, D, N, L), dtype=jnp.float32)
    w1 = jax.random.normal(kw1, (H, D, 1, K), dtype=jnp.float32) * 0.05
    b1 = jax.random.normal(kb1, (H,), dtype=jnp.float32) * 0.05
    w2 = jax.random.normal(kw2, (H, H, 1, K), dtype=jnp.float32) * 0.05
    b2 = jax.random.normal(kb2, (H,), dtype=jnp.float32) * 0.05

    out = jax.block_until_ready(mlp_forward(x, w1, b1, w2, b2, block_m=8))
    ref = jax.block_until_ready(ref_forward(x, w1, b1, w2, b2))

    assert out.shape == (B, H, N, L), out.shape
    err = float(jnp.max(jnp.abs(out - ref)))
    # bf16 MXU operands with f32 accumulation: loosened tolerance vs pure-f32 ref
    assert err < 5e-2, f"max abs err {err}"
    print("KERNEL_OK")
</pallas_src>

<mosaic_0001>
module attributes {stable_mosaic.version = 11 : i64} {
  func.func @_mlp_kernel(%arg0: i32, %arg1: memref<128x1xi32, #tpu.memory_space<vmem>>, %arg2: memref<128x32xf32, #tpu.memory_space<vmem>>, %arg3: memref<416x32xbf16, #tpu.memory_space<vmem>>, %arg4: memref<1x32xf32, #tpu.memory_space<vmem>>, %arg5: memref<416x32xbf16, #tpu.memory_space<vmem>>, %arg6: memref<1x32xf32, #tpu.memory_space<vmem>>, %arg7: memref<128x32xf32, #tpu.memory_space<vmem>>) attributes {dimension_semantics = [#tpu.dimension_semantics<parallel>], iteration_bounds = array<i64: 2>, scalar_prefetch = 0 : i64, scratch_operands = 0 : i64, tpu.core_type = #tpu.core_type<tc>, window_params = [{transform_indices = @transform_0, window_bounds = array<i64: 128, 1>}, {transform_indices = @transform_1, window_bounds = array<i64: 128, 32>}, {pipeline_mode = #tpu.pipeline_mode<synchronous>, transform_indices = @transform_2, window_bounds = array<i64: 416, 32>}, {pipeline_mode = #tpu.pipeline_mode<synchronous>, transform_indices = @transform_3, window_bounds = array<i64: 1, 32>}, {pipeline_mode = #tpu.pipeline_mode<synchronous>, transform_indices = @transform_4, window_bounds = array<i64: 416, 32>}, {pipeline_mode = #tpu.pipeline_mode<synchronous>, transform_indices = @transform_5, window_bounds = array<i64: 1, 32>}, {transform_indices = @transform_6, window_bounds = array<i64: 128, 32>}]} {
    %c0 = arith.constant 0 : index
    %c0_0 = arith.constant 0 : index
    %0 = vector.load %arg2[%c0, %c0_0] : memref<128x32xf32, #tpu.memory_space<vmem>>, vector<128x32xf32>
    %c0_1 = arith.constant 0 : index
    %c0_2 = arith.constant 0 : index
    %1 = vector.load %arg1[%c0_1, %c0_2] : memref<128x1xi32, #tpu.memory_space<vmem>>, vector<128x1xi32>
    %cst = arith.constant 0.000000e+00 : f32
    %2 = vector.broadcast %cst : f32 to vector<128x32xf32>
    %3 = vector.extract_strided_slice %0 {offsets = [122, 0], sizes = [6, 32], strides = [1, 1]} : vector<128x32xf32> to vector<6x32xf32>
    %4 = vector.extract_strided_slice %0 {offsets = [0, 0], sizes = [122, 32], strides = [1, 1]} : vector<128x32xf32> to vector<122x32xf32>
    %5 = tpu.concatenate %3, %4 in 0 : vector<6x32xf32>, vector<122x32xf32> -> vector<128x32xf32>
    %c6_i32 = arith.constant 6 : i32
    %6 = vector.broadcast %c6_i32 : i32 to vector<128x1xi32>
    %7 = arith.cmpi sge, %1, %6 : vector<128x1xi32>
    %c22_i32 = arith.constant 22 : i32
    %8 = vector.broadcast %c22_i32 : i32 to vector<128x1xi32>
    %9 = arith.cmpi slt, %1, %8 : vector<128x1xi32>
    %10 = arith.andi %7, %9 : vector<128x1xi1>
    %11 = vector.shape_cast %10 : vector<128x1xi1> to vector<128x1xi1>
    %12 = vector.broadcast %11 : vector<128x1xi1> to vector<128x32xi1>
    %13 = arith.select %12, %5, %2 : vector<128x32xi1>, vector<128x32xf32>
    %14 = arith.truncf %13 : vector<128x32xf32> to vector<128x32xbf16>
    %15 = vector.extract_strided_slice %0 {offsets = [123, 0], sizes = [5, 32], strides = [1, 1]} : vector<128x32xf32> to vector<5x32xf32>
    %16 = vector.extract_strided_slice %0 {offsets = [0, 0], sizes = [123, 32], strides = [1, 1]} : vector<128x32xf32> to vector<123x32xf32>
    %17 = tpu.concatenate %15, %16 in 0 : vector<5x32xf32>, vector<123x32xf32> -> vector<128x32xf32>
    %c5_i32 = arith.constant 5 : i32
    %18 = vector.broadcast %c5_i32 : i32 to vector<128x1xi32>
    %19 = arith.cmpi sge, %1, %18 : vector<128x1xi32>
    %c21_i32 = arith.constant 21 : i32
    %20 = vector.broadcast %c21_i32 : i32 to vector<128x1xi32>
    %21 = arith.cmpi slt, %1, %20 : vector<128x1xi32>
    %22 = arith.andi %19, %21 : vector<128x1xi1>
    %23 = vector.shape_cast %22 : vector<128x1xi1> to vector<128x1xi1>
    %24 = vector.broadcast %23 : vector<128x1xi1> to vector<128x32xi1>
    %25 = arith.select %24, %17, %2 : vector<128x32xi1>, vector<128x32xf32>
    %26 = arith.truncf %25 : vector<128x32xf32> to vector<128x32xbf16>
    %27 = vector.extract_strided_slice %0 {offsets = [124, 0], sizes = [4, 32], strides = [1, 1]} : vector<128x32xf32> to vector<4x32xf32>
    %28 = vector.extract_strided_slice %0 {offsets = [0, 0], sizes = [124, 32], strides = [1, 1]} : vector<128x32xf32> to vector<124x32xf32>
    %29 = tpu.concatenate %27, %28 in 0 : vector<4x32xf32>, vector<124x32xf32> -> vector<128x32xf32>
    %c4_i32 = arith.constant 4 : i32
    %30 = vector.broadcast %c4_i32 : i32 to vector<128x1xi32>
    %31 = arith.cmpi sge, %1, %30 : vector<128x1xi32>
    %c20_i32 = arith.constant 20 : i32
    %32 = vector.broadcast %c20_i32 : i32 to vector<128x1xi32>
    %33 = arith.cmpi slt, %1, %32 : vector<128x1xi32>
    %34 = arith.andi %31, %33 : vector<128x1xi1>
    %35 = vector.shape_cast %34 : vector<128x1xi1> to vector<128x1xi1>
    %36 = vector.broadcast %35 : vector<128x1xi1> to vector<128x32xi1>
    %37 = arith.select %36, %29, %2 : vector<128x32xi1>, vector<128x32xf32>
    %38 = arith.truncf %37 : vector<128x32xf32> to vector<128x32xbf16>
    %39 = vector.extract_strided_slice %0 {offsets = [125, 0], sizes = [3, 32], strides = [1, 1]} : vector<128x32xf32> to vector<3x32xf32>
    %40 = vector.extract_strided_slice %0 {offsets = [0, 0], sizes = [125, 32], strides = [1, 1]} : vector<128x32xf32> to vector<125x32xf32>
    %41 = tpu.concatenate %39, %40 in 0 : vector<3x32xf32>, vector<125x32xf32> -> vector<128x32xf32>
    %c3_i32 = arith.constant 3 : i32
    %42 = vector.broadcast %c3_i32 : i32 to vector<128x1xi32>
    %43 = arith.cmpi sge, %1, %42 : vector<128x1xi32>
    %c19_i32 = arith.constant 19 : i32
    %44 = vector.broadcast %c19_i32 : i32 to vector<128x1xi32>
    %45 = arith.cmpi slt, %1, %44 : vector<128x1xi32>
    %46 = arith.andi %43, %45 : vector<128x1xi1>
    %47 = vector.shape_cast %46 : vector<128x1xi1> to vector<128x1xi1>
    %48 = vector.broadcast %47 : vector<128x1xi1> to vector<128x32xi1>
    %49 = arith.select %48, %41, %2 : vector<128x32xi1>, vector<128x32xf32>
    %50 = arith.truncf %49 : vector<128x32xf32> to vector<128x32xbf16>
    %51 = vector.extract_strided_slice %0 {offsets = [126, 0], sizes = [2, 32], strides = [1, 1]} : vector<128x32xf32> to vector<2x32xf32>
    %52 = vector.extract_strided_slice %0 {offsets = [0, 0], sizes = [126, 32], strides = [1, 1]} : vector<128x32xf32> to vector<126x32xf32>
    %53 = tpu.concatenate %51, %52 in 0 : vector<2x32xf32>, vector<126x32xf32> -> vector<128x32xf32>
    %c2_i32 = arith.constant 2 : i32
    %54 = vector.broadcast %c2_i32 : i32 to vector<128x1xi32>
    %55 = arith.cmpi sge, %1, %54 : vector<128x1xi32>
    %c18_i32 = arith.constant 18 : i32
    %56 = vector.broadcast %c18_i32 : i32 to vector<128x1xi32>
    %57 = arith.cmpi slt, %1, %56 : vector<128x1xi32>
    %58 = arith.andi %55, %57 : vector<128x1xi1>
    %59 = vector.shape_cast %58 : vector<128x1xi1> to vector<128x1xi1>
    %60 = vector.broadcast %59 : vector<128x1xi1> to vector<128x32xi1>
    %61 = arith.select %60, %53, %2 : vector<128x32xi1>, vector<128x32xf32>
    %62 = arith.truncf %61 : vector<128x32xf32> to vector<128x32xbf16>
    %63 = vector.extract_strided_slice %0 {offsets = [127, 0], sizes = [1, 32], strides = [1, 1]} : vector<128x32xf32> to vector<1x32xf32>
    %64 = vector.extract_strided_slice %0 {offsets = [0, 0], sizes = [127, 32], strides = [1, 1]} : vector<128x32xf32> to vector<127x32xf32>
    %65 = tpu.concatenate %63, %64 in 0 : vector<1x32xf32>, vector<127x32xf32> -> vector<128x32xf32>
    %c1_i32 = arith.constant 1 : i32
    %66 = vector.broadcast %c1_i32 : i32 to vector<128x1xi32>
    %67 = arith.cmpi sge, %1, %66 : vector<128x1xi32>
    %c17_i32 = arith.constant 17 : i32
    %68 = vector.broadcast %c17_i32 : i32 to vector<128x1xi32>
    %69 = arith.cmpi slt, %1, %68 : vector<128x1xi32>
    %70 = arith.andi %67, %69 : vector<128x1xi1>
    %71 = vector.shape_cast %70 : vector<128x1xi1> to vector<128x1xi1>
    %72 = vector.broadcast %71 : vector<128x1xi1> to vector<128x32xi1>
    %73 = arith.select %72, %65, %2 : vector<128x32xi1>, vector<128x32xf32>
    %74 = arith.truncf %73 : vector<128x32xf32> to vector<128x32xbf16>
    %75 = arith.truncf %0 : vector<128x32xf32> to vector<128x32xbf16>
    %76 = vector.extract_strided_slice %0 {offsets = [1, 0], sizes = [127, 32], strides = [1, 1]} : vector<128x32xf32> to vector<127x32xf32>
    %77 = vector.extract_strided_slice %0 {offsets = [0, 0], sizes = [1, 32], strides = [1, 1]} : vector<128x32xf32> to vector<1x32xf32>
    %78 = tpu.concatenate %76, %77 in 0 : vector<127x32xf32>, vector<1x32xf32> -> vector<128x32xf32>
    %c-1_i32 = arith.constant -1 : i32
    %79 = vector.broadcast %c-1_i32 : i32 to vector<128x1xi32>
    %80 = arith.cmpi sge, %1, %79 : vector<128x1xi32>
    %c15_i32 = arith.constant 15 : i32
    %81 = vector.broadcast %c15_i32 : i32 to vector<128x1xi32>
    %82 = arith.cmpi slt, %1, %81 : vector<128x1xi32>
    %83 = arith.andi %80, %82 : vector<128x1xi1>
    %84 = vector.shape_cast %83 : vector<128x1xi1> to vector<128x1xi1>
    %85 = vector.broadcast %84 : vector<128x1xi1> to vector<128x32xi1>
    %86 = arith.select %85, %78, %2 : vector<128x32xi1>, vector<128x32xf32>
    %87 = arith.truncf %86 : vector<128x32xf32> to vector<128x32xbf16>
    %88 = vector.extract_strided_slice %0 {offsets = [2, 0], sizes = [126, 32], strides = [1, 1]} : vector<128x32xf32> to vector<126x32xf32>
    %89 = vector.extract_strided_slice %0 {offsets = [0, 0], sizes = [2, 32], strides = [1, 1]} : vector<128x32xf32> to vector<2x32xf32>
    %90 = tpu.concatenate %88, %89 in 0 : vector<126x32xf32>, vector<2x32xf32> -> vector<128x32xf32>
    %c-2_i32 = arith.constant -2 : i32
    %91 = vector.broadcast %c-2_i32 : i32 to vector<128x1xi32>
    %92 = arith.cmpi sge, %1, %91 : vector<128x1xi32>
    %c14_i32 = arith.constant 14 : i32
    %93 = vector.broadcast %c14_i32 : i32 to vector<128x1xi32>
    %94 = arith.cmpi slt, %1, %93 : vector<128x1xi32>
    %95 = arith.andi %92, %94 : vector<128x1xi1>
    %96 = vector.shape_cast %95 : vector<128x1xi1> to vector<128x1xi1>
    %97 = vector.broadcast %96 : vector<128x1xi1> to vector<128x32xi1>
    %98 = arith.select %97, %90, %2 : vector<128x32xi1>, vector<128x32xf32>
    %99 = arith.truncf %98 : vector<128x32xf32> to vector<128x32xbf16>
    %100 = vector.extract_strided_slice %0 {offsets = [3, 0], sizes = [125, 32], strides = [1, 1]} : vector<128x32xf32> to vector<125x32xf32>
    %101 = vector.extract_strided_slice %0 {offsets = [0, 0], sizes = [3, 32], strides = [1, 1]} : vector<128x32xf32> to vector<3x32xf32>
    %102 = tpu.concatenate %100, %101 in 0 : vector<125x32xf32>, vector<3x32xf32> -> vector<128x32xf32>
    %c-3_i32 = arith.constant -3 : i32
    %103 = vector.broadcast %c-3_i32 : i32 to vector<128x1xi32>
    %104 = arith.cmpi sge, %1, %103 : vector<128x1xi32>
    %c13_i32 = arith.constant 13 : i32
    %105 = vector.broadcast %c13_i32 : i32 to vector<128x1xi32>
    %106 = arith.cmpi slt, %1, %105 : vector<128x1xi32>
    %107 = arith.andi %104, %106 : vector<128x1xi1>
    %108 = vector.shape_cast %107 : vector<128x1xi1> to vector<128x1xi1>
    %109 = vector.broadcast %108 : vector<128x1xi1> to vector<128x32xi1>
    %110 = arith.select %109, %102, %2 : vector<128x32xi1>, vector<128x32xf32>
    %111 = arith.truncf %110 : vector<128x32xf32> to vector<128x32xbf16>
    %112 = vector.extract_strided_slice %0 {offsets = [4, 0], sizes = [124, 32], strides = [1, 1]} : vector<128x32xf32> to vector<124x32xf32>
    %113 = vector.extract_strided_slice %0 {offsets = [0, 0], sizes = [4, 32], strides = [1, 1]} : vector<128x32xf32> to vector<4x32xf32>
    %114 = tpu.concatenate %112, %113 in 0 : vector<124x32xf32>, vector<4x32xf32> -> vector<128x32xf32>
    %c-4_i32 = arith.constant -4 : i32
    %115 = vector.broadcast %c-4_i32 : i32 to vector<128x1xi32>
    %116 = arith.cmpi sge, %1, %115 : vector<128x1xi32>
    %c12_i32 = arith.constant 12 : i32
    %117 = vector.broadcast %c12_i32 : i32 to vector<128x1xi32>
    %118 = arith.cmpi slt, %1, %117 : vector<128x1xi32>
    %119 = arith.andi %116, %118 : vector<128x1xi1>
    %120 = vector.shape_cast %119 : vector<128x1xi1> to vector<128x1xi1>
    %121 = vector.broadcast %120 : vector<128x1xi1> to vector<128x32xi1>
    %122 = arith.select %121, %114, %2 : vector<128x32xi1>, vector<128x32xf32>
    %123 = arith.truncf %122 : vector<128x32xf32> to vector<128x32xbf16>
    %124 = vector.extract_strided_slice %0 {offsets = [5, 0], sizes = [123, 32], strides = [1, 1]} : vector<128x32xf32> to vector<123x32xf32>
    %125 = vector.extract_strided_slice %0 {offsets = [0, 0], sizes = [5, 32], strides = [1, 1]} : vector<128x32xf32> to vector<5x32xf32>
    %126 = tpu.concatenate %124, %125 in 0 : vector<123x32xf32>, vector<5x32xf32> -> vector<128x32xf32>
    %c-5_i32 = arith.constant -5 : i32
    %127 = vector.broadcast %c-5_i32 : i32 to vector<128x1xi32>
    %128 = arith.cmpi sge, %1, %127 : vector<128x1xi32>
    %c11_i32 = arith.constant 11 : i32
    %129 = vector.broadcast %c11_i32 : i32 to vector<128x1xi32>
    %130 = arith.cmpi slt, %1, %129 : vector<128x1xi32>
    %131 = arith.andi %128, %130 : vector<128x1xi1>
    %132 = vector.shape_cast %131 : vector<128x1xi1> to vector<128x1xi1>
    %133 = vector.broadcast %132 : vector<128x1xi1> to vector<128x32xi1>
    %134 = arith.select %133, %126, %2 : vector<128x32xi1>, vector<128x32xf32>
    %135 = arith.truncf %134 : vector<128x32xf32> to vector<128x32xbf16>
    %136 = vector.extract_strided_slice %0 {offsets = [6, 0], sizes = [122, 32], strides = [1, 1]} : vector<128x32xf32> to vector<122x32xf32>
    %137 = vector.extract_strided_slice %0 {offsets = [0, 0], sizes = [6, 32], strides = [1, 1]} : vector<128x32xf32> to vector<6x32xf32>
    %138 = tpu.concatenate %136, %137 in 0 : vector<122x32xf32>, vector<6x32xf32> -> vector<128x32xf32>
    %c-6_i32 = arith.constant -6 : i32
    %139 = vector.broadcast %c-6_i32 : i32 to vector<128x1xi32>
    %140 = arith.cmpi sge, %1, %139 : vector<128x1xi32>
    %c10_i32 = arith.constant 10 : i32
    %141 = vector.broadcast %c10_i32 : i32 to vector<128x1xi32>
    %142 = arith.cmpi slt, %1, %141 : vector<128x1xi32>
    %143 = arith.andi %140, %142 : vector<128x1xi1>
    %144 = vector.shape_cast %143 : vector<128x1xi1> to vector<128x1xi1>
    %145 = vector.broadcast %144 : vector<128x1xi1> to vector<128x32xi1>
    %146 = arith.select %145, %138, %2 : vector<128x32xi1>, vector<128x32xf32>
    %147 = arith.truncf %146 : vector<128x32xf32> to vector<128x32xbf16>
    %148 = tpu.concatenate %14, %26, %38, %50, %62, %74, %75, %87, %99, %111, %123, %135, %147 in 1 : vector<128x32xbf16>, vector<128x32xbf16>, vector<128x32xbf16>, vector<128x32xbf16>, vector<128x32xbf16>, vector<128x32xbf16>, vector<128x32xbf16>, vector<128x32xbf16>, vector<128x32xbf16>, vector<128x32xbf16>, vector<128x32xbf16>, vector<128x32xbf16>, vector<128x32xbf16> -> vector<128x416xbf16>
    %c0_3 = arith.constant 0 : index
    %c0_4 = arith.constant 0 : index
    %149 = vector.load %arg3[%c0_3, %c0_4] : memref<416x32xbf16, #tpu.memory_space<vmem>>, vector<416x32xbf16>
    %cst_5 = arith.constant dense<0.000000e+00> : vector<128x32xf32>
    %150 = tpu.matmul %148, %149, %cst_5 {dimension_numbers = #tpu.dot_dimension_numbers<[1], [0], [0], [1], [0, 0, 1, 1], [], []>} : vector<128x416xbf16>, vector<416x32xbf16>, vector<128x32xf32> -> vector<128x32xf32>
    %c0_6 = arith.constant 0 : index
    %c0_7 = arith.constant 0 : index
    %151 = vector.load %arg4[%c0_6, %c0_7] : memref<1x32xf32, #tpu.memory_space<vmem>>, vector<1x32xf32>
    %152 = vector.broadcast %151 : vector<1x32xf32> to vector<128x32xf32>
    %153 = arith.addf %150, %152 : vector<128x32xf32>
    %cst_8 = arith.constant 0.000000e+00 : f32
    %154 = vector.broadcast %cst_8 : f32 to vector<128x32xf32>
    %155 = arith.maximumf %153, %154 : vector<128x32xf32>
    %cst_9 = arith.constant 0.000000e+00 : f32
    %156 = vector.broadcast %cst_9 : f32 to vector<128x32xf32>
    %157 = vector.extract_strided_slice %155 {offsets = [122, 0], sizes = [6, 32], strides = [1, 1]} : vector<128x32xf32> to vector<6x32xf32>
    %158 = vector.extract_strided_slice %155 {offsets = [0, 0], sizes = [122, 32], strides = [1, 1]} : vector<128x32xf32> to vector<122x32xf32>
    %159 = tpu.concatenate %157, %158 in 0 : vector<6x32xf32>, vector<122x32xf32> -> vector<128x32xf32>
    %c6_i32_10 = arith.constant 6 : i32
    %160 = vector.broadcast %c6_i32_10 : i32 to vector<128x1xi32>
    %161 = arith.cmpi sge, %1, %160 : vector<128x1xi32>
    %c22_i32_11 = arith.constant 22 : i32
    %162 = vector.broadcast %c22_i32_11 : i32 to vector<128x1xi32>
    %163 = arith.cmpi slt, %1, %162 : vector<128x1xi32>
    %164 = arith.andi %161, %163 : vector<128x1xi1>
    %165 = vector.shape_cast %164 : vector<128x1xi1> to vector<128x1xi1>
    %166 = vector.broadcast %165 : vector<128x1xi1> to vector<128x32xi1>
    %167 = arith.select %166, %159, %156 : vector<128x32xi1>, vector<128x32xf32>
    %168 = arith.truncf %167 : vector<128x32xf32> to vector<128x32xbf16>
    %169 = vector.extract_strided_slice %155 {offsets = [123, 0], sizes = [5, 32], strides = [1, 1]} : vector<128x32xf32> to vector<5x32xf32>
    %170 = vector.extract_strided_slice %155 {offsets = [0, 0], sizes = [123, 32], strides = [1, 1]} : vector<128x32xf32> to vector<123x32xf32>
    %171 = tpu.concatenate %169, %170 in 0 : vector<5x32xf32>, vector<123x32xf32> -> vector<128x32xf32>
    %c5_i32_12 = arith.constant 5 : i32
    %172 = vector.broadcast %c5_i32_12 : i32 to vector<128x1xi32>
    %173 = arith.cmpi sge, %1, %172 : vector<128x1xi32>
    %c21_i32_13 = arith.constant 21 : i32
    %174 = vector.broadcast %c21_i32_13 : i32 to vector<128x1xi32>
    %175 = arith.cmpi slt, %1, %174 : vector<128x1xi32>
    %176 = arith.andi %173, %175 : vector<128x1xi1>
    %177 = vector.shape_cast %176 : vector<128x1xi1> to vector<128x1xi1>
    %178 = vector.broadcast %177 : vector<128x1xi1> to vector<128x32xi1>
    %179 = arith.select %178, %171, %156 : vector<128x32xi1>, vector<128x32xf32>
    %180 = arith.truncf %179 : vector<128x32xf32> to vector<128x32xbf16>
    %181 = vector.extract_strided_slice %155 {offsets = [124, 0], sizes = [4, 32], strides = [1, 1]} : vector<128x32xf32> to vector<4x32xf32>
    %182 = vector.extract_strided_slice %155 {offsets = [0, 0], sizes = [124, 32], strides = [1, 1]} : vector<128x32xf32> to vector<124x32xf32>
    %183 = tpu.concatenate %181, %182 in 0 : vector<4x32xf32>, vector<124x32xf32> -> vector<128x32xf32>
    %c4_i32_14 = arith.constant 4 : i32
    %184 = vector.broadcast %c4_i32_14 : i32 to vector<128x1xi32>
    %185 = arith.cmpi sge, %1, %184 : vector<128x1xi32>
    %c20_i32_15 = arith.constant 20 : i32
    %186 = vector.broadcast %c20_i32_15 : i32 to vector<128x1xi32>
    %187 = arith.cmpi slt, %1, %186 : vector<128x1xi32>
    %188 = arith.andi %185, %187 : vector<128x1xi1>
    %189 = vector.shape_cast %188 : vector<128x1xi1> to vector<128x1xi1>
    %190 = vector.broadcast %189 : vector<128x1xi1> to vector<128x32xi1>
    %191 = arith.select %190, %183, %156 : vector<128x32xi1>, vector<128x32xf32>
    %192 = arith.truncf %191 : vector<128x32xf32> to vector<128x32xbf16>
    %193 = vector.extract_strided_slice %155 {offsets = [125, 0], sizes = [3, 32], strides = [1, 1]} : vector<128x32xf32> to vector<3x32xf32>
    %194 = vector.extract_strided_slice %155 {offsets = [0, 0], sizes = [125, 32], strides = [1, 1]} : vector<128x32xf32> to vector<125x32xf32>
    %195 = tpu.concatenate %193, %194 in 0 : vector<3x32xf32>, vector<125x32xf32> -> vector<128x32xf32>
    %c3_i32_16 = arith.constant 3 : i32
    %196 = vector.broadcast %c3_i32_16 : i32 to vector<128x1xi32>
    %197 = arith.cmpi sge, %1, %196 : vector<128x1xi32>
    %c19_i32_17 = arith.constant 19 : i32
    %198 = vector.broadcast %c19_i32_17 : i32 to vector<128x1xi32>
    %199 = arith.cmpi slt, %1, %198 : vector<128x1xi32>
    %200 = arith.andi %197, %199 : vector<128x1xi1>
    %201 = vector.shape_cast %200 : vector<128x1xi1> to vector<128x1xi1>
    %202 = vector.broadcast %201 : vector<128x1xi1> to vector<128x32xi1>
    %203 = arith.select %202, %195, %156 : vector<128x32xi1>, vector<128x32xf32>
    %204 = arith.truncf %203 : vector<128x32xf32> to vector<128x32xbf16>
    %205 = vector.extract_strided_slice %155 {offsets = [126, 0], sizes = [2, 32], strides = [1, 1]} : vector<128x32xf32> to vector<2x32xf32>
    %206 = vector.extract_strided_slice %155 {offsets = [0, 0], sizes = [126, 32], strides = [1, 1]} : vector<128x32xf32> to vector<126x32xf32>
    %207 = tpu.concatenate %205, %206 in 0 : vector<2x32xf32>, vector<126x32xf32> -> vector<128x32xf32>
    %c2_i32_18 = arith.constant 2 : i32
    %208 = vector.broadcast %c2_i32_18 : i32 to vector<128x1xi32>
    %209 = arith.cmpi sge, %1, %208 : vector<128x1xi32>
    %c18_i32_19 = arith.constant 18 : i32
    %210 = vector.broadcast %c18_i32_19 : i32 to vector<128x1xi32>
    %211 = arith.cmpi slt, %1, %210 : vector<128x1xi32>
    %212 = arith.andi %209, %211 : vector<128x1xi1>
    %213 = vector.shape_cast %212 : vector<128x1xi1> to vector<128x1xi1>
    %214 = vector.broadcast %213 : vector<128x1xi1> to vector<128x32xi1>
    %215 = arith.select %214, %207, %156 : vector<128x32xi1>, vector<128x32xf32>
    %216 = arith.truncf %215 : vector<128x32xf32> to vector<128x32xbf16>
    %217 = vector.extract_strided_slice %155 {offsets = [127, 0], sizes = [1, 32], strides = [1, 1]} : vector<128x32xf32> to vector<1x32xf32>
    %218 = vector.extract_strided_slice %155 {offsets = [0, 0], sizes = [127, 32], strides = [1, 1]} : vector<128x32xf32> to vector<127x32xf32>
    %219 = tpu.concatenate %217, %218 in 0 : vector<1x32xf32>, vector<127x32xf32> -> vector<128x32xf32>
    %c1_i32_20 = arith.constant 1 : i32
    %220 = vector.broadcast %c1_i32_20 : i32 to vector<128x1xi32>
    %221 = arith.cmpi sge, %1, %220 : vector<128x1xi32>
    %c17_i32_21 = arith.constant 17 : i32
    %222 = vector.broadcast %c17_i32_21 : i32 to vector<128x1xi32>
    %223 = arith.cmpi slt, %1, %222 : vector<128x1xi32>
    %224 = arith.andi %221, %223 : vector<128x1xi1>
    %225 = vector.shape_cast %224 : vector<128x1xi1> to vector<128x1xi1>
    %226 = vector.broadcast %225 : vector<128x1xi1> to vector<128x32xi1>
    %227 = arith.select %226, %219, %156 : vector<128x32xi1>, vector<128x32xf32>
    %228 = arith.truncf %227 : vector<128x32xf32> to vector<128x32xbf16>
    %229 = arith.truncf %155 : vector<128x32xf32> to vector<128x32xbf16>
    %230 = vector.extract_strided_slice %155 {offsets = [1, 0], sizes = [127, 32], strides = [1, 1]} : vector<128x32xf32> to vector<127x32xf32>
    %231 = vector.extract_strided_slice %155 {offsets = [0, 0], sizes = [1, 32], strides = [1, 1]} : vector<128x32xf32> to vector<1x32xf32>
    %232 = tpu.concatenate %230, %231 in 0 : vector<127x32xf32>, vector<1x32xf32> -> vector<128x32xf32>
    %c-1_i32_22 = arith.constant -1 : i32
    %233 = vector.broadcast %c-1_i32_22 : i32 to vector<128x1xi32>
    %234 = arith.cmpi sge, %1, %233 : vector<128x1xi32>
    %c15_i32_23 = arith.constant 15 : i32
    %235 = vector.broadcast %c15_i32_23 : i32 to vector<128x1xi32>
    %236 = arith.cmpi slt, %1, %235 : vector<128x1xi32>
    %237 = arith.andi %234, %236 : vector<128x1xi1>
    %238 = vector.shape_cast %237 : vector<128x1xi1> to vector<128x1xi1>
    %239 = vector.broadcast %238 : vector<128x1xi1> to vector<128x32xi1>
    %240 = arith.select %239, %232, %156 : vector<128x32xi1>, vector<128x32xf32>
    %241 = arith.truncf %240 : vector<128x32xf32> to vector<128x32xbf16>
    %242 = vector.extract_strided_slice %155 {offsets = [2, 0], sizes = [126, 32], strides = [1, 1]} : vector<128x32xf32> to vector<126x32xf32>
    %243 = vector.extract_strided_slice %155 {offsets = [0, 0], sizes = [2, 32], strides = [1, 1]} : vector<128x32xf32> to vector<2x32xf32>
    %244 = tpu.concatenate %242, %243 in 0 : vector<126x32xf32>, vector<2x32xf32> -> vector<128x32xf32>
    %c-2_i32_24 = arith.constant -2 : i32
    %245 = vector.broadcast %c-2_i32_24 : i32 to vector<128x1xi32>
    %246 = arith.cmpi sge, %1, %245 : vector<128x1xi32>
    %c14_i32_25 = arith.constant 14 : i32
    %247 = vector.broadcast %c14_i32_25 : i32 to vector<128x1xi32>
    %248 = arith.cmpi slt, %1, %247 : vector<128x1xi32>
    %249 = arith.andi %246, %248 : vector<128x1xi1>
    %250 = vector.shape_cast %249 : vector<128x1xi1> to vector<128x1xi1>
    %251 = vector.broadcast %250 : vector<128x1xi1> to vector<128x32xi1>
    %252 = arith.select %251, %244, %156 : vector<128x32xi1>, vector<128x32xf32>
    %253 = arith.truncf %252 : vector<128x32xf32> to vector<128x32xbf16>
    %254 = vector.extract_strided_slice %155 {offsets = [3, 0], sizes = [125, 32], strides = [1, 1]} : vector<128x32xf32> to vector<125x32xf32>
    %255 = vector.extract_strided_slice %155 {offsets = [0, 0], sizes = [3, 32], strides = [1, 1]} : vector<128x32xf32> to vector<3x32xf32>
    %256 = tpu.concatenate %254, %255 in 0 : vector<125x32xf32>, vector<3x32xf32> -> vector<128x32xf32>
    %c-3_i32_26 = arith.constant -3 : i32
    %257 = vector.broadcast %c-3_i32_26 : i32 to vector<128x1xi32>
    %258 = arith.cmpi sge, %1, %257 : vector<128x1xi32>
    %c13_i32_27 = arith.constant 13 : i32
    %259 = vector.broadcast %c13_i32_27 : i32 to vector<128x1xi32>
    %260 = arith.cmpi slt, %1, %259 : vector<128x1xi32>
    %261 = arith.andi %258, %260 : vector<128x1xi1>
    %262 = vector.shape_cast %261 : vector<128x1xi1> to vector<128x1xi1>
    %263 = vector.broadcast %262 : vector<128x1xi1> to vector<128x32xi1>
    %264 = arith.select %263, %256, %156 : vector<128x32xi1>, vector<128x32xf32>
    %265 = arith.truncf %264 : vector<128x32xf32> to vector<128x32xbf16>
    %266 = vector.extract_strided_slice %155 {offsets = [4, 0], sizes = [124, 32], strides = [1, 1]} : vector<128x32xf32> to vector<124x32xf32>
    %267 = vector.extract_strided_slice %155 {offsets = [0, 0], sizes = [4, 32], strides = [1, 1]} : vector<128x32xf32> to vector<4x32xf32>
    %268 = tpu.concatenate %266, %267 in 0 : vector<124x32xf32>, vector<4x32xf32> -> vector<128x32xf32>
    %c-4_i32_28 = arith.constant -4 : i32
    %269 = vector.broadcast %c-4_i32_28 : i32 to vector<128x1xi32>
    %270 = arith.cmpi sge, %1, %269 : vector<128x1xi32>
    %c12_i32_29 = arith.constant 12 : i32
    %271 = vector.broadcast %c12_i32_29 : i32 to vector<128x1xi32>
    %272 = arith.cmpi slt, %1, %271 : vector<128x1xi32>
    %273 = arith.andi %270, %272 : vector<128x1xi1>
    %274 = vector.shape_cast %273 : vector<128x1xi1> to vector<128x1xi1>
    %275 = vector.broadcast %274 : vector<128x1xi1> to vector<128x32xi1>
    %276 = arith.select %275, %268, %156 : vector<128x32xi1>, vector<128x32xf32>
    %277 = arith.truncf %276 : vector<128x32xf32> to vector<128x32xbf16>
    %278 = vector.extract_strided_slice %155 {offsets = [5, 0], sizes = [123, 32], strides = [1, 1]} : vector<128x32xf32> to vector<123x32xf32>
    %279 = vector.extract_strided_slice %155 {offsets = [0, 0], sizes = [5, 32], strides = [1, 1]} : vector<128x32xf32> to vector<5x32xf32>
    %280 = tpu.concatenate %278, %279 in 0 : vector<123x32xf32>, vector<5x32xf32> -> vector<128x32xf32>
    %c-5_i32_30 = arith.constant -5 : i32
    %281 = vector.broadcast %c-5_i32_30 : i32 to vector<128x1xi32>
    %282 = arith.cmpi sge, %1, %281 : vector<128x1xi32>
    %c11_i32_31 = arith.constant 11 : i32
    %283 = vector.broadcast %c11_i32_31 : i32 to vector<128x1xi32>
    %284 = arith.cmpi slt, %1, %283 : vector<128x1xi32>
    %285 = arith.andi %282, %284 : vector<128x1xi1>
    %286 = vector.shape_cast %285 : vector<128x1xi1> to vector<128x1xi1>
    %287 = vector.broadcast %286 : vector<128x1xi1> to vector<128x32xi1>
    %288 = arith.select %287, %280, %156 : vector<128x32xi1>, vector<128x32xf32>
    %289 = arith.truncf %288 : vector<128x32xf32> to vector<128x32xbf16>
    %290 = vector.extract_strided_slice %155 {offsets = [6, 0], sizes = [122, 32], strides = [1, 1]} : vector<128x32xf32> to vector<122x32xf32>
    %291 = vector.extract_strided_slice %155 {offsets = [0, 0], sizes = [6, 32], strides = [1, 1]} : vector<128x32xf32> to vector<6x32xf32>
    %292 = tpu.concatenate %290, %291 in 0 : vector<122x32xf32>, vector<6x32xf32> -> vector<128x32xf32>
    %c-6_i32_32 = arith.constant -6 : i32
    %293 = vector.broadcast %c-6_i32_32 : i32 to vector<128x1xi32>
    %294 = arith.cmpi sge, %1, %293 : vector<128x1xi32>
    %c10_i32_33 = arith.constant 10 : i32
    %295 = vector.broadcast %c10_i32_33 : i32 to vector<128x1xi32>
    %296 = arith.cmpi slt, %1, %295 : vector<128x1xi32>
    %297 = arith.andi %294, %296 : vector<128x1xi1>
    %298 = vector.shape_cast %297 : vector<128x1xi1> to vector<128x1xi1>
    %299 = vector.broadcast %298 : vector<128x1xi1> to vector<128x32xi1>
    %300 = arith.select %299, %292, %156 : vector<128x32xi1>, vector<128x32xf32>
    %301 = arith.truncf %300 : vector<128x32xf32> to vector<128x32xbf16>
    %302 = tpu.concatenate %168, %180, %192, %204, %216, %228, %229, %241, %253, %265, %277, %289, %301 in 1 : vector<128x32xbf16>, vector<128x32xbf16>, vector<128x32xbf16>, vector<128x32xbf16>, vector<128x32xbf16>, vector<128x32xbf16>, vector<128x32xbf16>, vector<128x32xbf16>, vector<128x32xbf16>, vector<128x32xbf16>, vector<128x32xbf16>, vector<128x32xbf16>, vector<128x32xbf16> -> vector<128x416xbf16>
    %c0_34 = arith.constant 0 : index
    %c0_35 = arith.constant 0 : index
    %303 = vector.load %arg5[%c0_34, %c0_35] : memref<416x32xbf16, #tpu.memory_space<vmem>>, vector<416x32xbf16>
    %cst_36 = arith.constant dense<0.000000e+00> : vector<128x32xf32>
    %304 = tpu.matmul %302, %303, %cst_36 {dimension_numbers = #tpu.dot_dimension_numbers<[1], [0], [0], [1], [0, 0, 1, 1], [], []>} : vector<128x416xbf16>, vector<416x32xbf16>, vector<128x32xf32> -> vector<128x32xf32>
    %c0_37 = arith.constant 0 : index
    %c0_38 = arith.constant 0 : index
    %305 = vector.load %arg6[%c0_37, %c0_38] : memref<1x32xf32, #tpu.memory_space<vmem>>, vector<1x32xf32>
    %306 = vector.broadcast %305 : vector<1x32xf32> to vector<128x32xf32>
    %307 = arith.addf %304, %306 : vector<128x32xf32>
    %308 = arith.addf %307, %0 : vector<128x32xf32>
    %c0_39 = arith.constant 0 : index
    %c0_40 = arith.constant 0 : index
    %309 = vector.load %arg7[%c0_39, %c0_40] : memref<128x32xf32, #tpu.memory_space<vmem>>, vector<128x32xf32>
    tpu.vector_store %arg7[%c0_39, %c0_40], %308 {strides = array<i32>} : memref<128x32xf32, #tpu.memory_space<vmem>>, vector<128x32xf32>,
    return
  }
  func.func @transform_0(%arg0: i32) -> (i32, i32) {
    %c0_i32 = arith.constant 0 : i32
    %c0_i32_0 = arith.constant 0 : i32
    return %arg0, %c0_i32 : i32, i32
  }
  func.func @transform_1(%arg0: i32) -> (i32, i32) {
    %c0_i32 = arith.constant 0 : i32
    %c0_i32_0 = arith.constant 0 : i32
    return %arg0, %c0_i32 : i32, i32
  }
  func.func @transform_2(%arg0: i32) -> (i32, i32) {
    %c0_i32 = arith.constant 0 : i32
    %c0_i32_0 = arith.constant 0 : i32
    %c0_i32_1 = arith.constant 0 : i32
    return %c0_i32, %c0_i32_0 : i32, i32
  }
  func.func @transform_3(%arg0: i32) -> (i32, i32) {
    %c0_i32 = arith.constant 0 : i32
    %c0_i32_0 = arith.constant 0 : i32
    %c0_i32_1 = arith.constant 0 : i32
    return %c0_i32, %c0_i32_0 : i32, i32
  }
  func.func @transform_4(%arg0: i32) -> (i32, i32) {
    %c0_i32 = arith.constant 0 : i32
    %c0_i32_0 = arith.constant 0 : i32
    %c0_i32_1 = arith.constant 0 : i32
    return %c0_i32, %c0_i32_0 : i32, i32
  }
  func.func @transform_5(%arg0: i32) -> (i32, i32) {
    %c0_i32 = arith.constant 0 : i32
    %c0_i32_0 = arith.constant 0 : i32
    %c0_i32_1 = arith.constant 0 : i32
    return %c0_i32, %c0_i32_0 : i32, i32
  }
  func.func @transform_6(%arg0: i32) -> (i32, i32) {
    %c0_i32 = arith.constant 0 : i32
    %c0_i32_0 = arith.constant 0 : i32
    return %arg0, %c0_i32 : i32, i32
  }
}

</mosaic_0001>

<llo_original>
// kernel: tpu_custom_call.1
$region0: #{tpu_custom_call.1}
  #allocation0 [shape = 'u32[]', space=smem, size = 0x4, offset = 0x4, fixed_abs, tag = 'smem constant byte address 0x4 - core index']
  #allocation1 [shape = 'u32[72,128]{1,0:T(1,128)}', space=vmem, size = 0x9000, scoped, tag = 'internal scratch']
  %s0 = inlined_call_operand.vmem [shape: s32[256,1], index: 0, kind: input, shape index: {}]
  %s1 = inlined_call_operand.vmem [shape: f32[256,32], index: 1, kind: input, shape index: {}]
  %s2 = inlined_call_operand.vmem [shape: bf16[416,32], index: 2, kind: input, shape index: {}]
  %s3 = inlined_call_operand.vmem [shape: f32[1,32], index: 3, kind: input, shape index: {}]
  %s4 = inlined_call_operand.vmem [shape: bf16[416,32], index: 4, kind: input, shape index: {}]
  %s5 = inlined_call_operand.vmem [shape: f32[1,32], index: 5, kind: input, shape index: {}]
  %s6 = inlined_call_operand.vmem [shape: f32[256,32], index: 6, kind: output, shape index: {}]
  %s7 = sld [smem:[#allocation0]]
  $region57: #{tpu_custom_call.1} parent=0
    _
  %s9 = ssub.s32 1, %s7
  %s10 = scalar_select 0, %s9, %s7
  loop: start=0, step=1, limit=4
  $region2: #{tpu_custom_call.1} parent=0 // loop_pre_header
    _
  $region3: #{tpu_custom_call.1} parent=0 // loop_header
    %s12 = sphi 0, %s16
    %p13 = scmp.ge.s32.totalorder %s12, 4
    %s22 = sphi 0, %s24
    %s25 = sphi 0, %s22
    %s26 = sphi 0, %s25
    %s42 = sphi 0, %s26
    %s48 = sphi 0, %s50
    %s51 = sphi 0, %s48
    %s52 = sphi 0, %s51
    %s68 = sphi 0, %s52
    %s72 = sphi 0, %s72
    %s74 = sphi 0, %s72
    %s75 = sphi 0, %s74
    %s89 = sphi 0, %s75
    %s93 = sphi 0, %s93
    %s95 = sphi 0, %s93
    %s96 = sphi 0, %s95
    %s110 = sphi 0, %s96
    %s114 = sphi 0, %s114
    %s116 = sphi 0, %s114
    %s117 = sphi 0, %s116
    %s131 = sphi 0, %s117
    %s135 = sphi 0, %s135
    %s137 = sphi 0, %s135
    %s138 = sphi 0, %s137
    %s152 = sphi 0, %s138
    %s158 = sphi 0, %s160
    %s161 = sphi 0, %s158
    %s162 = sphi 0, %s161
    %s178 = sphi 0, %s162
  $region4: #{tpu_custom_call.1} parent=0 // loop_header_branch
    %15 = sbr.rel (%p13) target = $region8
  $region5: #{tpu_custom_call.1} parent=0 // loop_body
    %s17 = ssub.s32 %s12, 1
    %s18 = ssub.s32 %s12, 2
    %s19 = sadd.s32 %s12, 1
    %s20 = ssub.s32 %s12, %s19
    %p21 = scmp.eq.s32.totalorder %s20, 0
    %s23 = sadd.s32 %s22, 1
    %s24 = scalar_select %p21, %s22, %s23
    %p27 = pneg %p21
    %p28 = scmp.eq.s32.totalorder %s12, 1
    %p29 = por %p27, %p28
    %p30 = scmp.ne.s32.totalorder %s22, %s25
    %p31 = scmp.eq.s32.totalorder %s12, 0
    %p32 = por %p30, %p31
    %p33 = scmp.ne.s32.totalorder %s22, %s25
    %p34 = scmp.eq.s32.totalorder %s17, 1
    %p35 = por %p33, %p34
    %p36 = scmp.ne.s32.totalorder %s25, %s26
    %p37 = scmp.eq.s32.totalorder %s17, 0
    %p38 = por %p36, %p37
    %p39 = scmp.ne.s32.totalorder %s25, %s26
    %p40 = scmp.eq.s32.totalorder %s18, 1
    %p41 = por %p39, %p40
    %p43 = scmp.ne.s32.totalorder %s26, %s42
    %p44 = scmp.eq.s32.totalorder %s18, 0
    %p45 = por %p43, %p44
    %s46 = ssub.s32 %s12, %s19
    %p47 = scmp.eq.s32.totalorder %s46, 0
    %s49 = sadd.s32 %s48, 1
    %s50 = scalar_select %p47, %s48, %s49
    %p53 = pneg %p47
    %p54 = scmp.eq.s32.totalorder %s12, 1
    %p55 = por %p53, %p54
    %p56 = scmp.ne.s32.totalorder %s48, %s51
    %p57 = scmp.eq.s32.totalorder %s12, 0
    %p58 = por %p56, %p57
    %p59 = scmp.ne.s32.totalorder %s48, %s51
    %p60 = scmp.eq.s32.totalorder %s17, 1
    %p61 = por %p59, %p60
    %p62 = scmp.ne.s32.totalorder %s51, %s52
    %p63 = scmp.eq.s32.totalorder %s17, 0
    %p64 = por %p62, %p63
    %p65 = scmp.ne.s32.totalorder %s51, %s52
    %p66 = scmp.eq.s32.totalorder %s18, 1
    %p67 = por %p65, %p66
    %p69 = scmp.ne.s32.totalorder %s52, %s68
    %p70 = scmp.eq.s32.totalorder %s18, 0
    %p71 = por %p69, %p70
    %s73 = sadd.s32 %s72, 1
    %p76 = scmp.eq.s32.totalorder %s12, 1
    %p77 = scmp.ne.s32.totalorder %s72, %s74
    %p78 = scmp.eq.s32.totalorder %s12, 0
    %p79 = por %p77, %p78
    %p80 = scmp.ne.s32.totalorder %s72, %s74
    %p81 = scmp.eq.s32.totalorder %s17, 1
    %p82 = por %p80, %p81
    %p83 = scmp.ne.s32.totalorder %s74, %s75
    %p84 = scmp.eq.s32.totalorder %s17, 0
    %p85 = por %p83, %p84
    %p86 = scmp.ne.s32.totalorder %s74, %s75
    %p87 = scmp.eq.s32.totalorder %s18, 1
    %p88 = por %p86, %p87
    %p90 = scmp.ne.s32.totalorder %s75, %s89
    %p91 = scmp.eq.s32.totalorder %s18, 0
    %p92 = por %p90, %p91
    %s94 = sadd.s32 %s93, 1
    %p97 = scmp.eq.s32.totalorder %s12, 1
    %p98 = scmp.ne.s32.totalorder %s93, %s95
    %p99 = scmp.eq.s32.totalorder %s12, 0
    %p100 = por %p98, %p99
    %p101 = scmp.ne.s32.totalorder %s93, %s95
    %p102 = scmp.eq.s32.totalorder %s17, 1
    %p103 = por %p101, %p102
    %p104 = scmp.ne.s32.totalorder %s95, %s96
    %p105 = scmp.eq.s32.totalorder %s17, 0
    %p106 = por %p104, %p105
    %p107 = scmp.ne.s32.totalorder %s95, %s96
    %p108 = scmp.eq.s32.totalorder %s18, 1
    %p109 = por %p107, %p108
    %p111 = scmp.ne.s32.totalorder %s96, %s110
    %p112 = scmp.eq.s32.totalorder %s18, 0
    %p113 = por %p111, %p112
    %s115 = sadd.s32 %s114, 1
    %p118 = scmp.eq.s32.totalorder %s12, 1
    %p119 = scmp.ne.s32.totalorder %s114, %s116
    %p120 = scmp.eq.s32.totalorder %s12, 0
    %p121 = por %p119, %p120
    %p122 = scmp.ne.s32.totalorder %s114, %s116
    %p123 = scmp.eq.s32.totalorder %s17, 1
    %p124 = por %p122, %p123
    %p125 = scmp.ne.s32.totalorder %s116, %s117
    %p126 = scmp.eq.s32.totalorder %s17, 0
    %p127 = por %p125, %p126
    %p128 = scmp.ne.s32.totalorder %s116, %s117
    %p129 = scmp.eq.s32.totalorder %s18, 1
    %p130 = por %p128, %p129
    %p132 = scmp.ne.s32.totalorder %s117, %s131
    %p133 = scmp.eq.s32.totalorder %s18, 0
    %p134 = por %p132, %p133
    %s136 = sadd.s32 %s135, 1
    %p139 = scmp.eq.s32.totalorder %s12, 1
    %p140 = scmp.ne.s32.totalorder %s135, %s137
    %p141 = scmp.eq.s32.totalorder %s12, 0
    %p142 = por %p140, %p141
    %p143 = scmp.ne.s32.totalorder %s135, %s137
    %p144 = scmp.eq.s32.totalorder %s17, 1
    %p145 = por %p143, %p144
    %p146 = scmp.ne.s32.totalorder %s137, %s138
    %p147 = scmp.eq.s32.totalorder %s17, 0
    %p148 = por %p146, %p147
    %p149 = scmp.ne.s32.totalorder %s137, %s138
    %p150 = scmp.eq.s32.totalorder %s18, 1
    %p151 = por %p149, %p150
    %p153 = scmp.ne.s32.totalorder %s138, %s152
    %p154 = scmp.eq.s32.totalorder %s18, 0
    %p155 = por %p153, %p154
    %s156 = ssub.s32 %s12, %s19
    %p157 = scmp.eq.s32.totalorder %s156, 0
    %s159 = sadd.s32 %s158, 1
    %s160 = scalar_select %p157, %s158, %s159
    %p163 = pneg %p157
    %p164 = scmp.eq.s32.totalorder %s12, 1
    %p165 = por %p163, %p164
    %p166 = scmp.ne.s32.totalorder %s158, %s161
    %p167 = scmp.eq.s32.totalorder %s12, 0
    %p168 = por %p166, %p167
    %p169 = scmp.ne.s32.totalorder %s158, %s161
    %p170 = scmp.eq.s32.totalorder %s17, 1
    %p171 = por %p169, %p170
    %p172 = scmp.ne.s32.totalorder %s161, %s162
    %p173 = scmp.eq.s32.totalorder %s17, 0
    %p174 = por %p172, %p173
    %p175 = scmp.ne.s32.totalorder %s161, %s162
    %p176 = scmp.eq.s32.totalorder %s18, 1
    %p177 = por %p175, %p176
    %p179 = scmp.ne.s32.totalorder %s162, %s178
    %p180 = scmp.eq.s32.totalorder %s18, 0
    %p181 = por %p179, %p180
    %p182 = scmp.le.s32.totalorder 1, %s12
    %p183 = scmp.lt.s32.totalorder %s12, 3
    %p184 = pnand %p182, %p183
    %p185 = pneg %p184
    // Predicated region
    $region9: #{tpu_custom_call.1} parent=5 // pred_check
      _
    $region10: #{tpu_custom_call.1} parent=5 // pred_check_branch
      %187 = sbr.rel (%p184) target = $region12
    $region11: #{tpu_custom_call.1} parent=5 // pred_region
      %s188 = ssub.s32 %s12, 1
      // Predicated region
      $region13: #{tpu_custom_call.1} parent=11 // pred_check
        %p189 = pneg %p85
      $region14: #{tpu_custom_call.1} parent=11 // pred_check_branch
        %191 = sbr.rel (%p189) target = $region16
      $region15: #{tpu_custom_call.1} parent=11 // pred_region
        _
      $region16: #{tpu_custom_call.1} parent=11 // pred_fallthru
        _
      // Predicated region
      $region17: #{tpu_custom_call.1} parent=11 // pred_check
        %p192 = pneg %p106
      $region18: #{tpu_custom_call.1} parent=11 // pred_check_branch
        %194 = sbr.rel (%p192) target = $region20
      $region19: #{tpu_custom_call.1} parent=11 // pred_region
        _
      $region20: #{tpu_custom_call.1} parent=11 // pred_fallthru
        _
      // Predicated region
      $region21: #{tpu_custom_call.1} parent=11 // pred_check
        %p195 = pneg %p127
      $region22: #{tpu_custom_call.1} parent=11 // pred_check_branch
        %197 = sbr.rel (%p195) target = $region24
      $region23: #{tpu_custom_call.1} parent=11 // pred_region
        _
      $region24: #{tpu_custom_call.1} parent=11 // pred_fallthru
        _
      // Predicated region
      $region25: #{tpu_custom_call.1} parent=11 // pred_check
        %p198 = pneg %p148
      $region26: #{tpu_custom_call.1} parent=11 // pred_check_branch
        %200 = sbr.rel (%p198) target = $region28
      $region27: #{tpu_custom_call.1} parent=11 // pred_region
        _
      $region28: #{tpu_custom_call.1} parent=11 // pred_fallthru
        _
    $region12: #{tpu_custom_call.1} parent=5 // pred_fallthru
      _
    %p201 = scmp.lt.s32.totalorder %s12, 2
    // Predicated region
    $region29: #{tpu_custom_call.1} parent=5 // pred_check
      %p202 = pneg %p201
    $region30: #{tpu_custom_call.1} parent=5 // pred_check_branch
      %204 = sbr.rel (%p202) target = $region32
    $region31: #{tpu_custom_call.1} parent=5 // pred_region
      // Predicated region
      $region33: #{tpu_custom_call.1} parent=31 // pred_check
        %p205 = pneg %p32
      $region34: #{tpu_custom_call.1} parent=31 // pred_check_branch
        %207 = sbr.rel (%p205) target = $region36
      $region35: #{tpu_custom_call.1} parent=31 // pred_region
        %s208 = smul.u32 16, %s12
        %p209 = scmp.lt.s32.totalorder %s208, 31
        %s210 = scalar_select %p209, %s208, 31
        %s211 = smul.addr %s210, 8
        %s212 = scalar_lea.vmem %s0, %s211
        %s213 = smul.u32 16, %s12
      $region36: #{tpu_custom_call.1} parent=31 // pred_fallthru
        _
      // Predicated region
      $region37: #{tpu_custom_call.1} parent=31 // pred_check
        %p214 = pneg %p58
      $region38: #{tpu_custom_call.1} parent=31 // pred_check_branch
        %216 = sbr.rel (%p214) target = $region40
      $region39: #{tpu_custom_call.1} parent=31 // pred_region
        %s217 = smul.u32 16, %s12
        %p218 = scmp.lt.s32.totalorder %s217, 31
        %s219 = scalar_select %p218, %s217, 31
        %s220 = smul.addr %s219, 8
        %s221 = scalar_lea.vmem %s1, %s220
        %s222 = smul.u32 16, %s12
      $region40: #{tpu_custom_call.1} parent=31 // pred_fallthru
        _
    $region32: #{tpu_custom_call.1} parent=5 // pred_fallthru
      _
    %p223 = scmp.le.s32.totalorder 1, %s12
    %p224 = scmp.lt.s32.totalorder %s12, 3
    %p225 = pnand %p223, %p224
    %p226 = pneg %p225
    // Predicated region
    $region41: #{tpu_custom_call.1} parent=5 // pred_check
      _
    $region42: #{tpu_custom_call.1} parent=5 // pred_check_branch
      %228 = sbr.rel (%p225) target = $region44
    $region43: #{tpu_custom_call.1} parent=5 // pred_region
      %s229 = ssub.s32 %s12, 1
      %s230 = smul.u32 16, %s17
      %p231 = scmp.lt.s32.totalorder %s230, 31
      %s232 = scalar_select %p231, %s230, 31
      %s233 = smul.addr %s232, 8
      %s234 = scalar_lea.vmem %s0, %s233
      %p235 = pneg %p38
      %p236 = pneg %p35
      %s237 = smul.u32 16, %s17
      %p238 = scmp.lt.s32.totalorder %s237, 31
      %s239 = scalar_select %p238, %s237, 31
      %s240 = smul.addr %s239, 8
      %s241 = scalar_lea.vmem %s1, %s240
      %p242 = pneg %p64
      %p243 = pneg %p61
      %p244 = pneg %p85
      %p245 = pneg %p82
      %p246 = pneg %p106
      %p247 = pneg %p103
      %p248 = pneg %p127
      %p249 = pneg %p124
      %p250 = pneg %p148
      %p251 = pneg %p145
      %p252 = pneg %p174
      %p253 = pneg %p171
      %s254 = smul.u32 16, %s17
      %p255 = scmp.lt.s32.totalorder %s254, 31
      %s256 = scalar_select %p255, %s254, 31
      %s257 = smul.addr %s256, 8
      %s258 = scalar_lea.vmem %s6, %s257
      %s259 = smul.u32 16, %s17
      %p260 = scmp.lt.s32.totalorder %s259, 31
      %s261 = scalar_select %p260, %s259, 31
      %s262 = smul.addr %s261, 8
      %s263 = scalar_lea.vmem %s0, %s262
      %s264 = smul.u32 16, %s17
      %s265 = smul.u32 16, %s17
      %p266 = scmp.lt.s32.totalorder %s265, 31
      %s267 = scalar_select %p266, %s265, 31
      %s268 = smul.addr %s267, 8
      %s269 = scalar_lea.vmem %s1, %s268
      %s270 = smul.u32 16, %s17
      %s271 = smul.u32 16, %s17
      %p272 = scmp.lt.s32.totalorder %s271, 31
      %s273 = scalar_select %p272, %s271, 31
      %s274 = smul.addr %s273, 8
      %s275 = scalar_lea.vmem %s6, %s274
      %s276 = smul.u32 16, %s17
      %v278 = vld [vmem:[%s269] sm:$0xff]
      %v279 = vld [vmem:[%s269 + $0x8] sm:$0xff]
      %v280 = vld [vmem:[%s269 + $0x10] sm:$0xff]
      %v281 = vld [vmem:[%s269 + $0x18] sm:$0xff]
      %v282 = vld [vmem:[%s269 + $0x20] sm:$0xff]
      %v283 = vld [vmem:[%s269 + $0x28] sm:$0xff]
      %v284 = vld [vmem:[%s269 + $0x30] sm:$0xff]
      %v285 = vld [vmem:[%s269 + $0x38] sm:$0xff]
      %v286 = vld [vmem:[%s269 + $0x40] sm:$0xff]
      %v287 = vld [vmem:[%s269 + $0x48] sm:$0xff]
      %v288 = vld [vmem:[%s269 + $0x50] sm:$0xff]
      %v289 = vld [vmem:[%s269 + $0x58] sm:$0xff]
      %v290 = vld [vmem:[%s269 + $0x60] sm:$0xff]
      %v291 = vld [vmem:[%s269 + $0x68] sm:$0xff]
      %v292 = vld [vmem:[%s269 + $0x70] sm:$0xff]
      %v293 = vld [vmem:[%s269 + $0x78] sm:$0xff]
      %v294 = vld [vmem:[%s263] sm:$0xff]
      %v295 = vld [vmem:[%s263 + $0x8] sm:$0xff]
      %v296 = vld [vmem:[%s263 + $0x10] sm:$0xff]
      %v297 = vld [vmem:[%s263 + $0x18] sm:$0xff]
      %v298 = vld [vmem:[%s263 + $0x20] sm:$0xff]
      %v299 = vld [vmem:[%s263 + $0x28] sm:$0xff]
      %v300 = vld [vmem:[%s263 + $0x30] sm:$0xff]
      %v301 = vld [vmem:[%s263 + $0x38] sm:$0xff]
      %v302 = vld [vmem:[%s263 + $0x40] sm:$0xff]
      %v303 = vld [vmem:[%s263 + $0x48] sm:$0xff]
      %v304 = vld [vmem:[%s263 + $0x50] sm:$0xff]
      %v305 = vld [vmem:[%s263 + $0x58] sm:$0xff]
      %v306 = vld [vmem:[%s263 + $0x60] sm:$0xff]
      %v307 = vld [vmem:[%s263 + $0x68] sm:$0xff]
      %v308 = vld [vmem:[%s263 + $0x70] sm:$0xff]
      %v309 = vld [vmem:[%s263 + $0x78] sm:$0xff]
      %v311 = vrot.slane %v293, 2
      %vm328 = vcmask 1045504
      %v329 = vrot.slane %v278, 2
      %v330 = vrot.slane %v279, 2
      %v331 = vsel %vm328, %v329, %v330
      %v332 = vrot.slane %v280, 2
      %v333 = vsel %vm328, %v330, %v332
      %v334 = vrot.slane %v281, 2
      %v335 = vsel %vm328, %v332, %v334
      %v336 = vrot.slane %v282, 2
      %v337 = vsel %vm328, %v334, %v336
      %v338 = vrot.slane %v283, 2
      %v339 = vsel %vm328, %v336, %v338
      %v340 = vrot.slane %v284, 2
      %v341 = vsel %vm328, %v338, %v340
      %v342 = vrot.slane %v285, 2
      %v343 = vsel %vm328, %v340, %v342
      %v344 = vrot.slane %v286, 2
      %v345 = vsel %vm328, %v342, %v344
      %v346 = vrot.slane %v287, 2
      %v347 = vsel %vm328, %v344, %v346
      %v348 = vrot.slane %v288, 2
      %v349 = vsel %vm328, %v346, %v348
      %v350 = vrot.slane %v289, 2
      %v351 = vsel %vm328, %v348, %v350
      %v352 = vrot.slane %v290, 2
      %v353 = vsel %vm328, %v350, %v352
      %v354 = vrot.slane %v291, 2
      %v355 = vsel %vm328, %v352, %v354
      %v356 = vrot.slane %v292, 2
      %v357 = vsel %vm328, %v354, %v356
      %v358 = vsel %vm328, %v356, %v311
      %v375 = vsel %vm328, %v311, %v329
      %vm376 = vcmp.ge.s32.totalorder %v294, 6
      %vm377 = vcmp.ge.s32.totalorder %v295, 6
      %vm378 = vcmp.ge.s32.totalorder %v296, 6
      %vm379 = vcmp.ge.s32.totalorder %v297, 6
      %vm380 = vcmp.ge.s32.totalorder %v298, 6
      %vm381 = vcmp.ge.s32.totalorder %v299, 6
      %vm382 = vcmp.ge.s32.totalorder %v300, 6
      %vm383 = vcmp.ge.s32.totalorder %v301, 6
      %vm384 = vcmp.ge.s32.totalorder %v302, 6
      %vm385 = vcmp.ge.s32.totalorder %v303, 6
      %vm386 = vcmp.ge.s32.totalorder %v304, 6
      %vm387 = vcmp.ge.s32.totalorder %v305, 6
      %vm388 = vcmp.ge.s32.totalorder %v306, 6
      %vm389 = vcmp.ge.s32.totalorder %v307, 6
      %vm390 = vcmp.ge.s32.totalorder %v308, 6
      %vm391 = vcmp.ge.s32.totalorder %v309, 6
      %vm392 = vcmp.lt.s32.totalorder %v294, 22
      %vm393 = vcmp.lt.s32.totalorder %v295, 22
      %vm394 = vcmp.lt.s32.totalorder %v296, 22
      %vm395 = vcmp.lt.s32.totalorder %v297, 22
      %vm396 = vcmp.lt.s32.totalorder %v298, 22
      %vm397 = vcmp.lt.s32.totalorder %v299, 22
      %vm398 = vcmp.lt.s32.totalorder %v300, 22
      %vm399 = vcmp.lt.s32.totalorder %v301, 22
      %vm400 = vcmp.lt.s32.totalorder %v302, 22
      %vm401 = vcmp.lt.s32.totalorder %v303, 22
      %vm402 = vcmp.lt.s32.totalorder %v304, 22
      %vm403 = vcmp.lt.s32.totalorder %v305, 22
      %vm404 = vcmp.lt.s32.totalorder %v306, 22
      %vm405 = vcmp.lt.s32.totalorder %v307, 22
      %vm406 = vcmp.lt.s32.totalorder %v308, 22
      %vm407 = vcmp.lt.s32.totalorder %v309, 22
      %vm408 = vmand %vm376, %vm392
      %vm409 = vmand %vm377, %vm393
      %vm410 = vmand %vm378, %vm394
      %vm411 = vmand %vm379, %vm395
      %vm412 = vmand %vm380, %vm396
      %vm413 = vmand %vm381, %vm397
      %vm414 = vmand %vm382, %vm398
      %vm415 = vmand %vm383, %vm399
      %vm416 = vmand %vm384, %vm400
      %vm417 = vmand %vm385, %vm401
      %vm418 = vmand %vm386, %vm402
      %vm419 = vmand %vm387, %vm403
      %vm420 = vmand %vm388, %vm404
      %vm421 = vmand %vm389, %vm405
      %vm422 = vmand %vm390, %vm406
      %vm423 = vmand %vm391, %vm407
      %v424 = vsel %vm408, 1, 0
      %v425 = vsel %vm409, 1, 0
      %v426 = vsel %vm410, 1, 0
      %v427 = vsel %vm411, 1, 0
      %v428 = vsel %vm412, 1, 0
      %v429 = vsel %vm413, 1, 0
      %v430 = vsel %vm414, 1, 0
      %v431 = vsel %vm415, 1, 0
      %v432 = vsel %vm416, 1, 0
      %v433 = vsel %vm417, 1, 0
      %v434 = vsel %vm418, 1, 0
      %v435 = vsel %vm419, 1, 0
      %v436 = vsel %vm420, 1, 0
      %v437 = vsel %vm421, 1, 0
      %v438 = vsel %vm422, 1, 0
      %v439 = vsel %vm423, 1, 0
      %440 = vset.pattern.permute.xlu0 0
      %441 = vperm.xlu0 %440, %v424
      %v442 = vpop.permute.xlu0 %441
      %443 = vset.pattern.permute.xlu0 0
      %444 = vperm.xlu0 %443, %v425
      %v445 = vpop.permute.xlu0 %444
      %446 = vset.pattern.permute.xlu0 0
      %447 = vperm.xlu0 %446, %v426
      %v448 = vpop.permute.xlu0 %447
      %449 = vset.pattern.permute.xlu0 0
      %450 = vperm.xlu0 %449, %v427
      %v451 = vpop.permute.xlu0 %450
      %452 = vset.pattern.permute.xlu0 0
      %453 = vperm.xlu0 %452, %v428
      %v454 = vpop.permute.xlu0 %453
      %455 = vset.pattern.permute.xlu0 0
      %456 = vperm.xlu0 %455, %v429
      %v457 = vpop.permute.xlu0 %456
      %458 = vset.pattern.permute.xlu0 0
      %459 = vperm.xlu0 %458, %v430
      %v460 = vpop.permute.xlu0 %459
      %461 = vset.pattern.permute.xlu0 0
      %462 = vperm.xlu0 %461, %v431
      %v463 = vpop.permute.xlu0 %462
      %464 = vset.pattern.permute.xlu0 0
      %465 = vperm.xlu0 %464, %v432
      %v466 = vpop.permute.xlu0 %465
      %467 = vset.pattern.permute.xlu0 0
      %468 = vperm.xlu0 %467, %v433
      %v469 = vpop.permute.xlu0 %468
      %470 = vset.pattern.permute.xlu0 0
      %471 = vperm.xlu0 %470, %v434
      %v472 = vpop.permute.xlu0 %471
      %473 = vset.pattern.permute.xlu0 0
      %474 = vperm.xlu0 %473, %v435
      %v475 = vpop.permute.xlu0 %474
      %476 = vset.pattern.permute.xlu0 0
      %477 = vperm.xlu0 %476, %v436
      %v478 = vpop.permute.xlu0 %477
      %479 = vset.pattern.permute.xlu0 0
      %480 = vperm.xlu0 %479, %v437
      %v481 = vpop.permute.xlu0 %480
      %482 = vset.pattern.permute.xlu0 0
      %483 = vperm.xlu0 %482, %v438
      %v484 = vpop.permute.xlu0 %483
      %485 = vset.pattern.permute.xlu0 0
      %486 = vperm.xlu0 %485, %v439
      %v487 = vpop.permute.xlu0 %486
      %vm488 = vcmp.eq.s32.totalorder %v442, 1
      %vm489 = vcmp.eq.s32.totalorder %v445, 1
      %vm490 = vcmp.eq.s32.totalorder %v448, 1
      %vm491 = vcmp.eq.s32.totalorder %v451, 1
      %vm492 = vcmp.eq.s32.totalorder %v454, 1
      %vm493 = vcmp.eq.s32.totalorder %v457, 1
      %vm494 = vcmp.eq.s32.totalorder %v460, 1
      %vm495 = vcmp.eq.s32.totalorder %v463, 1
      %vm496 = vcmp.eq.s32.totalorder %v466, 1
      %vm497 = vcmp.eq.s32.totalorder %v469, 1
      %vm498 = vcmp.eq.s32.totalorder %v472, 1
      %vm499 = vcmp.eq.s32.totalorder %v475, 1
      %vm500 = vcmp.eq.s32.totalorder %v478, 1
      %vm501 = vcmp.eq.s32.totalorder %v481, 1
      %vm502 = vcmp.eq.s32.totalorder %v484, 1
      %vm503 = vcmp.eq.s32.totalorder %v487, 1
      %v504 = vsel %vm488, %v375, 0.0
      %v505 = vsel %vm489, %v331, 0.0
      %v506 = vsel %vm490, %v333, 0.0
      %v507 = vsel %vm491, %v335, 0.0
      %v508 = vsel %vm492, %v337, 0.0
      %v509 = vsel %vm493, %v339, 0.0
      %v510 = vsel %vm494, %v341, 0.0
      %v511 = vsel %vm495, %v343, 0.0
      %v512 = vsel %vm496, %v345, 0.0
      %v513 = vsel %vm497, %v347, 0.0
      %v514 = vsel %vm498, %v349, 0.0
      %v515 = vsel %vm499, %v351, 0.0
      %v516 = vsel %vm500, %v353, 0.0
      %v517 = vsel %vm501, %v355, 0.0
      %v518 = vsel %vm502, %v357, 0.0
      %v519 = vsel %vm503, %v358, 0.0
      %v520 = vpack.c.bf16 %v504, %v504
      %v521 = vpack.c.bf16 %v505, %v505
      %v522 = vpack.c.bf16 %v506, %v506
      %v523 = vpack.c.bf16 %v507, %v507
      %v524 = vpack.c.bf16 %v508, %v508
      %v525 = vpack.c.bf16 %v509, %v509
      %v526 = vpack.c.bf16 %v510, %v510
      %v527 = vpack.c.bf16 %v511, %v511
      %v528 = vpack.c.bf16 %v512, %v512
      %v529 = vpack.c.bf16 %v513, %v513
      %v530 = vpack.c.bf16 %v514, %v514
      %v531 = vpack.c.bf16 %v515, %v515
      %v532 = vpack.c.bf16 %v516, %v516
      %v533 = vpack.c.bf16 %v517, %v517
      %v534 = vpack.c.bf16 %v518, %v518
      %v535 = vpack.c.bf16 %v519, %v519
      %v536 = vrot.slane %v293, 3
      %vm538 = vcmask 1044480
      %v539 = vrot.slane %v278, 3
      %v540 = vrot.slane %v279, 3
      %v541 = vsel %vm538, %v539, %v540
      %v542 = vrot.slane %v280, 3
      %v543 = vsel %vm538, %v540, %v542
      %v544 = vrot.slane %v281, 3
      %v545 = vsel %vm538, %v542, %v544
      %v546 = vrot.slane %v282, 3
      %v547 = vsel %vm538, %v544, %v546
      %v548 = vrot.slane %v283, 3
      %v549 = vsel %vm538, %v546, %v548
      %v550 = vrot.slane %v284, 3
      %v551 = vsel %vm538, %v548, %v550
      %v552 = vrot.slane %v285, 3
      %v553 = vsel %vm538, %v550, %v552
      %v554 = vrot.slane %v286, 3
      %v555 = vsel %vm538, %v552, %v554
      %v556 = vrot.slane %v287, 3
      %v557 = vsel %vm538, %v554, %v556
      %v558 = vrot.slane %v288, 3
      %v559 = vsel %vm538, %v556, %v558
      %v560 = vrot.slane %v289, 3
      %v561 = vsel %vm538, %v558, %v560
      %v562 = vrot.slane %v290, 3
      %v563 = vsel %vm538, %v560, %v562
      %v564 = vrot.slane %v291, 3
      %v565 = vsel %vm538, %v562, %v564
      %v566 = vrot.slane %v292, 3
      %v567 = vsel %vm538, %v564, %v566
      %v568 = vsel %vm538, %v566, %v536
      %v585 = vsel %vm538, %v536, %v539
      %vm586 = vcmp.ge.s32.totalorder %v294, 5
      %vm587 = vcmp.ge.s32.totalorder %v295, 5
      %vm588 = vcmp.ge.s32.totalorder %v296, 5
      %vm589 = vcmp.ge.s32.totalorder %v297, 5
      %vm590 = vcmp.ge.s32.totalorder %v298, 5
      %vm591 = vcmp.ge.s32.totalorder %v299, 5
      %vm592 = vcmp.ge.s32.totalorder %v300, 5
      %vm593 = vcmp.ge.s32.totalorder %v301, 5
      %vm594 = vcmp.ge.s32.totalorder %v302, 5
      %vm595 = vcmp.ge.s32.totalorder %v303, 5
      %vm596 = vcmp.ge.s32.totalorder %v304, 5
      %vm597 = vcmp.ge.s32.totalorder %v305, 5
      %vm598 = vcmp.ge.s32.totalorder %v306, 5
      %vm599 = vcmp.ge.s32.totalorder %v307, 5
      %vm600 = vcmp.ge.s32.totalorder %v308, 5
      %vm601 = vcmp.ge.s32.totalorder %v309, 5
      %vm602 = vcmp.lt.s32.totalorder %v294, 21
      %vm603 = vcmp.lt.s32.totalorder %v295, 21
      %vm604 = vcmp.lt.s32.totalorder %v296, 21
      %vm605 = vcmp.lt.s32.totalorder %v297, 21
      %vm606 = vcmp.lt.s32.totalorder %v298, 21
      %vm607 = vcmp.lt.s32.totalorder %v299, 21
      %vm608 = vcmp.lt.s32.totalorder %v300, 21
      %vm609 = vcmp.lt.s32.totalorder %v301, 21
      %vm610 = vcmp.lt.s32.totalorder %v302, 21
      %vm611 = vcmp.lt.s32.totalorder %v303, 21
      %vm612 = vcmp.lt.s32.totalorder %v304, 21
      %vm613 = vcmp.lt.s32.totalorder %v305, 21
      %vm614 = vcmp.lt.s32.totalorder %v306, 21
      %vm615 = vcmp.lt.s32.totalorder %v307, 21
      %vm616 = vcmp.lt.s32.totalorder %v308, 21
      %vm617 = vcmp.lt.s32.totalorder %v309, 21
      %vm618 = vmand %vm586, %vm602
      %vm619 = vmand %vm587, %vm603
      %vm620 = vmand %vm588, %vm604
      %vm621 = vmand %vm589, %vm605
      %vm622 = vmand %vm590, %vm606
      %vm623 = vmand %vm591, %vm607
      %vm624 = vmand %vm592, %vm608
      %vm625 = vmand %vm593, %vm609
      %vm626 = vmand %vm594, %vm610
      %vm627 = vmand %vm595, %vm611
      %vm628 = vmand %vm596, %vm612
      %vm629 = vmand %vm597, %vm613
      %vm630 = vmand %vm598, %vm614
      %vm631 = vmand %vm599, %vm615
      %vm632 = vmand %vm600, %vm616
      %vm633 = vmand %vm601, %vm617
      %v634 = vsel %vm618, 1, 0
      %v635 = vsel %vm619, 1, 0
      %v636 = vsel %vm620, 1, 0
      %v637 = vsel %vm621, 1, 0
      %v638 = vsel %vm622, 1, 0
      %v639 = vsel %vm623, 1, 0
      %v640 = vsel %vm624, 1, 0
      %v641 = vsel %vm625, 1, 0
      %v642 = vsel %vm626, 1, 0
      %v643 = vsel %vm627, 1, 0
      %v644 = vsel %vm628, 1, 0
      %v645 = vsel %vm629, 1, 0
      %v646 = vsel %vm630, 1, 0
      %v647 = vsel %vm631, 1, 0
      %v648 = vsel %vm632, 1, 0
      %v649 = vsel %vm633, 1, 0
      %650 = vset.pattern.permute.xlu0 0
      %651 = vperm.xlu0 %650, %v634
      %v652 = vpop.permute.xlu0 %651
      %653 = vset.pattern.permute.xlu0 0
      %654 = vperm.xlu0 %653, %v635
      %v655 = vpop.permute.xlu0 %654
      %656 = vset.pattern.permute.xlu0 0
      %657 = vperm.xlu0 %656, %v636
      %v658 = vpop.permute.xlu0 %657
      %659 = vset.pattern.permute.xlu0 0
      %660 = vperm.xlu0 %659, %v637
      %v661 = vpop.permute.xlu0 %660
      %662 = vset.pattern.permute.xlu0 0
      %663 = vperm.xlu0 %662, %v638
      %v664 = vpop.permute.xlu0 %663
      %665 = vset.pattern.permute.xlu0 0
      %666 = vperm.xlu0 %665, %v639
      %v667 = vpop.permute.xlu0 %666
      %668 = vset.pattern.permute.xlu0 0
      %669 = vperm.xlu0 %668, %v640
      %v670 = vpop.permute.xlu0 %669
      %671 = vset.pattern.permute.xlu0 0
      %672 = vperm.xlu0 %671, %v641
      %v673 = vpop.permute.xlu0 %672
      %674 = vset.pattern.permute.xlu0 0
      %675 = vperm.xlu0 %674, %v642
      %v676 = vpop.permute.xlu0 %675
      %677 = vset.pattern.permute.xlu0 0
      %678 = vperm.xlu0 %677, %v643
      %v679 = vpop.permute.xlu0 %678
      %680 = vset.pattern.permute.xlu0 0
      %681 = vperm.xlu0 %680, %v644
      %v682 = vpop.permute.xlu0 %681
      %683 = vset.pattern.permute.xlu0 0
      %684 = vperm.xlu0 %683, %v645
      %v685 = vpop.permute.xlu0 %684
      %686 = vset.pattern.permute.xlu0 0
      %687 = vperm.xlu0 %686, %v646
      %v688 = vpop.permute.xlu0 %687
      %689 = vset.pattern.permute.xlu0 0
      %690 = vperm.xlu0 %689, %v647
      %v691 = vpop.permute.xlu0 %690
      %692 = vset.pattern.permute.xlu0 0
      %693 = vperm.xlu0 %692, %v648
      %v694 = vpop.permute.xlu0 %693
      %695 = vset.pattern.permute.xlu0 0
      %696 = vperm.xlu0 %695, %v649
      %v697 = vpop.permute.xlu0 %696
      %vm698 = vcmp.eq.s32.totalorder %v652, 1
      %vm699 = vcmp.eq.s32.totalorder %v655, 1
      %vm700 = vcmp.eq.s32.totalorder %v658, 1
      %vm701 = vcmp.eq.s32.totalorder %v661, 1
      %vm702 = vcmp.eq.s32.totalorder %v664, 1
      %vm703 = vcmp.eq.s32.totalorder %v667, 1
      %vm704 = vcmp.eq.s32.totalorder %v670, 1
      %vm705 = vcmp.eq.s32.totalorder %v673, 1
      %vm706 = vcmp.eq.s32.totalorder %v676, 1
      %vm707 = vcmp.eq.s32.totalorder %v679, 1
      %vm708 = vcmp.eq.s32.totalorder %v682, 1
      %vm709 = vcmp.eq.s32.totalorder %v685, 1
      %vm710 = vcmp.eq.s32.totalorder %v688, 1
      %vm711 = vcmp.eq.s32.totalorder %v691, 1
      %vm712 = vcmp.eq.s32.totalorder %v694, 1
      %vm713 = vcmp.eq.s32.totalorder %v697, 1
      %v714 = vsel %vm698, %v585, 0.0
      %v715 = vsel %vm699, %v541, 0.0
      %v716 = vsel %vm700, %v543, 0.0
      %v717 = vsel %vm701, %v545, 0.0
      %v718 = vsel %vm702, %v547, 0.0
      %v719 = vsel %vm703, %v549, 0.0
      %v720 = vsel %vm704, %v551, 0.0
      %v721 = vsel %vm705, %v553, 0.0
      %v722 = vsel %vm706, %v555, 0.0
      %v723 = vsel %vm707, %v557, 0.0
      %v724 = vsel %vm708, %v559, 0.0
      %v725 = vsel %vm709, %v561, 0.0
      %v726 = vsel %vm710, %v563, 0.0
      %v727 = vsel %vm711, %v565, 0.0
      %v728 = vsel %vm712, %v567, 0.0
      %v729 = vsel %vm713, %v568, 0.0
      %v730 = vpack.c.bf16 %v714, %v714
      %v731 = vpack.c.bf16 %v715, %v715
      %v732 = vpack.c.bf16 %v716, %v716
      %v733 = vpack.c.bf16 %v717, %v717
      %v734 = vpack.c.bf16 %v718, %v718
      %v735 = vpack.c.bf16 %v719, %v719
      %v736 = vpack.c.bf16 %v720, %v720
      %v737 = vpack.c.bf16 %v721, %v721
      %v738 = vpack.c.bf16 %v722, %v722
      %v739 = vpack.c.bf16 %v723, %v723
      %v740 = vpack.c.bf16 %v724, %v724
      %v741 = vpack.c.bf16 %v725, %v725
      %v742 = vpack.c.bf16 %v726, %v726
      %v743 = vpack.c.bf16 %v727, %v727
      %v744 = vpack.c.bf16 %v728, %v728
      %v745 = vpack.c.bf16 %v729, %v729
      %v746 = vrot.slane %v293, 4
      %vm748 = vcmask 1043456
      %v749 = vrot.slane %v278, 4
      %v750 = vrot.slane %v279, 4
      %v751 = vsel %vm748, %v749, %v750
      %v752 = vrot.slane %v280, 4
      %v753 = vsel %vm748, %v750, %v752
      %v754 = vrot.slane %v281, 4
      %v755 = vsel %vm748, %v752, %v754
      %v756 = vrot.slane %v282, 4
      %v757 = vsel %vm748, %v754, %v756
      %v758 = vrot.slane %v283, 4
      %v759 = vsel %vm748, %v756, %v758
      %v760 = vrot.slane %v284, 4
      %v761 = vsel %vm748, %v758, %v760
      %v762 = vrot.slane %v285, 4
      %v763 = vsel %vm748, %v760, %v762
      %v764 = vrot.slane %v286, 4
      %v765 = vsel %vm748, %v762, %v764
      %v766 = vrot.slane %v287, 4
      %v767 = vsel %vm748, %v764, %v766
      %v768 = vrot.slane %v288, 4
      %v769 = vsel %vm748, %v766, %v768
      %v770 = vrot.slane %v289, 4
      %v771 = vsel %vm748, %v768, %v770
      %v772 = vrot.slane %v290, 4
      %v773 = vsel %vm748, %v770, %v772
      %v774 = vrot.slane %v291, 4
      %v775 = vsel %vm748, %v772, %v774
      %v776 = vrot.slane %v292, 4
      %v777 = vsel %vm748, %v774, %v776
      %v778 = vsel %vm748, %v776, %v746
      %v795 = vsel %vm748, %v746, %v749
      %vm796 = vcmp.ge.s32.totalorder %v294, 4
      %vm797 = vcmp.ge.s32.totalorder %v295, 4
      %vm798 = vcmp.ge.s32.totalorder %v296, 4
      %vm799 = vcmp.ge.s32.totalorder %v297, 4
      %vm800 = vcmp.ge.s32.totalorder %v298, 4
      %vm801 = vcmp.ge.s32.totalorder %v299, 4
      %vm802 = vcmp.ge.s32.totalorder %v300, 4
      %vm803 = vcmp.ge.s32.totalorder %v301, 4
      %vm804 = vcmp.ge.s32.totalorder %v302, 4
      %vm805 = vcmp.ge.s32.totalorder %v303, 4
      %vm806 = vcmp.ge.s32.totalorder %v304, 4
      %vm807 = vcmp.ge.s32.totalorder %v305, 4
      %vm808 = vcmp.ge.s32.totalorder %v306, 4
      %vm809 = vcmp.ge.s32.totalorder %v307, 4
      %vm810 = vcmp.ge.s32.totalorder %v308, 4
      %vm811 = vcmp.ge.s32.totalorder %v309, 4
      %vm812 = vcmp.lt.s32.totalorder %v294, 20
      %vm813 = vcmp.lt.s32.totalorder %v295, 20
      %vm814 = vcmp.lt.s32.totalorder %v296, 20
      %vm815 = vcmp.lt.s32.totalorder %v297, 20
      %vm816 = vcmp.lt.s32.totalorder %v298, 20
      %vm817 = vcmp.lt.s32.totalorder %v299, 20
      %vm818 = vcmp.lt.s32.totalorder %v300, 20
      %vm819 = vcmp.lt.s32.totalorder %v301, 20
      %vm820 = vcmp.lt.s32.totalorder %v302, 20
      %vm821 = vcmp.lt.s32.totalorder %v303, 20
      %vm822 = vcmp.lt.s32.totalorder %v304, 20
      %vm823 = vcmp.lt.s32.totalorder %v305, 20
      %vm824 = vcmp.lt.s32.totalorder %v306, 20
      %vm825 = vcmp.lt.s32.totalorder %v307, 20
      %vm826 = vcmp.lt.s32.totalorder %v308, 20
      %vm827 = vcmp.lt.s32.totalorder %v309, 20
      %vm828 = vmand %vm796, %vm812
      %vm829 = vmand %vm797, %vm813
      %vm830 = vmand %vm798, %vm814
      %vm831 = vmand %vm799, %vm815
      %vm832 = vmand %vm800, %vm816
      %vm833 = vmand %vm801, %vm817
      %vm834 = vmand %vm802, %vm818
      %vm835 = vmand %vm803, %vm819
      %vm836 = vmand %vm804, %vm820
      %vm837 = vmand %vm805, %vm821
      %vm838 = vmand %vm806, %vm822
      %vm839 = vmand %vm807, %vm823
      %vm840 = vmand %vm808, %vm824
      %vm841 = vmand %vm809, %vm825
      %vm842 = vmand %vm810, %vm826
      %vm843 = vmand %vm811, %vm827
      %v844 = vsel %vm828, 1, 0
      %v845 = vsel %vm829, 1, 0
      %v846 = vsel %vm830, 1, 0
      %v847 = vsel %vm831, 1, 0
      %v848 = vsel %vm832, 1, 0
      %v849 = vsel %vm833, 1, 0
      %v850 = vsel %vm834, 1, 0
      %v851 = vsel %vm835, 1, 0
      %v852 = vsel %vm836, 1, 0
      %v853 = vsel %vm837, 1, 0
      %v854 = vsel %vm838, 1, 0
      %v855 = vsel %vm839, 1, 0
      %v856 = vsel %vm840, 1, 0
      %v857 = vsel %vm841, 1, 0
      %v858 = vsel %vm842, 1, 0
      %v859 = vsel %vm843, 1, 0
      %860 = vset.pattern.permute.xlu0 0
      %861 = vperm.xlu0 %860, %v844
      %v862 = vpop.permute.xlu0 %861
      %863 = vset.pattern.permute.xlu0 0
      %864 = vperm.xlu0 %863, %v845
      %v865 = vpop.permute.xlu0 %864
      %866 = vset.pattern.permute.xlu0 0
      %867 = vperm.xlu0 %866, %v846
      %v868 = vpop.permute.xlu0 %867
      %869 = vset.pattern.permute.xlu0 0
      %870 = vperm.xlu0 %869, %v847
      %v871 = vpop.permute.xlu0 %870
      %872 = vset.pattern.permute.xlu0 0
      %873 = vperm.xlu0 %872, %v848
      %v874 = vpop.permute.xlu0 %873
      %875 = vset.pattern.permute.xlu0 0
      %876 = vperm.xlu0 %875, %v849
      %v877 = vpop.permute.xlu0 %876
      %878 = vset.pattern.permute.xlu0 0
      %879 = vperm.xlu0 %878, %v850
      %v880 = vpop.permute.xlu0 %879
      %881 = vset.pattern.permute.xlu0 0
      %882 = vperm.xlu0 %881, %v851
      %v883 = vpop.permute.xlu0 %882
      %884 = vset.pattern.permute.xlu0 0
      %885 = vperm.xlu0 %884, %v852
      %v886 = vpop.permute.xlu0 %885
      %887 = vset.pattern.permute.xlu0 0
      %888 = vperm.xlu0 %887, %v853
      %v889 = vpop.permute.xlu0 %888
      %890 = vset.pattern.permute.xlu0 0
      %891 = vperm.xlu0 %890, %v854
      %v892 = vpop.permute.xlu0 %891
      %893 = vset.pattern.permute.xlu0 0
      %894 = vperm.xlu0 %893, %v855
      %v895 = vpop.permute.xlu0 %894
      %896 = vset.pattern.permute.xlu0 0
      %897 = vperm.xlu0 %896, %v856
      %v898 = vpop.permute.xlu0 %897
      %899 = vset.pattern.permute.xlu0 0
      %900 = vperm.xlu0 %899, %v857
      %v901 = vpop.permute.xlu0 %900
      %902 = vset.pattern.permute.xlu0 0
      %903 = vperm.xlu0 %902, %v858
      %v904 = vpop.permute.xlu0 %903
      %905 = vset.pattern.permute.xlu0 0
      %906 = vperm.xlu0 %905, %v859
      %v907 = vpop.permute.xlu0 %906
      %vm908 = vcmp.eq.s32.totalorder %v862, 1
      %vm909 = vcmp.eq.s32.totalorder %v865, 1
      %vm910 = vcmp.eq.s32.totalorder %v868, 1
      %vm911 = vcmp.eq.s32.totalorder %v871, 1
      %vm912 = vcmp.eq.s32.totalorder %v874, 1
      %vm913 = vcmp.eq.s32.totalorder %v877, 1
      %vm914 = vcmp.eq.s32.totalorder %v880, 1
      %vm915 = vcmp.eq.s32.totalorder %v883, 1
      %vm916 = vcmp.eq.s32.totalorder %v886, 1
      %vm917 = vcmp.eq.s32.totalorder %v889, 1
      %vm918 = vcmp.eq.s32.totalorder %v892, 1
      %vm919 = vcmp.eq.s32.totalorder %v895, 1
      %vm920 = vcmp.eq.s32.totalorder %v898, 1
      %vm921 = vcmp.eq.s32.totalorder %v901, 1
      %vm922 = vcmp.eq.s32.totalorder %v904, 1
      %vm923 = vcmp.eq.s32.totalorder %v907, 1
      %v924 = vsel %vm908, %v795, 0.0
      %v925 = vsel %vm909, %v751, 0.0
      %v926 = vsel %vm910, %v753, 0.0
      %v927 = vsel %vm911, %v755, 0.0
      %v928 = vsel %vm912, %v757, 0.0
      %v929 = vsel %vm913, %v759, 0.0
      %v930 = vsel %vm914, %v761, 0.0
      %v931 = vsel %vm915, %v763, 0.0
      %v932 = vsel %vm916, %v765, 0.0
      %v933 = vsel %vm917, %v767, 0.0
      %v934 = vsel %vm918, %v769, 0.0
      %v935 = vsel %vm919, %v771, 0.0
      %v936 = vsel %vm920, %v773, 0.0
      %v937 = vsel %vm921, %v775, 0.0
      %v938 = vsel %vm922, %v777, 0.0
      %v939 = vsel %vm923, %v778, 0.0
      %v940 = vpack.c.bf16 %v924, %v924
      %v941 = vpack.c.bf16 %v925, %v925
      %v942 = vpack.c.bf16 %v926, %v926
      %v943 = vpack.c.bf16 %v927, %v927
      %v944 = vpack.c.bf16 %v928, %v928
      %v945 = vpack.c.bf16 %v929, %v929
      %v946 = vpack.c.bf16 %v930, %v930
      %v947 = vpack.c.bf16 %v931, %v931
      %v948 = vpack.c.bf16 %v932, %v932
      %v949 = vpack.c.bf16 %v933, %v933
      %v950 = vpack.c.bf16 %v934, %v934
      %v951 = vpack.c.bf16 %v935, %v935
      %v952 = vpack.c.bf16 %v936, %v936
      %v953 = vpack.c.bf16 %v937, %v937
      %v954 = vpack.c.bf16 %v938, %v938
      %v955 = vpack.c.bf16 %v939, %v939
      %v956 = vrot.slane %v293, 5
      %vm958 = vcmask 1042432
      %v959 = vrot.slane %v278, 5
      %v960 = vrot.slane %v279, 5
      %v961 = vsel %vm958, %v959, %v960
      %v962 = vrot.slane %v280, 5
      %v963 = vsel %vm958, %v960, %v962
      %v964 = vrot.slane %v281, 5
      %v965 = vsel %vm958, %v962, %v964
      %v966 = vrot.slane %v282, 5
      %v967 = vsel %vm958, %v964, %v966
      %v968 = vrot.slane %v283, 5
      %v969 = vsel %vm958, %v966, %v968
      %v970 = vrot.slane %v284, 5
      %v971 = vsel %vm958, %v968, %v970
      %v972 = vrot.slane %v285, 5
      %v973 = vsel %vm958, %v970, %v972
      %v974 = vrot.slane %v286, 5
      %v975 = vsel %vm958, %v972, %v974
      %v976 = vrot.slane %v287, 5
      %v977 = vsel %vm958, %v974, %v976
      %v978 = vrot.slane %v288, 5
      %v979 = vsel %vm958, %v976, %v978
      %v980 = vrot.slane %v289, 5
      %v981 = vsel %vm958, %v978, %v980
      %v982 = vrot.slane %v290, 5
      %v983 = vsel %vm958, %v980, %v982
      %v984 = vrot.slane %v291, 5
      %v985 = vsel %vm958, %v982, %v984
      %v986 = vrot.slane %v292, 5
      %v987 = vsel %vm958, %v984, %v986
      %v988 = vsel %vm958, %v986, %v956
      %v1005 = vsel %vm958, %v956, %v959
      %vm1006 = vcmp.ge.s32.totalorder %v294, 3
      %vm1007 = vcmp.ge.s32.totalorder %v295, 3
      %vm1008 = vcmp.ge.s32.totalorder %v296, 3
      %vm1009 = vcmp.ge.s32.totalorder %v297, 3
      %vm1010 = vcmp.ge.s32.totalorder %v298, 3
      %vm1011 = vcmp.ge.s32.totalorder %v299, 3
      %vm1012 = vcmp.ge.s32.totalorder %v300, 3
      %vm1013 = vcmp.ge.s32.totalorder %v301, 3
      %vm1014 = vcmp.ge.s32.totalorder %v302, 3
      %vm1015 = vcmp.ge.s32.totalorder %v303, 3
      %vm1016 = vcmp.ge.s32.totalorder %v304, 3
      %vm1017 = vcmp.ge.s32.totalorder %v305, 3
      %vm1018 = vcmp.ge.s32.totalorder %v306, 3
      %vm1019 = vcmp.ge.s32.totalorder %v307, 3
      %vm1020 = vcmp.ge.s32.totalorder %v308, 3
      %vm1021 = vcmp.ge.s32.totalorder %v309, 3
      %vm1022 = vcmp.lt.s32.totalorder %v294, 19
      %vm1023 = vcmp.lt.s32.totalorder %v295, 19
      %vm1024 = vcmp.lt.s32.totalorder %v296, 19
      %vm1025 = vcmp.lt.s32.totalorder %v297, 19
      %vm1026 = vcmp.lt.s32.totalorder %v298, 19
      %vm1027 = vcmp.lt.s32.totalorder %v299, 19
      %vm1028 = vcmp.lt.s32.totalorder %v300, 19
      %vm1029 = vcmp.lt.s32.totalorder %v301, 19
      %vm1030 = vcmp.lt.s32.totalorder %v302, 19
      %vm1031 = vcmp.lt.s32.totalorder %v303, 19
      %vm1032 = vcmp.lt.s32.totalorder %v304, 19
      %vm1033 = vcmp.lt.s32.totalorder %v305, 19
      %vm1034 = vcmp.lt.s32.totalorder %v306, 19
      %vm1035 = vcmp.lt.s32.totalorder %v307, 19
      %vm1036 = vcmp.lt.s32.totalorder %v308, 19
      %vm1037 = vcmp.lt.s32.totalorder %v309, 19
      %vm1038 = vmand %vm1006, %vm1022
      %vm1039 = vmand %vm1007, %vm1023
      %vm1040 = vmand %vm1008, %vm1024
      %vm1041 = vmand %vm1009, %vm1025
      %vm1042 = vmand %vm1010, %vm1026
      %vm1043 = vmand %vm1011, %vm1027
      %vm1044 = vmand %vm1012, %vm1028
      %vm1045 = vmand %vm1013, %vm1029
      %vm1046 = vmand %vm1014, %vm1030
      %vm1047 = vmand %vm1015, %vm1031
      %vm1048 = vmand %vm1016, %vm1032
      %vm1049 = vmand %vm1017, %vm1033
      %vm1050 = vmand %vm1018, %vm1034
      %vm1051 = vmand %vm1019, %vm1035
      %vm1052 = vmand %vm1020, %vm1036
      %vm1053 = vmand %vm1021, %vm1037
      %v1054 = vsel %vm1038, 1, 0
      %v1055 = vsel %vm1039, 1, 0
      %v1056 = vsel %vm1040, 1, 0
      %v1057 = vsel %vm1041, 1, 0
      %v1058 = vsel %vm1042, 1, 0
      %v1059 = vsel %vm1043, 1, 0
      %v1060 = vsel %vm1044, 1, 0
      %v1061 = vsel %vm1045, 1, 0
      %v1062 = vsel %vm1046, 1, 0
      %v1063 = vsel %vm1047, 1, 0
      %v1064 = vsel %vm1048, 1, 0
      %v1065 = vsel %vm1049, 1, 0
      %v1066 = vsel %vm1050, 1, 0
      %v1067 = vsel %vm1051, 1, 0
      %v1068 = vsel %vm1052, 1, 0
      %v1069 = vsel %vm1053, 1, 0
      %1070 = vset.pattern.permute.xlu0 0
      %1071 = vperm.xlu0 %1070, %v1054
      %v1072 = vpop.permute.xlu0 %1071
      %1073 = vset.pattern.permute.xlu0 0
      %1074 = vperm.xlu0 %1073, %v1055
      %v1075 = vpop.permute.xlu0 %1074
      %1076 = vset.pattern.permute.xlu0 0
      %1077 = vperm.xlu0 %1076, %v1056
      %v1078 = vpop.permute.xlu0 %1077
      %1079 = vset.pattern.permute.xlu0 0
      %1080 = vperm.xlu0 %1079, %v1057
      %v1081 = vpop.permute.xlu0 %1080
      %1082 = vset.pattern.permute.xlu0 0
      %1083 = vperm.xlu0 %1082, %v1058
      %v1084 = vpop.permute.xlu0 %1083
      %1085 = vset.pattern.permute.xlu0 0
      %1086 = vperm.xlu0 %1085, %v1059
      %v1087 = vpop.permute.xlu0 %1086
      %1088 = vset.pattern.permute.xlu0 0
      %1089 = vperm.xlu0 %1088, %v1060
      %v1090 = vpop.permute.xlu0 %1089
      %1091 = vset.pattern.permute.xlu0 0
      %1092 = vperm.xlu0 %1091, %v1061
      %v1093 = vpop.permute.xlu0 %1092
      %1094 = vset.pattern.permute.xlu0 0
      %1095 = vperm.xlu0 %1094, %v1062
      %v1096 = vpop.permute.xlu0 %1095
      %1097 = vset.pattern.permute.xlu0 0
      %1098 = vperm.xlu0 %1097, %v1063
      %v1099 = vpop.permute.xlu0 %1098
      %1100 = vset.pattern.permute.xlu0 0
      %1101 = vperm.xlu0 %1100, %v1064
      %v1102 = vpop.permute.xlu0 %1101
      %1103 = vset.pattern.permute.xlu0 0
      %1104 = vperm.xlu0 %1103, %v1065
      %v1105 = vpop.permute.xlu0 %1104
      %1106 = vset.pattern.permute.xlu0 0
      %1107 = vperm.xlu0 %1106, %v1066
      %v1108 = vpop.permute.xlu0 %1107
      %1109 = vset.pattern.permute.xlu0 0
      %1110 = vperm.xlu0 %1109, %v1067
      %v1111 = vpop.permute.xlu0 %1110
      %1112 = vset.pattern.permute.xlu0 0
      %1113 = vperm.xlu0 %1112, %v1068
      %v1114 = vpop.permute.xlu0 %1113
      %1115 = vset.pattern.permute.xlu0 0
      %1116 = vperm.xlu0 %1115, %v1069
      %v1117 = vpop.permute.xlu0 %1116
      %vm1118 = vcmp.eq.s32.totalorder %v1072, 1
      %vm1119 = vcmp.eq.s32.totalorder %v1075, 1
      %vm1120 = vcmp.eq.s32.totalorder %v1078, 1
      %vm1121 = vcmp.eq.s32.totalorder %v1081, 1
      %vm1122 = vcmp.eq.s32.totalorder %v1084, 1
      %vm1123 = vcmp.eq.s32.totalorder %v1087, 1
      %vm1124 = vcmp.eq.s32.totalorder %v1090, 1
      %vm1125 = vcmp.eq.s32.totalorder %v1093, 1
      %vm1126 = vcmp.eq.s32.totalorder %v1096, 1
      %vm1127 = vcmp.eq.s32.totalorder %v1099, 1
      %vm1128 = vcmp.eq.s32.totalorder %v1102, 1
      %vm1129 = vcmp.eq.s32.totalorder %v1105, 1
      %vm1130 = vcmp.eq.s32.totalorder %v1108, 1
      %vm1131 = vcmp.eq.s32.totalorder %v1111, 1
      %vm1132 = vcmp.eq.s32.totalorder %v1114, 1
      %vm1133 = vcmp.eq.s32.totalorder %v1117, 1
      %v1134 = vsel %vm1118, %v1005, 0.0
      %v1135 = vsel %vm1119, %v961, 0.0
      %v1136 = vsel %vm1120, %v963, 0.0
      %v1137 = vsel %vm1121, %v965, 0.0
      %v1138 = vsel %vm1122, %v967, 0.0
      %v1139 = vsel %vm1123, %v969, 0.0
      %v1140 = vsel %vm1124, %v971, 0.0
      %v1141 = vsel %vm1125, %v973, 0.0
      %v1142 = vsel %vm1126, %v975, 0.0
      %v1143 = vsel %vm1127, %v977, 0.0
      %v1144 = vsel %vm1128, %v979, 0.0
      %v1145 = vsel %vm1129, %v981, 0.0
      %v1146 = vsel %vm1130, %v983, 0.0
      %v1147 = vsel %vm1131, %v985, 0.0
      %v1148 = vsel %vm1132, %v987, 0.0
      %v1149 = vsel %vm1133, %v988, 0.0
      %v1150 = vpack.c.bf16 %v1134, %v1134
      %v1151 = vpack.c.bf16 %v1135, %v1135
      %v1152 = vpack.c.bf16 %v1136, %v1136
      %v1153 = vpack.c.bf16 %v1137, %v1137
      %v1154 = vpack.c.bf16 %v1138, %v1138
      %v1155 = vpack.c.bf16 %v1139, %v1139
      %v1156 = vpack.c.bf16 %v1140, %v1140
      %v1157 = vpack.c.bf16 %v1141, %v1141
      %v1158 = vpack.c.bf16 %v1142, %v1142
      %v1159 = vpack.c.bf16 %v1143, %v1143
      %v1160 = vpack.c.bf16 %v1144, %v1144
      %v1161 = vpack.c.bf16 %v1145, %v1145
      %v1162 = vpack.c.bf16 %v1146, %v1146
      %v1163 = vpack.c.bf16 %v1147, %v1147
      %v1164 = vpack.c.bf16 %v1148, %v1148
      %v1165 = vpack.c.bf16 %v1149, %v1149
      %v1166 = vrot.slane %v293, 6
      %vm1168 = vcmask 1041408
      %v1169 = vrot.slane %v278, 6
      %v1170 = vrot.slane %v279, 6
      %v1171 = vsel %vm1168, %v1169, %v1170
      %v1172 = vrot.slane %v280, 6
      %v1173 = vsel %vm1168, %v1170, %v1172
      %v1174 = vrot.slane %v281, 6
      %v1175 = vsel %vm1168, %v1172, %v1174
      %v1176 = vrot.slane %v282, 6
      %v1177 = vsel %vm1168, %v1174, %v1176
      %v1178 = vrot.slane %v283, 6
      %v1179 = vsel %vm1168, %v1176, %v1178
      %v1180 = vrot.slane %v284, 6
      %v1181 = vsel %vm1168, %v1178, %v1180
      %v1182 = vrot.slane %v285, 6
      %v1183 = vsel %vm1168, %v1180, %v1182
      %v1184 = vrot.slane %v286, 6
      %v1185 = vsel %vm1168, %v1182, %v1184
      %v1186 = vrot.slane %v287, 6
      %v1187 = vsel %vm1168, %v1184, %v1186
      %v1188 = vrot.slane %v288, 6
      %v1189 = vsel %vm1168, %v1186, %v1188
      %v1190 = vrot.slane %v289, 6
      %v1191 = vsel %vm1168, %v1188, %v1190
      %v1192 = vrot.slane %v290, 6
      %v1193 = vsel %vm1168, %v1190, %v1192
      %v1194 = vrot.slane %v291, 6
      %v1195 = vsel %vm1168, %v1192, %v1194
      %v1196 = vrot.slane %v292, 6
      %v1197 = vsel %vm1168, %v1194, %v1196
      %v1198 = vsel %vm1168, %v1196, %v1166
      %v1215 = vsel %vm1168, %v1166, %v1169
      %vm1216 = vcmp.ge.s32.totalorder %v294, 2
      %vm1217 = vcmp.ge.s32.totalorder %v295, 2
      %vm1218 = vcmp.ge.s32.totalorder %v296, 2
      %vm1219 = vcmp.ge.s32.totalorder %v297, 2
      %vm1220 = vcmp.ge.s32.totalorder %v298, 2
      %vm1221 = vcmp.ge.s32.totalorder %v299, 2
      %vm1222 = vcmp.ge.s32.totalorder %v300, 2
      %vm1223 = vcmp.ge.s32.totalorder %v301, 2
      %vm1224 = vcmp.ge.s32.totalorder %v302, 2
      %vm1225 = vcmp.ge.s32.totalorder %v303, 2
      %vm1226 = vcmp.ge.s32.totalorder %v304, 2
      %vm1227 = vcmp.ge.s32.totalorder %v305, 2
      %vm1228 = vcmp.ge.s32.totalorder %v306, 2
      %vm1229 = vcmp.ge.s32.totalorder %v307, 2
      %vm1230 = vcmp.ge.s32.totalorder %v308, 2
      %vm1231 = vcmp.ge.s32.totalorder %v309, 2
      %vm1232 = vcmp.lt.s32.totalorder %v294, 18
      %vm1233 = vcmp.lt.s32.totalorder %v295, 18
      %vm1234 = vcmp.lt.s32.totalorder %v296, 18
      %vm1235 = vcmp.lt.s32.totalorder %v297, 18
      %vm1236 = vcmp.lt.s32.totalorder %v298, 18
      %vm1237 = vcmp.lt.s32.totalorder %v299, 18
      %vm1238 = vcmp.lt.s32.totalorder %v300, 18
      %vm1239 = vcmp.lt.s32.totalorder %v301, 18
      %vm1240 = vcmp.lt.s32.totalorder %v302, 18
      %vm1241 = vcmp.lt.s32.totalorder %v303, 18
      %vm1242 = vcmp.lt.s32.totalorder %v304, 18
      %vm1243 = vcmp.lt.s32.totalorder %v305, 18
      %vm1244 = vcmp.lt.s32.totalorder %v306, 18
      %vm1245 = vcmp.lt.s32.totalorder %v307, 18
      %vm1246 = vcmp.lt.s32.totalorder %v308, 18
      %vm1247 = vcmp.lt.s32.totalorder %v309, 18
      %vm1248 = vmand %vm1216, %vm1232
      %vm1249 = vmand %vm1217, %vm1233
      %vm1250 = vmand %vm1218, %vm1234
      %vm1251 = vmand %vm1219, %vm1235
      %vm1252 = vmand %vm1220, %vm1236
      %vm1253 = vmand %vm1221, %vm1237
      %vm1254 = vmand %vm1222, %vm1238
      %vm1255 = vmand %vm1223, %vm1239
      %vm1256 = vmand %vm1224, %vm1240
      %vm1257 = vmand %vm1225, %vm1241
      %vm1258 = vmand %vm1226, %vm1242
      %vm1259 = vmand %vm1227, %vm1243
      %vm1260 = vmand %vm1228, %vm1244
      %vm1261 = vmand %vm1229, %vm1245
      %vm1262 = vmand %vm1230, %vm1246
      %vm1263 = vmand %vm1231, %vm1247
      %v1264 = vsel %vm1248, 1, 0
      %v1265 = vsel %vm1249, 1, 0
      %v1266 = vsel %vm1250, 1, 0
      %v1267 = vsel %vm1251, 1, 0
      %v1268 = vsel %vm1252, 1, 0
      %v1269 = vsel %vm1253, 1, 0
      %v1270 = vsel %vm1254, 1, 0
      %v1271 = vsel %vm1255, 1, 0
      %v1272 = vsel %vm1256, 1, 0
      %v1273 = vsel %vm1257, 1, 0
      %v1274 = vsel %vm1258, 1, 0
      %v1275 = vsel %vm1259, 1, 0
      %v1276 = vsel %vm1260, 1, 0
      %v1277 = vsel %vm1261, 1, 0
      %v1278 = vsel %vm1262, 1, 0
      %v1279 = vsel %vm1263, 1, 0
      %1280 = vset.pattern.permute.xlu0 0
      %1281 = vperm.xlu0 %1280, %v1264
      %v1282 = vpop.permute.xlu0 %1281
      %1283 = vset.pattern.permute.xlu0 0
      %1284 = vperm.xlu0 %1283, %v1265
      %v1285 = vpop.permute.xlu0 %1284
      %1286 = vset.pattern.permute.xlu0 0
      %1287 = vperm.xlu0 %1286, %v1266
      %v1288 = vpop.permute.xlu0 %1287
      %1289 = vset.pattern.permute.xlu0 0
      %1290 = vperm.xlu0 %1289, %v1267
      %v1291 = vpop.permute.xlu0 %1290
      %1292 = vset.pattern.permute.xlu0 0
      %1293 = vperm.xlu0 %1292, %v1268
      %v1294 = vpop.permute.xlu0 %1293
      %1295 = vset.pattern.permute.xlu0 0
      %1296 = vperm.xlu0 %1295, %v1269
      %v1297 = vpop.permute.xlu0 %1296
      %1298 = vset.pattern.permute.xlu0 0
      %1299 = vperm.xlu0 %1298, %v1270
      %v1300 = vpop.permute.xlu0 %1299
      %1301 = vset.pattern.permute.xlu0 0
      %1302 = vperm.xlu0 %1301, %v1271
      %v1303 = vpop.permute.xlu0 %1302
      %1304 = vset.pattern.permute.xlu0 0
      %1305 = vperm.xlu0 %1304, %v1272
      %v1306 = vpop.permute.xlu0 %1305
      %1307 = vset.pattern.permute.xlu0 0
      %1308 = vperm.xlu0 %1307, %v1273
      %v1309 = vpop.permute.xlu0 %1308
      %1310 = vset.pattern.permute.xlu0 0
      %1311 = vperm.xlu0 %1310, %v1274
      %v1312 = vpop.permute.xlu0 %1311
      %1313 = vset.pattern.permute.xlu0 0
      %1314 = vperm.xlu0 %1313, %v1275
      %v1315 = vpop.permute.xlu0 %1314
      %1316 = vset.pattern.permute.xlu0 0
      %1317 = vperm.xlu0 %1316, %v1276
      %v1318 = vpop.permute.xlu0 %1317
      %1319 = vset.pattern.permute.xlu0 0
      %1320 = vperm.xlu0 %1319, %v1277
      %v1321 = vpop.permute.xlu0 %1320
      %1322 = vset.pattern.permute.xlu0 0
      %1323 = vperm.xlu0 %1322, %v1278
      %v1324 = vpop.permute.xlu0 %1323
      %1325 = vset.pattern.permute.xlu0 0
      %1326 = vperm.xlu0 %1325, %v1279
      %v1327 = vpop.permute.xlu0 %1326
      %vm1328 = vcmp.eq.s32.totalorder %v1282, 1
      %vm1329 = vcmp.eq.s32.totalorder %v1285, 1
      %vm1330 = vcmp.eq.s32.totalorder %v1288, 1
      %vm1331 = vcmp.eq.s32.totalorder %v1291, 1
      %vm1332 = vcmp.eq.s32.totalorder %v1294, 1
      %vm1333 = vcmp.eq.s32.totalorder %v1297, 1
      %vm1334 = vcmp.eq.s32.totalorder %v1300, 1
      %vm1335 = vcmp.eq.s32.totalorder %v1303, 1
      %vm1336 = vcmp.eq.s32.totalorder %v1306, 1
      %vm1337 = vcmp.eq.s32.totalorder %v1309, 1
      %vm1338 = vcmp.eq.s32.totalorder %v1312, 1
      %vm1339 = vcmp.eq.s32.totalorder %v1315, 1
      %vm1340 = vcmp.eq.s32.totalorder %v1318, 1
      %vm1341 = vcmp.eq.s32.totalorder %v1321, 1
      %vm1342 = vcmp.eq.s32.totalorder %v1324, 1
      %vm1343 = vcmp.eq.s32.totalorder %v1327, 1
      %v1344 = vsel %vm1328, %v1215, 0.0
      %v1345 = vsel %vm1329, %v1171, 0.0
      %v1346 = vsel %vm1330, %v1173, 0.0
      %v1347 = vsel %vm1331, %v1175, 0.0
      %v1348 = vsel %vm1332, %v1177, 0.0
      %v1349 = vsel %vm1333, %v1179, 0.0
      %v1350 = vsel %vm1334, %v1181, 0.0
      %v1351 = vsel %vm1335, %v1183, 0.0
      %v1352 = vsel %vm1336, %v1185, 0.0
      %v1353 = vsel %vm1337, %v1187, 0.0
      %v1354 = vsel %vm1338, %v1189, 0.0
      %v1355 = vsel %vm1339, %v1191, 0.0
      %v1356 = vsel %vm1340, %v1193, 0.0
      %v1357 = vsel %vm1341, %v1195, 0.0
      %v1358 = vsel %vm1342, %v1197, 0.0
      %v1359 = vsel %vm1343, %v1198, 0.0
      %v1360 = vpack.c.bf16 %v1344, %v1344
      %v1361 = vpack.c.bf16 %v1345, %v1345
      %v1362 = vpack.c.bf16 %v1346, %v1346
      %v1363 = vpack.c.bf16 %v1347, %v1347
      %v1364 = vpack.c.bf16 %v1348, %v1348
      %v1365 = vpack.c.bf16 %v1349, %v1349
      %v1366 = vpack.c.bf16 %v1350, %v1350
      %v1367 = vpack.c.bf16 %v1351, %v1351
      %v1368 = vpack.c.bf16 %v1352, %v1352
      %v1369 = vpack.c.bf16 %v1353, %v1353
      %v1370 = vpack.c.bf16 %v1354, %v1354
      %v1371 = vpack.c.bf16 %v1355, %v1355
      %v1372 = vpack.c.bf16 %v1356, %v1356
      %v1373 = vpack.c.bf16 %v1357, %v1357
      %v1374 = vpack.c.bf16 %v1358, %v1358
      %v1375 = vpack.c.bf16 %v1359, %v1359
      %v1376 = vrot.slane %v293, 7
      %vm1378 = vcmask 1040384
      %v1379 = vrot.slane %v278, 7
      %v1380 = vrot.slane %v279, 7
      %v1381 = vsel %vm1378, %v1379, %v1380
      %v1382 = vrot.slane %v280, 7
      %v1383 = vsel %vm1378, %v1380, %v1382
      %v1384 = vrot.slane %v281, 7
      %v1385 = vsel %vm1378, %v1382, %v1384
      %v1386 = vrot.slane %v282, 7
      %v1387 = vsel %vm1378, %v1384, %v1386
      %v1388 = vrot.slane %v283, 7
      %v1389 = vsel %vm1378, %v1386, %v1388
      %v1390 = vrot.slane %v284, 7
      %v1391 = vsel %vm1378, %v1388, %v1390
      %v1392 = vrot.slane %v285, 7
      %v1393 = vsel %vm1378, %v1390, %v1392
      %v1394 = vrot.slane %v286, 7
      %v1395 = vsel %vm1378, %v1392, %v1394
      %v1396 = vrot.slane %v287, 7
      %v1397 = vsel %vm1378, %v1394, %v1396
      %v1398 = vrot.slane %v288, 7
      %v1399 = vsel %vm1378, %v1396, %v1398
      %v1400 = vrot.slane %v289, 7
      %v1401 = vsel %vm1378, %v1398, %v1400
      %v1402 = vrot.slane %v290, 7
      %v1403 = vsel %vm1378, %v1400, %v1402
      %v1404 = vrot.slane %v291, 7
      %v1405 = vsel %vm1378, %v1402, %v1404
      %v1406 = vrot.slane %v292, 7
      %v1407 = vsel %vm1378, %v1404, %v1406
      %v1408 = vsel %vm1378, %v1406, %v1376
      %v1425 = vsel %vm1378, %v1376, %v1379
      %vm1426 = vcmp.ge.s32.totalorder %v294, 1
      %vm1427 = vcmp.ge.s32.totalorder %v295, 1
      %vm1428 = vcmp.ge.s32.totalorder %v296, 1
      %vm1429 = vcmp.ge.s32.totalorder %v297, 1
      %vm1430 = vcmp.ge.s32.totalorder %v298, 1
      %vm1431 = vcmp.ge.s32.totalorder %v299, 1
      %vm1432 = vcmp.ge.s32.totalorder %v300, 1
      %vm1433 = vcmp.ge.s32.totalorder %v301, 1
      %vm1434 = vcmp.ge.s32.totalorder %v302, 1
      %vm1435 = vcmp.ge.s32.totalorder %v303, 1
      %vm1436 = vcmp.ge.s32.totalorder %v304, 1
      %vm1437 = vcmp.ge.s32.totalorder %v305, 1
      %vm1438 = vcmp.ge.s32.totalorder %v306, 1
      %vm1439 = vcmp.ge.s32.totalorder %v307, 1
      %vm1440 = vcmp.ge.s32.totalorder %v308, 1
      %vm1441 = vcmp.ge.s32.totalorder %v309, 1
      %vm1442 = vcmp.lt.s32.totalorder %v294, 17
      %vm1443 = vcmp.lt.s32.totalorder %v295, 17
      %vm1444 = vcmp.lt.s32.totalorder %v296, 17
      %vm1445 = vcmp.lt.s32.totalorder %v297, 17
      %vm1446 = vcmp.lt.s32.totalorder %v298, 17
      %vm1447 = vcmp.lt.s32.totalorder %v299, 17
      %vm1448 = vcmp.lt.s32.totalorder %v300, 17
      %vm1449 = vcmp.lt.s32.totalorder %v301, 17
      %vm1450 = vcmp.lt.s32.totalorder %v302, 17
      %vm1451 = vcmp.lt.s32.totalorder %v303, 17
      %vm1452 = vcmp.lt.s32.totalorder %v304, 17
      %vm1453 = vcmp.lt.s32.totalorder %v305, 17
      %vm1454 = vcmp.lt.s32.totalorder %v306, 17
      %vm1455 = vcmp.lt.s32.totalorder %v307, 17
      %vm1456 = vcmp.lt.s32.totalorder %v308, 17
      %vm1457 = vcmp.lt.s32.totalorder %v309, 17
      %vm1458 = vmand %vm1426, %vm1442
      %vm1459 = vmand %vm1427, %vm1443
      %vm1460 = vmand %vm1428, %vm1444
      %vm1461 = vmand %vm1429, %vm1445
      %vm1462 = vmand %vm1430, %vm1446
      %vm1463 = vmand %vm1431, %vm1447
      %vm1464 = vmand %vm1432, %vm1448
      %vm1465 = vmand %vm1433, %vm1449
      %vm1466 = vmand %vm1434, %vm1450
      %vm1467 = vmand %vm1435, %vm1451
      %vm1468 = vmand %vm1436, %vm1452
      %vm1469 = vmand %vm1437, %vm1453
      %vm1470 = vmand %vm1438, %vm1454
      %vm1471 = vmand %vm1439, %vm1455
      %vm1472 = vmand %vm1440, %vm1456
      %vm1473 = vmand %vm1441, %vm1457
      %v1474 = vsel %vm1458, 1, 0
      %v1475 = vsel %vm1459, 1, 0
      %v1476 = vsel %vm1460, 1, 0
      %v1477 = vsel %vm1461, 1, 0
      %v1478 = vsel %vm1462, 1, 0
      %v1479 = vsel %vm1463, 1, 0
      %v1480 = vsel %vm1464, 1, 0
      %v1481 = vsel %vm1465, 1, 0
      %v1482 = vsel %vm1466, 1, 0
      %v1483 = vsel %vm1467, 1, 0
      %v1484 = vsel %vm1468, 1, 0
      %v1485 = vsel %vm1469, 1, 0
      %v1486 = vsel %vm1470, 1, 0
      %v1487 = vsel %vm1471, 1, 0
      %v1488 = vsel %vm1472, 1, 0
      %v1489 = vsel %vm1473, 1, 0
      %1490 = vset.pattern.permute.xlu0 0
      %1491 = vperm.xlu0 %1490, %v1474
      %v1492 = vpop.permute.xlu0 %1491
      %1493 = vset.pattern.permute.xlu0 0
      %1494 = vperm.xlu0 %1493, %v1475
      %v1495 = vpop.permute.xlu0 %1494
      %1496 = vset.pattern.permute.xlu0 0
      %1497 = vperm.xlu0 %1496, %v1476
      %v1498 = vpop.permute.xlu0 %1497
      %1499 = vset.pattern.permute.xlu0 0
      %1500 = vperm.xlu0 %1499, %v1477
      %v1501 = vpop.permute.xlu0 %1500
      %1502 = vset.pattern.permute.xlu0 0
      %1503 = vperm.xlu0 %1502, %v1478
      %v1504 = vpop.permute.xlu0 %1503
      %1505 = vset.pattern.permute.xlu0 0
      %1506 = vperm.xlu0 %1505, %v1479
      %v1507 = vpop.permute.xlu0 %1506
      %1508 = vset.pattern.permute.xlu0 0
      %1509 = vperm.xlu0 %1508, %v1480
      %v1510 = vpop.permute.xlu0 %1509
      %1511 = vset.pattern.permute.xlu0 0
      %1512 = vperm.xlu0 %1511, %v1481
      %v1513 = vpop.permute.xlu0 %1512
      %1514 = vset.pattern.permute.xlu0 0
      %1515 = vperm.xlu0 %1514, %v1482
      %v1516 = vpop.permute.xlu0 %1515
      %1517 = vset.pattern.permute.xlu0 0
      %1518 = vperm.xlu0 %1517, %v1483
      %v1519 = vpop.permute.xlu0 %1518
      %1520 = vset.pattern.permute.xlu0 0
      %1521 = vperm.xlu0 %1520, %v1484
      %v1522 = vpop.permute.xlu0 %1521
      %1523 = vset.pattern.permute.xlu0 0
      %1524 = vperm.xlu0 %1523, %v1485
      %v1525 = vpop.permute.xlu0 %1524
      %1526 = vset.pattern.permute.xlu0 0
      %1527 = vperm.xlu0 %1526, %v1486
      %v1528 = vpop.permute.xlu0 %1527
      %1529 = vset.pattern.permute.xlu0 0
      %1530 = vperm.xlu0 %1529, %v1487
      %v1531 = vpop.permute.xlu0 %1530
      %1532 = vset.pattern.permute.xlu0 0
      %1533 = vperm.xlu0 %1532, %v1488
      %v1534 = vpop.permute.xlu0 %1533
      %1535 = vset.pattern.permute.xlu0 0
      %1536 = vperm.xlu0 %1535, %v1489
      %v1537 = vpop.permute.xlu0 %1536
      %vm1538 = vcmp.eq.s32.totalorder %v1492, 1
      %vm1539 = vcmp.eq.s32.totalorder %v1495, 1
      %vm1540 = vcmp.eq.s32.totalorder %v1498, 1
      %vm1541 = vcmp.eq.s32.totalorder %v1501, 1
      %vm1542 = vcmp.eq.s32.totalorder %v1504, 1
      %vm1543 = vcmp.eq.s32.totalorder %v1507, 1
      %vm1544 = vcmp.eq.s32.totalorder %v1510, 1
      %vm1545 = vcmp.eq.s32.totalorder %v1513, 1
      %vm1546 = vcmp.eq.s32.totalorder %v1516, 1
      %vm1547 = vcmp.eq.s32.totalorder %v1519, 1
      %vm1548 = vcmp.eq.s32.totalorder %v1522, 1
      %vm1549 = vcmp.eq.s32.totalorder %v1525, 1
      %vm1550 = vcmp.eq.s32.totalorder %v1528, 1
      %vm1551 = vcmp.eq.s32.totalorder %v1531, 1
      %vm1552 = vcmp.eq.s32.totalorder %v1534, 1
      %vm1553 = vcmp.eq.s32.totalorder %v1537, 1
      %v1554 = vsel %vm1538, %v1425, 0.0
      %v1555 = vsel %vm1539, %v1381, 0.0
      %v1556 = vsel %vm1540, %v1383, 0.0
      %v1557 = vsel %vm1541, %v1385, 0.0
      %v1558 = vsel %vm1542, %v1387, 0.0
      %v1559 = vsel %vm1543, %v1389, 0.0
      %v1560 = vsel %vm1544, %v1391, 0.0
      %v1561 = vsel %vm1545, %v1393, 0.0
      %v1562 = vsel %vm1546, %v1395, 0.0
      %v1563 = vsel %vm1547, %v1397, 0.0
      %v1564 = vsel %vm1548, %v1399, 0.0
      %v1565 = vsel %vm1549, %v1401, 0.0
      %v1566 = vsel %vm1550, %v1403, 0.0
      %v1567 = vsel %vm1551, %v1405, 0.0
      %v1568 = vsel %vm1552, %v1407, 0.0
      %v1569 = vsel %vm1553, %v1408, 0.0
      %v1570 = vpack.c.bf16 %v1554, %v1554
      %v1571 = vpack.c.bf16 %v1555, %v1555
      %v1572 = vpack.c.bf16 %v1556, %v1556
      %v1573 = vpack.c.bf16 %v1557, %v1557
      %v1574 = vpack.c.bf16 %v1558, %v1558
      %v1575 = vpack.c.bf16 %v1559, %v1559
      %v1576 = vpack.c.bf16 %v1560, %v1560
      %v1577 = vpack.c.bf16 %v1561, %v1561
      %v1578 = vpack.c.bf16 %v1562, %v1562
      %v1579 = vpack.c.bf16 %v1563, %v1563
      %v1580 = vpack.c.bf16 %v1564, %v1564
      %v1581 = vpack.c.bf16 %v1565, %v1565
      %v1582 = vpack.c.bf16 %v1566, %v1566
      %v1583 = vpack.c.bf16 %v1567, %v1567
      %v1584 = vpack.c.bf16 %v1568, %v1568
      %v1585 = vpack.c.bf16 %v1569, %v1569
      %v1586 = vpack.c.bf16 %v278, %v278
      %v1587 = vpack.c.bf16 %v279, %v279
      %v1588 = vpack.c.bf16 %v280, %v280
      %v1589 = vpack.c.bf16 %v281, %v281
      %v1590 = vpack.c.bf16 %v282, %v282
      %v1591 = vpack.c.bf16 %v283, %v283
      %v1592 = vpack.c.bf16 %v284, %v284
      %v1593 = vpack.c.bf16 %v285, %v285
      %v1594 = vpack.c.bf16 %v286, %v286
      %v1595 = vpack.c.bf16 %v287, %v287
      %v1596 = vpack.c.bf16 %v288, %v288
      %v1597 = vpack.c.bf16 %v289, %v289
      %v1598 = vpack.c.bf16 %v290, %v290
      %v1599 = vpack.c.bf16 %v291, %v291
      %v1600 = vpack.c.bf16 %v292, %v292
      %v1601 = vpack.c.bf16 %v293, %v293
      %vm1602 = vcmask 1046528
      %v1603 = vrot.slane %v278, 1
      %v1604 = vrot.slane %v279, 1
      %v1605 = vsel %vm1602, %v1603, %v1604
      %v1606 = vrot.slane %v280, 1
      %v1607 = vsel %vm1602, %v1604, %v1606
      %v1608 = vrot.slane %v281, 1
      %v1609 = vsel %vm1602, %v1606, %v1608
      %v1610 = vrot.slane %v282, 1
      %v1611 = vsel %vm1602, %v1608, %v1610
      %v1612 = vrot.slane %v283, 1
      %v1613 = vsel %vm1602, %v1610, %v1612
      %v1614 = vrot.slane %v284, 1
      %v1615 = vsel %vm1602, %v1612, %v1614
      %v1616 = vrot.slane %v285, 1
      %v1617 = vsel %vm1602, %v1614, %v1616
      %v1618 = vrot.slane %v286, 1
      %v1619 = vsel %vm1602, %v1616, %v1618
      %v1620 = vrot.slane %v287, 1
      %v1621 = vsel %vm1602, %v1618, %v1620
      %v1622 = vrot.slane %v288, 1
      %v1623 = vsel %vm1602, %v1620, %v1622
      %v1624 = vrot.slane %v289, 1
      %v1625 = vsel %vm1602, %v1622, %v1624
      %v1626 = vrot.slane %v290, 1
      %v1627 = vsel %vm1602, %v1624, %v1626
      %v1628 = vrot.slane %v291, 1
      %v1629 = vsel %vm1602, %v1626, %v1628
      %v1630 = vrot.slane %v292, 1
      %v1631 = vsel %vm1602, %v1628, %v1630
      %v1632 = vrot.slane %v293, 1
      %v1633 = vsel %vm1602, %v1630, %v1632
      %v1651 = vsel %vm1602, %v1632, %v1603
      %vm1652 = vcmp.ge.s32.totalorder %v294, 4294967295
      %vm1653 = vcmp.ge.s32.totalorder %v295, 4294967295
      %vm1654 = vcmp.ge.s32.totalorder %v296, 4294967295
      %vm1655 = vcmp.ge.s32.totalorder %v297, 4294967295
      %vm1656 = vcmp.ge.s32.totalorder %v298, 4294967295
      %vm1657 = vcmp.ge.s32.totalorder %v299, 4294967295
      %vm1658 = vcmp.ge.s32.totalorder %v300, 4294967295
      %vm1659 = vcmp.ge.s32.totalorder %v301, 4294967295
      %vm1660 = vcmp.ge.s32.totalorder %v302, 4294967295
      %vm1661 = vcmp.ge.s32.totalorder %v303, 4294967295
      %vm1662 = vcmp.ge.s32.totalorder %v304, 4294967295
      %vm1663 = vcmp.ge.s32.totalorder %v305, 4294967295
      %vm1664 = vcmp.ge.s32.totalorder %v306, 4294967295
      %vm1665 = vcmp.ge.s32.totalorder %v307, 4294967295
      %vm1666 = vcmp.ge.s32.totalorder %v308, 4294967295
      %vm1667 = vcmp.ge.s32.totalorder %v309, 4294967295
      %vm1668 = vcmp.lt.s32.totalorder %v294, 15
      %vm1669 = vcmp.lt.s32.totalorder %v295, 15
      %vm1670 = vcmp.lt.s32.totalorder %v296, 15
      %vm1671 = vcmp.lt.s32.totalorder %v297, 15
      %vm1672 = vcmp.lt.s32.totalorder %v298, 15
      %vm1673 = vcmp.lt.s32.totalorder %v299, 15
      %vm1674 = vcmp.lt.s32.totalorder %v300, 15
      %vm1675 = vcmp.lt.s32.totalorder %v301, 15
      %vm1676 = vcmp.lt.s32.totalorder %v302, 15
      %vm1677 = vcmp.lt.s32.totalorder %v303, 15
      %vm1678 = vcmp.lt.s32.totalorder %v304, 15
      %vm1679 = vcmp.lt.s32.totalorder %v305, 15
      %vm1680 = vcmp.lt.s32.totalorder %v306, 15
      %vm1681 = vcmp.lt.s32.totalorder %v307, 15
      %vm1682 = vcmp.lt.s32.totalorder %v308, 15
      %vm1683 = vcmp.lt.s32.totalorder %v309, 15
      %vm1684 = vmand %vm1652, %vm1668
      %vm1685 = vmand %vm1653, %vm1669
      %vm1686 = vmand %vm1654, %vm1670
      %vm1687 = vmand %vm1655, %vm1671
      %vm1688 = vmand %vm1656, %vm1672
      %vm1689 = vmand %vm1657, %vm1673
      %vm1690 = vmand %vm1658, %vm1674
      %vm1691 = vmand %vm1659, %vm1675
      %vm1692 = vmand %vm1660, %vm1676
      %vm1693 = vmand %vm1661, %vm1677
      %vm1694 = vmand %vm1662, %vm1678
      %vm1695 = vmand %vm1663, %vm1679
      %vm1696 = vmand %vm1664, %vm1680
      %vm1697 = vmand %vm1665, %vm1681
      %vm1698 = vmand %vm1666, %vm1682
      %vm1699 = vmand %vm1667, %vm1683
      %v1700 = vsel %vm1684, 1, 0
      %v1701 = vsel %vm1685, 1, 0
      %v1702 = vsel %vm1686, 1, 0
      %v1703 = vsel %vm1687, 1, 0
      %v1704 = vsel %vm1688, 1, 0
      %v1705 = vsel %vm1689, 1, 0
      %v1706 = vsel %vm1690, 1, 0
      %v1707 = vsel %vm1691, 1, 0
      %v1708 = vsel %vm1692, 1, 0
      %v1709 = vsel %vm1693, 1, 0
      %v1710 = vsel %vm1694, 1, 0
      %v1711 = vsel %vm1695, 1, 0
      %v1712 = vsel %vm1696, 1, 0
      %v1713 = vsel %vm1697, 1, 0
      %v1714 = vsel %vm1698, 1, 0
      %v1715 = vsel %vm1699, 1, 0
      %1716 = vset.pattern.permute.xlu0 0
      %1717 = vperm.xlu0 %1716, %v1700
      %v1718 = vpop.permute.xlu0 %1717
      %1719 = vset.pattern.permute.xlu0 0
      %1720 = vperm.xlu0 %1719, %v1701
      %v1721 = vpop.permute.xlu0 %1720
      %1722 = vset.pattern.permute.xlu0 0
      %1723 = vperm.xlu0 %1722, %v1702
      %v1724 = vpop.permute.xlu0 %1723
      %1725 = vset.pattern.permute.xlu0 0
      %1726 = vperm.xlu0 %1725, %v1703
      %v1727 = vpop.permute.xlu0 %1726
      %1728 = vset.pattern.permute.xlu0 0
      %1729 = vperm.xlu0 %1728, %v1704
      %v1730 = vpop.permute.xlu0 %1729
      %1731 = vset.pattern.permute.xlu0 0
      %1732 = vperm.xlu0 %1731, %v1705
      %v1733 = vpop.permute.xlu0 %1732
      %1734 = vset.pattern.permute.xlu0 0
      %1735 = vperm.xlu0 %1734, %v1706
      %v1736 = vpop.permute.xlu0 %1735
      %1737 = vset.pattern.permute.xlu0 0
      %1738 = vperm.xlu0 %1737, %v1707
      %v1739 = vpop.permute.xlu0 %1738
      %1740 = vset.pattern.permute.xlu0 0
      %1741 = vperm.xlu0 %1740, %v1708
      %v1742 = vpop.permute.xlu0 %1741
      %1743 = vset.pattern.permute.xlu0 0
      %1744 = vperm.xlu0 %1743, %v1709
      %v1745 = vpop.permute.xlu0 %1744
      %1746 = vset.pattern.permute.xlu0 0
      %1747 = vperm.xlu0 %1746, %v1710
      %v1748 = vpop.permute.xlu0 %1747
      %1749 = vset.pattern.permute.xlu0 0
      %1750 = vperm.xlu0 %1749, %v1711
      %v1751 = vpop.permute.xlu0 %1750
      %1752 = vset.pattern.permute.xlu0 0
      %1753 = vperm.xlu0 %1752, %v1712
      %v1754 = vpop.permute.xlu0 %1753
      %1755 = vset.pattern.permute.xlu0 0
      %1756 = vperm.xlu0 %1755, %v1713
      %v1757 = vpop.permute.xlu0 %1756
      %1758 = vset.pattern.permute.xlu0 0
      %1759 = vperm.xlu0 %1758, %v1714
      %v1760 = vpop.permute.xlu0 %1759
      %1761 = vset.pattern.permute.xlu0 0
      %1762 = vperm.xlu0 %1761, %v1715
      %v1763 = vpop.permute.xlu0 %1762
      %vm1764 = vcmp.eq.s32.totalorder %v1718, 1
      %vm1765 = vcmp.eq.s32.totalorder %v1721, 1
      %vm1766 = vcmp.eq.s32.totalorder %v1724, 1
      %vm1767 = vcmp.eq.s32.totalorder %v1727, 1
      %vm1768 = vcmp.eq.s32.totalorder %v1730, 1
      %vm1769 = vcmp.eq.s32.totalorder %v1733, 1
      %vm1770 = vcmp.eq.s32.totalorder %v1736, 1
      %vm1771 = vcmp.eq.s32.totalorder %v1739, 1
      %vm1772 = vcmp.eq.s32.totalorder %v1742, 1
      %vm1773 = vcmp.eq.s32.totalorder %v1745, 1
      %vm1774 = vcmp.eq.s32.totalorder %v1748, 1
      %vm1775 = vcmp.eq.s32.totalorder %v1751, 1
      %vm1776 = vcmp.eq.s32.totalorder %v1754, 1
      %vm1777 = vcmp.eq.s32.totalorder %v1757, 1
      %vm1778 = vcmp.eq.s32.totalorder %v1760, 1
      %vm1779 = vcmp.eq.s32.totalorder %v1763, 1
      %v1780 = vsel %vm1764, %v1605, 0.0
      %v1781 = vsel %vm1765, %v1607, 0.0
      %v1782 = vsel %vm1766, %v1609, 0.0
      %v1783 = vsel %vm1767, %v1611, 0.0
      %v1784 = vsel %vm1768, %v1613, 0.0
      %v1785 = vsel %vm1769, %v1615, 0.0
      %v1786 = vsel %vm1770, %v1617, 0.0
      %v1787 = vsel %vm1771, %v1619, 0.0
      %v1788 = vsel %vm1772, %v1621, 0.0
      %v1789 = vsel %vm1773, %v1623, 0.0
      %v1790 = vsel %vm1774, %v1625, 0.0
      %v1791 = vsel %vm1775, %v1627, 0.0
      %v1792 = vsel %vm1776, %v1629, 0.0
      %v1793 = vsel %vm1777, %v1631, 0.0
      %v1794 = vsel %vm1778, %v1633, 0.0
      %v1795 = vsel %vm1779, %v1651, 0.0
      %v1796 = vpack.c.bf16 %v1780, %v1780
      %v1797 = vpack.c.bf16 %v1781, %v1781
      %v1798 = vpack.c.bf16 %v1782, %v1782
      %v1799 = vpack.c.bf16 %v1783, %v1783
      %v1800 = vpack.c.bf16 %v1784, %v1784
      %v1801 = vpack.c.bf16 %v1785, %v1785
      %v1802 = vpack.c.bf16 %v1786, %v1786
      %v1803 = vpack.c.bf16 %v1787, %v1787
      %v1804 = vpack.c.bf16 %v1788, %v1788
      %v1805 = vpack.c.bf16 %v1789, %v1789
      %v1806 = vpack.c.bf16 %v1790, %v1790
      %v1807 = vpack.c.bf16 %v1791, %v1791
      %v1808 = vpack.c.bf16 %v1792, %v1792
      %v1809 = vpack.c.bf16 %v1793, %v1793
      %v1810 = vpack.c.bf16 %v1794, %v1794
      %v1811 = vpack.c.bf16 %v1795, %v1795
      %vm1812 = vcmp.ge.s32.totalorder %v294, 4294967294
      %vm1813 = vcmp.ge.s32.totalorder %v295, 4294967294
      %vm1814 = vcmp.ge.s32.totalorder %v296, 4294967294
      %vm1815 = vcmp.ge.s32.totalorder %v297, 4294967294
      %vm1816 = vcmp.ge.s32.totalorder %v298, 4294967294
      %vm1817 = vcmp.ge.s32.totalorder %v299, 4294967294
      %vm1818 = vcmp.ge.s32.totalorder %v300, 4294967294
      %vm1819 = vcmp.ge.s32.totalorder %v301, 4294967294
      %vm1820 = vcmp.ge.s32.totalorder %v302, 4294967294
      %vm1821 = vcmp.ge.s32.totalorder %v303, 4294967294
      %vm1822 = vcmp.ge.s32.totalorder %v304, 4294967294
      %vm1823 = vcmp.ge.s32.totalorder %v305, 4294967294
      %vm1824 = vcmp.ge.s32.totalorder %v306, 4294967294
      %vm1825 = vcmp.ge.s32.totalorder %v307, 4294967294
      %vm1826 = vcmp.ge.s32.totalorder %v308, 4294967294
      %vm1827 = vcmp.ge.s32.totalorder %v309, 4294967294
      %vm1828 = vcmp.lt.s32.totalorder %v294, 14
      %vm1829 = vcmp.lt.s32.totalorder %v295, 14
      %vm1830 = vcmp.lt.s32.totalorder %v296, 14
      %vm1831 = vcmp.lt.s32.totalorder %v297, 14
      %vm1832 = vcmp.lt.s32.totalorder %v298, 14
      %vm1833 = vcmp.lt.s32.totalorder %v299, 14
      %vm1834 = vcmp.lt.s32.totalorder %v300, 14
      %vm1835 = vcmp.lt.s32.totalorder %v301, 14
      %vm1836 = vcmp.lt.s32.totalorder %v302, 14
      %vm1837 = vcmp.lt.s32.totalorder %v303, 14
      %vm1838 = vcmp.lt.s32.totalorder %v304, 14
      %vm1839 = vcmp.lt.s32.totalorder %v305, 14
      %vm1840 = vcmp.lt.s32.totalorder %v306, 14
      %vm1841 = vcmp.lt.s32.totalorder %v307, 14
      %vm1842 = vcmp.lt.s32.totalorder %v308, 14
      %vm1843 = vcmp.lt.s32.totalorder %v309, 14
      %vm1844 = vmand %vm1812, %vm1828
      %vm1845 = vmand %vm1813, %vm1829
      %vm1846 = vmand %vm1814, %vm1830
      %vm1847 = vmand %vm1815, %vm1831
      %vm1848 = vmand %vm1816, %vm1832
      %vm1849 = vmand %vm1817, %vm1833
      %vm1850 = vmand %vm1818, %vm1834
      %vm1851 = vmand %vm1819, %vm1835
      %vm1852 = vmand %vm1820, %vm1836
      %vm1853 = vmand %vm1821, %vm1837
      %vm1854 = vmand %vm1822, %vm1838
      %vm1855 = vmand %vm1823, %vm1839
      %vm1856 = vmand %vm1824, %vm1840
      %vm1857 = vmand %vm1825, %vm1841
      %vm1858 = vmand %vm1826, %vm1842
      %vm1859 = vmand %vm1827, %vm1843
      %v1860 = vsel %vm1844, 1, 0
      %v1861 = vsel %vm1845, 1, 0
      %v1862 = vsel %vm1846, 1, 0
      %v1863 = vsel %vm1847, 1, 0
      %v1864 = vsel %vm1848, 1, 0
      %v1865 = vsel %vm1849, 1, 0
      %v1866 = vsel %vm1850, 1, 0
      %v1867 = vsel %vm1851, 1, 0
      %v1868 = vsel %vm1852, 1, 0
      %v1869 = vsel %vm1853, 1, 0
      %v1870 = vsel %vm1854, 1, 0
      %v1871 = vsel %vm1855, 1, 0
      %v1872 = vsel %vm1856, 1, 0
      %v1873 = vsel %vm1857, 1, 0
      %v1874 = vsel %vm1858, 1, 0
      %v1875 = vsel %vm1859, 1, 0
      %1876 = vset.pattern.permute.xlu0 0
      %1877 = vperm.xlu0 %1876, %v1860
      %v1878 = vpop.permute.xlu0 %1877
      %1879 = vset.pattern.permute.xlu0 0
      %1880 = vperm.xlu0 %1879, %v1861
      %v1881 = vpop.permute.xlu0 %1880
      %1882 = vset.pattern.permute.xlu0 0
      %1883 = vperm.xlu0 %1882, %v1862
      %v1884 = vpop.permute.xlu0 %1883
      %1885 = vset.pattern.permute.xlu0 0
      %1886 = vperm.xlu0 %1885, %v1863
      %v1887 = vpop.permute.xlu0 %1886
      %1888 = vset.pattern.permute.xlu0 0
      %1889 = vperm.xlu0 %1888, %v1864
      %v1890 = vpop.permute.xlu0 %1889
      %1891 = vset.pattern.permute.xlu0 0
      %1892 = vperm.xlu0 %1891, %v1865
      %v1893 = vpop.permute.xlu0 %1892
      %1894 = vset.pattern.permute.xlu0 0
      %1895 = vperm.xlu0 %1894, %v1866
      %v1896 = vpop.permute.xlu0 %1895
      %1897 = vset.pattern.permute.xlu0 0
      %1898 = vperm.xlu0 %1897, %v1867
      %v1899 = vpop.permute.xlu0 %1898
      %1900 = vset.pattern.permute.xlu0 0
      %1901 = vperm.xlu0 %1900, %v1868
      %v1902 = vpop.permute.xlu0 %1901
      %1903 = vset.pattern.permute.xlu0 0
      %1904 = vperm.xlu0 %1903, %v1869
      %v1905 = vpop.permute.xlu0 %1904
      %1906 = vset.pattern.permute.xlu0 0
      %1907 = vperm.xlu0 %1906, %v1870
      %v1908 = vpop.permute.xlu0 %1907
      %1909 = vset.pattern.permute.xlu0 0
      %1910 = vperm.xlu0 %1909, %v1871
      %v1911 = vpop.permute.xlu0 %1910
      %1912 = vset.pattern.permute.xlu0 0
      %1913 = vperm.xlu0 %1912, %v1872
      %v1914 = vpop.permute.xlu0 %1913
      %1915 = vset.pattern.permute.xlu0 0
      %1916 = vperm.xlu0 %1915, %v1873
      %v1917 = vpop.permute.xlu0 %1916
      %1918 = vset.pattern.permute.xlu0 0
      %1919 = vperm.xlu0 %1918, %v1874
      %v1920 = vpop.permute.xlu0 %1919
      %1921 = vset.pattern.permute.xlu0 0
      %1922 = vperm.xlu0 %1921, %v1875
      %v1923 = vpop.permute.xlu0 %1922
      %vm1924 = vcmp.eq.s32.totalorder %v1878, 1
      %vm1925 = vcmp.eq.s32.totalorder %v1881, 1
      %vm1926 = vcmp.eq.s32.totalorder %v1884, 1
      %vm1927 = vcmp.eq.s32.totalorder %v1887, 1
      %vm1928 = vcmp.eq.s32.totalorder %v1890, 1
      %vm1929 = vcmp.eq.s32.totalorder %v1893, 1
      %vm1930 = vcmp.eq.s32.totalorder %v1896, 1
      %vm1931 = vcmp.eq.s32.totalorder %v1899, 1
      %vm1932 = vcmp.eq.s32.totalorder %v1902, 1
      %vm1933 = vcmp.eq.s32.totalorder %v1905, 1
      %vm1934 = vcmp.eq.s32.totalorder %v1908, 1
      %vm1935 = vcmp.eq.s32.totalorder %v1911, 1
      %vm1936 = vcmp.eq.s32.totalorder %v1914, 1
      %vm1937 = vcmp.eq.s32.totalorder %v1917, 1
      %vm1938 = vcmp.eq.s32.totalorder %v1920, 1
      %vm1939 = vcmp.eq.s32.totalorder %v1923, 1
      %v1940 = vsel %vm1924, %v331, 0.0
      %v1941 = vsel %vm1925, %v333, 0.0
      %v1942 = vsel %vm1926, %v335, 0.0
      %v1943 = vsel %vm1927, %v337, 0.0
      %v1944 = vsel %vm1928, %v339, 0.0
      %v1945 = vsel %vm1929, %v341, 0.0
      %v1946 = vsel %vm1930, %v343, 0.0
      %v1947 = vsel %vm1931, %v345, 0.0
      %v1948 = vsel %vm1932, %v347, 0.0
      %v1949 = vsel %vm1933, %v349, 0.0
      %v1950 = vsel %vm1934, %v351, 0.0
      %v1951 = vsel %vm1935, %v353, 0.0
      %v1952 = vsel %vm1936, %v355, 0.0
      %v1953 = vsel %vm1937, %v357, 0.0
      %v1954 = vsel %vm1938, %v358, 0.0
      %v1955 = vsel %vm1939, %v375, 0.0
      %v1956 = vpack.c.bf16 %v1940, %v1940
      %v1957 = vpack.c.bf16 %v1941, %v1941
      %v1958 = vpack.c.bf16 %v1942, %v1942
      %v1959 = vpack.c.bf16 %v1943, %v1943
      %v1960 = vpack.c.bf16 %v1944, %v1944
      %v1961 = vpack.c.bf16 %v1945, %v1945
      %v1962 = vpack.c.bf16 %v1946, %v1946
      %v1963 = vpack.c.bf16 %v1947, %v1947
      %v1964 = vpack.c.bf16 %v1948, %v1948
      %v1965 = vpack.c.bf16 %v1949, %v1949
      %v1966 = vpack.c.bf16 %v1950, %v1950
      %v1967 = vpack.c.bf16 %v1951, %v1951
      %v1968 = vpack.c.bf16 %v1952, %v1952
      %v1969 = vpack.c.bf16 %v1953, %v1953
      %v1970 = vpack.c.bf16 %v1954, %v1954
      %v1971 = vpack.c.bf16 %v1955, %v1955
      %vm1972 = vcmp.ge.s32.totalorder %v294, 4294967293
      %vm1973 = vcmp.ge.s32.totalorder %v295, 4294967293
      %vm1974 = vcmp.ge.s32.totalorder %v296, 4294967293
      %vm1975 = vcmp.ge.s32.totalorder %v297, 4294967293
      %vm1976 = vcmp.ge.s32.totalorder %v298, 4294967293
      %vm1977 = vcmp.ge.s32.totalorder %v299, 4294967293
      %vm1978 = vcmp.ge.s32.totalorder %v300, 4294967293
      %vm1979 = vcmp.ge.s32.totalorder %v301, 4294967293
      %vm1980 = vcmp.ge.s32.totalorder %v302, 4294967293
      %vm1981 = vcmp.ge.s32.totalorder %v303, 4294967293
      %vm1982 = vcmp.ge.s32.totalorder %v304, 4294967293
      %vm1983 = vcmp.ge.s32.totalorder %v305, 4294967293
      %vm1984 = vcmp.ge.s32.totalorder %v306, 4294967293
      %vm1985 = vcmp.ge.s32.totalorder %v307, 4294967293
      %vm1986 = vcmp.ge.s32.totalorder %v308, 4294967293
      %vm1987 = vcmp.ge.s32.totalorder %v309, 4294967293
      %vm1988 = vcmp.lt.s32.totalorder %v294, 13
      %vm1989 = vcmp.lt.s32.totalorder %v295, 13
      %vm1990 = vcmp.lt.s32.totalorder %v296, 13
      %vm1991 = vcmp.lt.s32.totalorder %v297, 13
      %vm1992 = vcmp.lt.s32.totalorder %v298, 13
      %vm1993 = vcmp.lt.s32.totalorder %v299, 13
      %vm1994 = vcmp.lt.s32.totalorder %v300, 13
      %vm1995 = vcmp.lt.s32.totalorder %v301, 13
      %vm1996 = vcmp.lt.s32.totalorder %v302, 13
      %vm1997 = vcmp.lt.s32.totalorder %v303, 13
      %vm1998 = vcmp.lt.s32.totalorder %v304, 13
      %vm1999 = vcmp.lt.s32.totalorder %v305, 13
      %vm2000 = vcmp.lt.s32.totalorder %v306, 13
      %vm2001 = vcmp.lt.s32.totalorder %v307, 13
      %vm2002 = vcmp.lt.s32.totalorder %v308, 13
      %vm2003 = vcmp.lt.s32.totalorder %v309, 13
      %vm2004 = vmand %vm1972, %vm1988
      %vm2005 = vmand %vm1973, %vm1989
      %vm2006 = vmand %vm1974, %vm1990
      %vm2007 = vmand %vm1975, %vm1991
      %vm2008 = vmand %vm1976, %vm1992
      %vm2009 = vmand %vm1977, %vm1993
      %vm2010 = vmand %vm1978, %vm1994
      %vm2011 = vmand %vm1979, %vm1995
      %vm2012 = vmand %vm1980, %vm1996
      %vm2013 = vmand %vm1981, %vm1997
      %vm2014 = vmand %vm1982, %vm1998
      %vm2015 = vmand %vm1983, %vm1999
      %vm2016 = vmand %vm1984, %vm2000
      %vm2017 = vmand %vm1985, %vm2001
      %vm2018 = vmand %vm1986, %vm2002
      %vm2019 = vmand %vm1987, %vm2003
      %v2020 = vsel %vm2004, 1, 0
      %v2021 = vsel %vm2005, 1, 0
      %v2022 = vsel %vm2006, 1, 0
      %v2023 = vsel %vm2007, 1, 0
      %v2024 = vsel %vm2008, 1, 0
      %v2025 = vsel %vm2009, 1, 0
      %v2026 = vsel %vm2010, 1, 0
      %v2027 = vsel %vm2011, 1, 0
      %v2028 = vsel %vm2012, 1, 0
      %v2029 = vsel %vm2013, 1, 0
      %v2030 = vsel %vm2014, 1, 0
      %v2031 = vsel %vm2015, 1, 0
      %v2032 = vsel %vm2016, 1, 0
      %v2033 = vsel %vm2017, 1, 0
      %v2034 = vsel %vm2018, 1, 0
      %v2035 = vsel %vm2019, 1, 0
      %2036 = vset.pattern.permute.xlu0 0
      %2037 = vperm.xlu0 %2036, %v2020
      %v2038 = vpop.permute.xlu0 %2037
      %2039 = vset.pattern.permute.xlu0 0
      %2040 = vperm.xlu0 %2039, %v2021
      %v2041 = vpop.permute.xlu0 %2040
      %2042 = vset.pattern.permute.xlu0 0
      %2043 = vperm.xlu0 %2042, %v2022
      %v2044 = vpop.permute.xlu0 %2043
      %2045 = vset.pattern.permute.xlu0 0
      %2046 = vperm.xlu0 %2045, %v2023
      %v2047 = vpop.permute.xlu0 %2046
      %2048 = vset.pattern.permute.xlu0 0
      %2049 = vperm.xlu0 %2048, %v2024
      %v2050 = vpop.permute.xlu0 %2049
      %2051 = vset.pattern.permute.xlu0 0
      %2052 = vperm.xlu0 %2051, %v2025
      %v2053 = vpop.permute.xlu0 %2052
      %2054 = vset.pattern.permute.xlu0 0
      %2055 = vperm.xlu0 %2054, %v2026
      %v2056 = vpop.permute.xlu0 %2055
      %2057 = vset.pattern.permute.xlu0 0
      %2058 = vperm.xlu0 %2057, %v2027
      %v2059 = vpop.permute.xlu0 %2058
      %2060 = vset.pattern.permute.xlu0 0
      %2061 = vperm.xlu0 %2060, %v2028
      %v2062 = vpop.permute.xlu0 %2061
      %2063 = vset.pattern.permute.xlu0 0
      %2064 = vperm.xlu0 %2063, %v2029
      %v2065 = vpop.permute.xlu0 %2064
      %2066 = vset.pattern.permute.xlu0 0
      %2067 = vperm.xlu0 %2066, %v2030
      %v2068 = vpop.permute.xlu0 %2067
      %2069 = vset.pattern.permute.xlu0 0
      %2070 = vperm.xlu0 %2069, %v2031
      %v2071 = vpop.permute.xlu0 %2070
      %2072 = vset.pattern.permute.xlu0 0
      %2073 = vperm.xlu0 %2072, %v2032
      %v2074 = vpop.permute.xlu0 %2073
      %2075 = vset.pattern.permute.xlu0 0
      %2076 = vperm.xlu0 %2075, %v2033
      %v2077 = vpop.permute.xlu0 %2076
      %2078 = vset.pattern.permute.xlu0 0
      %2079 = vperm.xlu0 %2078, %v2034
      %v2080 = vpop.permute.xlu0 %2079
      %2081 = vset.pattern.permute.xlu0 0
      %2082 = vperm.xlu0 %2081, %v2035
      %v2083 = vpop.permute.xlu0 %2082
      %vm2084 = vcmp.eq.s32.totalorder %v2038, 1
      %vm2085 = vcmp.eq.s32.totalorder %v2041, 1
      %vm2086 = vcmp.eq.s32.totalorder %v2044, 1
      %vm2087 = vcmp.eq.s32.totalorder %v2047, 1
      %vm2088 = vcmp.eq.s32.totalorder %v2050, 1
      %vm2089 = vcmp.eq.s32.totalorder %v2053, 1
      %vm2090 = vcmp.eq.s32.totalorder %v2056, 1
      %vm2091 = vcmp.eq.s32.totalorder %v2059, 1
      %vm2092 = vcmp.eq.s32.totalorder %v2062, 1
      %vm2093 = vcmp.eq.s32.totalorder %v2065, 1
      %vm2094 = vcmp.eq.s32.totalorder %v2068, 1
      %vm2095 = vcmp.eq.s32.totalorder %v2071, 1
      %vm2096 = vcmp.eq.s32.totalorder %v2074, 1
      %vm2097 = vcmp.eq.s32.totalorder %v2077, 1
      %vm2098 = vcmp.eq.s32.totalorder %v2080, 1
      %vm2099 = vcmp.eq.s32.totalorder %v2083, 1
      %v2100 = vsel %vm2084, %v541, 0.0
      %v2101 = vsel %vm2085, %v543, 0.0
      %v2102 = vsel %vm2086, %v545, 0.0
      %v2103 = vsel %vm2087, %v547, 0.0
      %v2104 = vsel %vm2088, %v549, 0.0
      %v2105 = vsel %vm2089, %v551, 0.0
      %v2106 = vsel %vm2090, %v553, 0.0
      %v2107 = vsel %vm2091, %v555, 0.0
      %v2108 = vsel %vm2092, %v557, 0.0
      %v2109 = vsel %vm2093, %v559, 0.0
      %v2110 = vsel %vm2094, %v561, 0.0
      %v2111 = vsel %vm2095, %v563, 0.0
      %v2112 = vsel %vm2096, %v565, 0.0
      %v2113 = vsel %vm2097, %v567, 0.0
      %v2114 = vsel %vm2098, %v568, 0.0
      %v2115 = vsel %vm2099, %v585, 0.0
      %v2116 = vpack.c.bf16 %v2100, %v2100
      %v2117 = vpack.c.bf16 %v2101, %v2101
      %v2118 = vpack.c.bf16 %v2102, %v2102
      %v2119 = vpack.c.bf16 %v2103, %v2103
      %v2120 = vpack.c.bf16 %v2104, %v2104
      %v2121 = vpack.c.bf16 %v2105, %v2105
      %v2122 = vpack.c.bf16 %v2106, %v2106
      %v2123 = vpack.c.bf16 %v2107, %v2107
      %v2124 = vpack.c.bf16 %v2108, %v2108
      %v2125 = vpack.c.bf16 %v2109, %v2109
      %v2126 = vpack.c.bf16 %v2110, %v2110
      %v2127 = vpack.c.bf16 %v2111, %v2111
      %v2128 = vpack.c.bf16 %v2112, %v2112
      %v2129 = vpack.c.bf16 %v2113, %v2113
      %v2130 = vpack.c.bf16 %v2114, %v2114
      %v2131 = vpack.c.bf16 %v2115, %v2115
      %vm2132 = vcmp.ge.s32.totalorder %v294, 4294967292
      %vm2133 = vcmp.ge.s32.totalorder %v295, 4294967292
      %vm2134 = vcmp.ge.s32.totalorder %v296, 4294967292
      %vm2135 = vcmp.ge.s32.totalorder %v297, 4294967292
      %vm2136 = vcmp.ge.s32.totalorder %v298, 4294967292
      %vm2137 = vcmp.ge.s32.totalorder %v299, 4294967292
      %vm2138 = vcmp.ge.s32.totalorder %v300, 4294967292
      %vm2139 = vcmp.ge.s32.totalorder %v301, 4294967292
      %vm2140 = vcmp.ge.s32.totalorder %v302, 4294967292
      %vm2141 = vcmp.ge.s32.totalorder %v303, 4294967292
      %vm2142 = vcmp.ge.s32.totalorder %v304, 4294967292
      %vm2143 = vcmp.ge.s32.totalorder %v305, 4294967292
      %vm2144 = vcmp.ge.s32.totalorder %v306, 4294967292
      %vm2145 = vcmp.ge.s32.totalorder %v307, 4294967292
      %vm2146 = vcmp.ge.s32.totalorder %v308, 4294967292
      %vm2147 = vcmp.ge.s32.totalorder %v309, 4294967292
      %vm2148 = vcmp.lt.s32.totalorder %v294, 12
      %vm2149 = vcmp.lt.s32.totalorder %v295, 12
      %vm2150 = vcmp.lt.s32.totalorder %v296, 12
      %vm2151 = vcmp.lt.s32.totalorder %v297, 12
      %vm2152 = vcmp.lt.s32.totalorder %v298, 12
      %vm2153 = vcmp.lt.s32.totalorder %v299, 12
      %vm2154 = vcmp.lt.s32.totalorder %v300, 12
      %vm2155 = vcmp.lt.s32.totalorder %v301, 12
      %vm2156 = vcmp.lt.s32.totalorder %v302, 12
      %vm2157 = vcmp.lt.s32.totalorder %v303, 12
      %vm2158 = vcmp.lt.s32.totalorder %v304, 12
      %vm2159 = vcmp.lt.s32.totalorder %v305, 12
      %vm2160 = vcmp.lt.s32.totalorder %v306, 12
      %vm2161 = vcmp.lt.s32.totalorder %v307, 12
      %vm2162 = vcmp.lt.s32.totalorder %v308, 12
      %vm2163 = vcmp.lt.s32.totalorder %v309, 12
      %vm2164 = vmand %vm2132, %vm2148
      %vm2165 = vmand %vm2133, %vm2149
      %vm2166 = vmand %vm2134, %vm2150
      %vm2167 = vmand %vm2135, %vm2151
      %vm2168 = vmand %vm2136, %vm2152
      %vm2169 = vmand %vm2137, %vm2153
      %vm2170 = vmand %vm2138, %vm2154
      %vm2171 = vmand %vm2139, %vm2155
      %vm2172 = vmand %vm2140, %vm2156
      %vm2173 = vmand %vm2141, %vm2157
      %vm2174 = vmand %vm2142, %vm2158
      %vm2175 = vmand %vm2143, %vm2159
      %vm2176 = vmand %vm2144, %vm2160
      %vm2177 = vmand %vm2145, %vm2161
      %vm2178 = vmand %vm2146, %vm2162
      %vm2179 = vmand %vm2147, %vm2163
      %v2180 = vsel %vm2164, 1, 0
      %v2181 = vsel %vm2165, 1, 0
      %v2182 = vsel %vm2166, 1, 0
      %v2183 = vsel %vm2167, 1, 0
      %v2184 = vsel %vm2168, 1, 0
      %v2185 = vsel %vm2169, 1, 0
      %v2186 = vsel %vm2170, 1, 0
      %v2187 = vsel %vm2171, 1, 0
      %v2188 = vsel %vm2172, 1, 0
      %v2189 = vsel %vm2173, 1, 0
      %v2190 = vsel %vm2174, 1, 0
      %v2191 = vsel %vm2175, 1, 0
      %v2192 = vsel %vm2176, 1, 0
      %v2193 = vsel %vm2177, 1, 0
      %v2194 = vsel %vm2178, 1, 0
      %v2195 = vsel %vm2179, 1, 0
      %2196 = vset.pattern.permute.xlu0 0
      %2197 = vperm.xlu0 %2196, %v2180
      %v2198 = vpop.permute.xlu0 %2197
      %2199 = vset.pattern.permute.xlu0 0
      %2200 = vperm.xlu0 %2199, %v2181
      %v2201 = vpop.permute.xlu0 %2200
      %2202 = vset.pattern.permute.xlu0 0
      %2203 = vperm.xlu0 %2202, %v2182
      %v2204 = vpop.permute.xlu0 %2203
      %2205 = vset.pattern.permute.xlu0 0
      %2206 = vperm.xlu0 %2205, %v2183
      %v2207 = vpop.permute.xlu0 %2206
      %2208 = vset.pattern.permute.xlu0 0
      %2209 = vperm.xlu0 %2208, %v2184
      %v2210 = vpop.permute.xlu0 %2209
      %2211 = vset.pattern.permute.xlu0 0
      %2212 = vperm.xlu0 %2211, %v2185
      %v2213 = vpop.permute.xlu0 %2212
      %2214 = vset.pattern.permute.xlu0 0
      %2215 = vperm.xlu0 %2214, %v2186
      %v2216 = vpop.permute.xlu0 %2215
      %2217 = vset.pattern.permute.xlu0 0
      %2218 = vperm.xlu0 %2217, %v2187
      %v2219 = vpop.permute.xlu0 %2218
      %2220 = vset.pattern.permute.xlu0 0
      %2221 = vperm.xlu0 %2220, %v2188
      %v2222 = vpop.permute.xlu0 %2221
      %2223 = vset.pattern.permute.xlu0 0
      %2224 = vperm.xlu0 %2223, %v2189
      %v2225 = vpop.permute.xlu0 %2224
      %2226 = vset.pattern.permute.xlu0 0
      %2227 = vperm.xlu0 %2226, %v2190
      %v2228 = vpop.permute.xlu0 %2227
      %2229 = vset.pattern.permute.xlu0 0
      %2230 = vperm.xlu0 %2229, %v2191
      %v2231 = vpop.permute.xlu0 %2230
      %2232 = vset.pattern.permute.xlu0 0
      %2233 = vperm.xlu0 %2232, %v2192
      %v2234 = vpop.permute.xlu0 %2233
      %2235 = vset.pattern.permute.xlu0 0
      %2236 = vperm.xlu0 %2235, %v2193
      %v2237 = vpop.permute.xlu0 %2236
      %2238 = vset.pattern.permute.xlu0 0
      %2239 = vperm.xlu0 %2238, %v2194
      %v2240 = vpop.permute.xlu0 %2239
      %2241 = vset.pattern.permute.xlu0 0
      %2242 = vperm.xlu0 %2241, %v2195
      %v2243 = vpop.permute.xlu0 %2242
      %vm2244 = vcmp.eq.s32.totalorder %v2198, 1
      %vm2245 = vcmp.eq.s32.totalorder %v2201, 1
      %vm2246 = vcmp.eq.s32.totalorder %v2204, 1
      %vm2247 = vcmp.eq.s32.totalorder %v2207, 1
      %vm2248 = vcmp.eq.s32.totalorder %v2210, 1
      %vm2249 = vcmp.eq.s32.totalorder %v2213, 1
      %vm2250 = vcmp.eq.s32.totalorder %v2216, 1
      %vm2251 = vcmp.eq.s32.totalorder %v2219, 1
      %vm2252 = vcmp.eq.s32.totalorder %v2222, 1
      %vm2253 = vcmp.eq.s32.totalorder %v2225, 1
      %vm2254 = vcmp.eq.s32.totalorder %v2228, 1
      %vm2255 = vcmp.eq.s32.totalorder %v2231, 1
      %vm2256 = vcmp.eq.s32.totalorder %v2234, 1
      %vm2257 = vcmp.eq.s32.totalorder %v2237, 1
      %vm2258 = vcmp.eq.s32.totalorder %v2240, 1
      %vm2259 = vcmp.eq.s32.totalorder %v2243, 1
      %v2260 = vsel %vm2244, %v751, 0.0
      %v2261 = vsel %vm2245, %v753, 0.0
      %v2262 = vsel %vm2246, %v755, 0.0
      %v2263 = vsel %vm2247, %v757, 0.0
      %v2264 = vsel %vm2248, %v759, 0.0
      %v2265 = vsel %vm2249, %v761, 0.0
      %v2266 = vsel %vm2250, %v763, 0.0
      %v2267 = vsel %vm2251, %v765, 0.0
      %v2268 = vsel %vm2252, %v767, 0.0
      %v2269 = vsel %vm2253, %v769, 0.0
      %v2270 = vsel %vm2254, %v771, 0.0
      %v2271 = vsel %vm2255, %v773, 0.0
      %v2272 = vsel %vm2256, %v775, 0.0
      %v2273 = vsel %vm2257, %v777, 0.0
      %v2274 = vsel %vm2258, %v778, 0.0
      %v2275 = vsel %vm2259, %v795, 0.0
      %v2276 = vpack.c.bf16 %v2260, %v2260
      %v2277 = vpack.c.bf16 %v2261, %v2261
      %v2278 = vpack.c.bf16 %v2262, %v2262
      %v2279 = vpack.c.bf16 %v2263, %v2263
      %v2280 = vpack.c.bf16 %v2264, %v2264
      %v2281 = vpack.c.bf16 %v2265, %v2265
      %v2282 = vpack.c.bf16 %v2266, %v2266
      %v2283 = vpack.c.bf16 %v2267, %v2267
      %v2284 = vpack.c.bf16 %v2268, %v2268
      %v2285 = vpack.c.bf16 %v2269, %v2269
      %v2286 = vpack.c.bf16 %v2270, %v2270
      %v2287 = vpack.c.bf16 %v2271, %v2271
      %v2288 = vpack.c.bf16 %v2272, %v2272
      %v2289 = vpack.c.bf16 %v2273, %v2273
      %v2290 = vpack.c.bf16 %v2274, %v2274
      %v2291 = vpack.c.bf16 %v2275, %v2275
      %vm2292 = vcmp.ge.s32.totalorder %v294, 4294967291
      %vm2293 = vcmp.ge.s32.totalorder %v295, 4294967291
      %vm2294 = vcmp.ge.s32.totalorder %v296, 4294967291
      %vm2295 = vcmp.ge.s32.totalorder %v297, 4294967291
      %vm2296 = vcmp.ge.s32.totalorder %v298, 4294967291
      %vm2297 = vcmp.ge.s32.totalorder %v299, 4294967291
      %vm2298 = vcmp.ge.s32.totalorder %v300, 4294967291
      %vm2299 = vcmp.ge.s32.totalorder %v301, 4294967291
      %vm2300 = vcmp.ge.s32.totalorder %v302, 4294967291
      %vm2301 = vcmp.ge.s32.totalorder %v303, 4294967291
      %vm2302 = vcmp.ge.s32.totalorder %v304, 4294967291
      %vm2303 = vcmp.ge.s32.totalorder %v305, 4294967291
      %vm2304 = vcmp.ge.s32.totalorder %v306, 4294967291
      %vm2305 = vcmp.ge.s32.totalorder %v307, 4294967291
      %vm2306 = vcmp.ge.s32.totalorder %v308, 4294967291
      %vm2307 = vcmp.ge.s32.totalorder %v309, 4294967291
      %vm2308 = vcmp.lt.s32.totalorder %v294, 11
      %vm2309 = vcmp.lt.s32.totalorder %v295, 11
      %vm2310 = vcmp.lt.s32.totalorder %v296, 11
      %vm2311 = vcmp.lt.s32.totalorder %v297, 11
      %vm2312 = vcmp.lt.s32.totalorder %v298, 11
      %vm2313 = vcmp.lt.s32.totalorder %v299, 11
      %vm2314 = vcmp.lt.s32.totalorder %v300, 11
      %vm2315 = vcmp.lt.s32.totalorder %v301, 11
      %vm2316 = vcmp.lt.s32.totalorder %v302, 11
      %vm2317 = vcmp.lt.s32.totalorder %v303, 11
      %vm2318 = vcmp.lt.s32.totalorder %v304, 11
      %vm2319 = vcmp.lt.s32.totalorder %v305, 11
      %vm2320 = vcmp.lt.s32.totalorder %v306, 11
      %vm2321 = vcmp.lt.s32.totalorder %v307, 11
      %vm2322 = vcmp.lt.s32.totalorder %v308, 11
      %vm2323 = vcmp.lt.s32.totalorder %v309, 11
      %vm2324 = vmand %vm2292, %vm2308
      %vm2325 = vmand %vm2293, %vm2309
      %vm2326 = vmand %vm2294, %vm2310
      %vm2327 = vmand %vm2295, %vm2311
      %vm2328 = vmand %vm2296, %vm2312
      %vm2329 = vmand %vm2297, %vm2313
      %vm2330 = vmand %vm2298, %vm2314
      %vm2331 = vmand %vm2299, %vm2315
      %vm2332 = vmand %vm2300, %vm2316
      %vm2333 = vmand %vm2301, %vm2317
      %vm2334 = vmand %vm2302, %vm2318
      %vm2335 = vmand %vm2303, %vm2319
      %vm2336 = vmand %vm2304, %vm2320
      %vm2337 = vmand %vm2305, %vm2321
      %vm2338 = vmand %vm2306, %vm2322
      %vm2339 = vmand %vm2307, %vm2323
      %v2340 = vsel %vm2324, 1, 0
      %v2341 = vsel %vm2325, 1, 0
      %v2342 = vsel %vm2326, 1, 0
      %v2343 = vsel %vm2327, 1, 0
      %v2344 = vsel %vm2328, 1, 0
      %v2345 = vsel %vm2329, 1, 0
      %v2346 = vsel %vm2330, 1, 0
      %v2347 = vsel %vm2331, 1, 0
      %v2348 = vsel %vm2332, 1, 0
      %v2349 = vsel %vm2333, 1, 0
      %v2350 = vsel %vm2334, 1, 0
      %v2351 = vsel %vm2335, 1, 0
      %v2352 = vsel %vm2336, 1, 0
      %v2353 = vsel %vm2337, 1, 0
      %v2354 = vsel %vm2338, 1, 0
      %v2355 = vsel %vm2339, 1, 0
      %2356 = vset.pattern.permute.xlu0 0
      %2357 = vperm.xlu0 %2356, %v2340
      %v2358 = vpop.permute.xlu0 %2357
      %2359 = vset.pattern.permute.xlu0 0
      %2360 = vperm.xlu0 %2359, %v2341
      %v2361 = vpop.permute.xlu0 %2360
      %2362 = vset.pattern.permute.xlu0 0
      %2363 = vperm.xlu0 %2362, %v2342
      %v2364 = vpop.permute.xlu0 %2363
      %2365 = vset.pattern.permute.xlu0 0
      %2366 = vperm.xlu0 %2365, %v2343
      %v2367 = vpop.permute.xlu0 %2366
      %2368 = vset.pattern.permute.xlu0 0
      %2369 = vperm.xlu0 %2368, %v2344
      %v2370 = vpop.permute.xlu0 %2369
      %2371 = vset.pattern.permute.xlu0 0
      %2372 = vperm.xlu0 %2371, %v2345
      %v2373 = vpop.permute.xlu0 %2372
      %2374 = vset.pattern.permute.xlu0 0
      %2375 = vperm.xlu0 %2374, %v2346
      %v2376 = vpop.permute.xlu0 %2375
      %2377 = vset.pattern.permute.xlu0 0
      %2378 = vperm.xlu0 %2377, %v2347
      %v2379 = vpop.permute.xlu0 %2378
      %2380 = vset.pattern.permute.xlu0 0
      %2381 = vperm.xlu0 %2380, %v2348
      %v2382 = vpop.permute.xlu0 %2381
      %2383 = vset.pattern.permute.xlu0 0
      %2384 = vperm.xlu0 %2383, %v2349
      %v2385 = vpop.permute.xlu0 %2384
      %2386 = vset.pattern.permute.xlu0 0
      %2387 = vperm.xlu0 %2386, %v2350
      %v2388 = vpop.permute.xlu0 %2387
      %2389 = vset.pattern.permute.xlu0 0
      %2390 = vperm.xlu0 %2389, %v2351
      %v2391 = vpop.permute.xlu0 %2390
      %2392 = vset.pattern.permute.xlu0 0
      %2393 = vperm.xlu0 %2392, %v2352
      %v2394 = vpop.permute.xlu0 %2393
      %2395 = vset.pattern.permute.xlu0 0
      %2396 = vperm.xlu0 %2395, %v2353
      %v2397 = vpop.permute.xlu0 %2396
      %2398 = vset.pattern.permute.xlu0 0
      %2399 = vperm.xlu0 %2398, %v2354
      %v2400 = vpop.permute.xlu0 %2399
      %2401 = vset.pattern.permute.xlu0 0
      %2402 = vperm.xlu0 %2401, %v2355
      %v2403 = vpop.permute.xlu0 %2402
      %vm2404 = vcmp.eq.s32.totalorder %v2358, 1
      %vm2405 = vcmp.eq.s32.totalorder %v2361, 1
      %vm2406 = vcmp.eq.s32.totalorder %v2364, 1
      %vm2407 = vcmp.eq.s32.totalorder %v2367, 1
      %vm2408 = vcmp.eq.s32.totalorder %v2370, 1
      %vm2409 = vcmp.eq.s32.totalorder %v2373, 1
      %vm2410 = vcmp.eq.s32.totalorder %v2376, 1
      %vm2411 = vcmp.eq.s32.totalorder %v2379, 1
      %vm2412 = vcmp.eq.s32.totalorder %v2382, 1
      %vm2413 = vcmp.eq.s32.totalorder %v2385, 1
      %vm2414 = vcmp.eq.s32.totalorder %v2388, 1
      %vm2415 = vcmp.eq.s32.totalorder %v2391, 1
      %vm2416 = vcmp.eq.s32.totalorder %v2394, 1
      %vm2417 = vcmp.eq.s32.totalorder %v2397, 1
      %vm2418 = vcmp.eq.s32.totalorder %v2400, 1
      %vm2419 = vcmp.eq.s32.totalorder %v2403, 1
      %v2420 = vsel %vm2404, %v961, 0.0
      %v2421 = vsel %vm2405, %v963, 0.0
      %v2422 = vsel %vm2406, %v965, 0.0
      %v2423 = vsel %vm2407, %v967, 0.0
      %v2424 = vsel %vm2408, %v969, 0.0
      %v2425 = vsel %vm2409, %v971, 0.0
      %v2426 = vsel %vm2410, %v973, 0.0
      %v2427 = vsel %vm2411, %v975, 0.0
      %v2428 = vsel %vm2412, %v977, 0.0
      %v2429 = vsel %vm2413, %v979, 0.0
      %v2430 = vsel %vm2414, %v981, 0.0
      %v2431 = vsel %vm2415, %v983, 0.0
      %v2432 = vsel %vm2416, %v985, 0.0
      %v2433 = vsel %vm2417, %v987, 0.0
      %v2434 = vsel %vm2418, %v988, 0.0
      %v2435 = vsel %vm2419, %v1005, 0.0
      %v2436 = vpack.c.bf16 %v2420, %v2420
      %v2437 = vpack.c.bf16 %v2421, %v2421
      %v2438 = vpack.c.bf16 %v2422, %v2422
      %v2439 = vpack.c.bf16 %v2423, %v2423
      %v2440 = vpack.c.bf16 %v2424, %v2424
      %v2441 = vpack.c.bf16 %v2425, %v2425
      %v2442 = vpack.c.bf16 %v2426, %v2426
      %v2443 = vpack.c.bf16 %v2427, %v2427
      %v2444 = vpack.c.bf16 %v2428, %v2428
      %v2445 = vpack.c.bf16 %v2429, %v2429
      %v2446 = vpack.c.bf16 %v2430, %v2430
      %v2447 = vpack.c.bf16 %v2431, %v2431
      %v2448 = vpack.c.bf16 %v2432, %v2432
      %v2449 = vpack.c.bf16 %v2433, %v2433
      %v2450 = vpack.c.bf16 %v2434, %v2434
      %v2451 = vpack.c.bf16 %v2435, %v2435
      %vm2452 = vcmp.ge.s32.totalorder %v294, 4294967290
      %vm2453 = vcmp.ge.s32.totalorder %v295, 4294967290
      %vm2454 = vcmp.ge.s32.totalorder %v296, 4294967290
      %vm2455 = vcmp.ge.s32.totalorder %v297, 4294967290
      %vm2456 = vcmp.ge.s32.totalorder %v298, 4294967290
      %vm2457 = vcmp.ge.s32.totalorder %v299, 4294967290
      %vm2458 = vcmp.ge.s32.totalorder %v300, 4294967290
      %vm2459 = vcmp.ge.s32.totalorder %v301, 4294967290
      %vm2460 = vcmp.ge.s32.totalorder %v302, 4294967290
      %vm2461 = vcmp.ge.s32.totalorder %v303, 4294967290
      %vm2462 = vcmp.ge.s32.totalorder %v304, 4294967290
      %vm2463 = vcmp.ge.s32.totalorder %v305, 4294967290
      %vm2464 = vcmp.ge.s32.totalorder %v306, 4294967290
      %vm2465 = vcmp.ge.s32.totalorder %v307, 4294967290
      %vm2466 = vcmp.ge.s32.totalorder %v308, 4294967290
      %vm2467 = vcmp.ge.s32.totalorder %v309, 4294967290
      %vm2468 = vcmp.lt.s32.totalorder %v294, 10
      %vm2469 = vcmp.lt.s32.totalorder %v295, 10
      %vm2470 = vcmp.lt.s32.totalorder %v296, 10
      %vm2471 = vcmp.lt.s32.totalorder %v297, 10
      %vm2472 = vcmp.lt.s32.totalorder %v298, 10
      %vm2473 = vcmp.lt.s32.totalorder %v299, 10
      %vm2474 = vcmp.lt.s32.totalorder %v300, 10
      %vm2475 = vcmp.lt.s32.totalorder %v301, 10
      %vm2476 = vcmp.lt.s32.totalorder %v302, 10
      %vm2477 = vcmp.lt.s32.totalorder %v303, 10
      %vm2478 = vcmp.lt.s32.totalorder %v304, 10
      %vm2479 = vcmp.lt.s32.totalorder %v305, 10
      %vm2480 = vcmp.lt.s32.totalorder %v306, 10
      %vm2481 = vcmp.lt.s32.totalorder %v307, 10
      %vm2482 = vcmp.lt.s32.totalorder %v308, 10
      %vm2483 = vcmp.lt.s32.totalorder %v309, 10
      %vm2484 = vmand %vm2452, %vm2468
      %vm2485 = vmand %vm2453, %vm2469
      %vm2486 = vmand %vm2454, %vm2470
      %vm2487 = vmand %vm2455, %vm2471
      %vm2488 = vmand %vm2456, %vm2472
      %vm2489 = vmand %vm2457, %vm2473
      %vm2490 = vmand %vm2458, %vm2474
      %vm2491 = vmand %vm2459, %vm2475
      %vm2492 = vmand %vm2460, %vm2476
      %vm2493 = vmand %vm2461, %vm2477
      %vm2494 = vmand %vm2462, %vm2478
      %vm2495 = vmand %vm2463, %vm2479
      %vm2496 = vmand %vm2464, %vm2480
      %vm2497 = vmand %vm2465, %vm2481
      %vm2498 = vmand %vm2466, %vm2482
      %vm2499 = vmand %vm2467, %vm2483
      %v2500 = vsel %vm2484, 1, 0
      %v2501 = vsel %vm2485, 1, 0
      %v2502 = vsel %vm2486, 1, 0
      %v2503 = vsel %vm2487, 1, 0
      %v2504 = vsel %vm2488, 1, 0
      %v2505 = vsel %vm2489, 1, 0
      %v2506 = vsel %vm2490, 1, 0
      %v2507 = vsel %vm2491, 1, 0
      %v2508 = vsel %vm2492, 1, 0
      %v2509 = vsel %vm2493, 1, 0
      %v2510 = vsel %vm2494, 1, 0
      %v2511 = vsel %vm2495, 1, 0
      %v2512 = vsel %vm2496, 1, 0
      %v2513 = vsel %vm2497, 1, 0
      %v2514 = vsel %vm2498, 1, 0
      %v2515 = vsel %vm2499, 1, 0
      %2516 = vset.pattern.permute.xlu0 0
      %2517 = vperm.xlu0 %2516, %v2500
      %v2518 = vpop.permute.xlu0 %2517
      %2519 = vset.pattern.permute.xlu0 0
      %2520 = vperm.xlu0 %2519, %v2501
      %v2521 = vpop.permute.xlu0 %2520
      %2522 = vset.pattern.permute.xlu0 0
      %2523 = vperm.xlu0 %2522, %v2502
      %v2524 = vpop.permute.xlu0 %2523
      %2525 = vset.pattern.permute.xlu0 0
      %2526 = vperm.xlu0 %2525, %v2503
      %v2527 = vpop.permute.xlu0 %2526
      %2528 = vset.pattern.permute.xlu0 0
      %2529 = vperm.xlu0 %2528, %v2504
      %v2530 = vpop.permute.xlu0 %2529
      %2531 = vset.pattern.permute.xlu0 0
      %2532 = vperm.xlu0 %2531, %v2505
      %v2533 = vpop.permute.xlu0 %2532
      %2534 = vset.pattern.permute.xlu0 0
      %2535 = vperm.xlu0 %2534, %v2506
      %v2536 = vpop.permute.xlu0 %2535
      %2537 = vset.pattern.permute.xlu0 0
      %2538 = vperm.xlu0 %2537, %v2507
      %v2539 = vpop.permute.xlu0 %2538
      %2540 = vset.pattern.permute.xlu0 0
      %2541 = vperm.xlu0 %2540, %v2508
      %v2542 = vpop.permute.xlu0 %2541
      %2543 = vset.pattern.permute.xlu0 0
      %2544 = vperm.xlu0 %2543, %v2509
      %v2545 = vpop.permute.xlu0 %2544
      %2546 = vset.pattern.permute.xlu0 0
      %2547 = vperm.xlu0 %2546, %v2510
      %v2548 = vpop.permute.xlu0 %2547
      %2549 = vset.pattern.permute.xlu0 0
      %2550 = vperm.xlu0 %2549, %v2511
      %v2551 = vpop.permute.xlu0 %2550
      %2552 = vset.pattern.permute.xlu0 0
      %2553 = vperm.xlu0 %2552, %v2512
      %v2554 = vpop.permute.xlu0 %2553
      %2555 = vset.pattern.permute.xlu0 0
      %2556 = vperm.xlu0 %2555, %v2513
      %v2557 = vpop.permute.xlu0 %2556
      %2558 = vset.pattern.permute.xlu0 0
      %2559 = vperm.xlu0 %2558, %v2514
      %v2560 = vpop.permute.xlu0 %2559
      %2561 = vset.pattern.permute.xlu0 0
      %2562 = vperm.xlu0 %2561, %v2515
      %v2563 = vpop.permute.xlu0 %2562
      %vm2564 = vcmp.eq.s32.totalorder %v2518, 1
      %vm2565 = vcmp.eq.s32.totalorder %v2521, 1
      %vm2566 = vcmp.eq.s32.totalorder %v2524, 1
      %vm2567 = vcmp.eq.s32.totalorder %v2527, 1
      %vm2568 = vcmp.eq.s32.totalorder %v2530, 1
      %vm2569 = vcmp.eq.s32.totalorder %v2533, 1
      %vm2570 = vcmp.eq.s32.totalorder %v2536, 1
      %vm2571 = vcmp.eq.s32.totalorder %v2539, 1
      %vm2572 = vcmp.eq.s32.totalorder %v2542, 1
      %vm2573 = vcmp.eq.s32.totalorder %v2545, 1
      %vm2574 = vcmp.eq.s32.totalorder %v2548, 1
      %vm2575 = vcmp.eq.s32.totalorder %v2551, 1
      %vm2576 = vcmp.eq.s32.totalorder %v2554, 1
      %vm2577 = vcmp.eq.s32.totalorder %v2557, 1
      %vm2578 = vcmp.eq.s32.totalorder %v2560, 1
      %vm2579 = vcmp.eq.s32.totalorder %v2563, 1
      %v2580 = vsel %vm2564, %v1171, 0.0
      %v2581 = vsel %vm2565, %v1173, 0.0
      %v2582 = vsel %vm2566, %v1175, 0.0
      %v2583 = vsel %vm2567, %v1177, 0.0
      %v2584 = vsel %vm2568, %v1179, 0.0
      %v2585 = vsel %vm2569, %v1181, 0.0
      %v2586 = vsel %vm2570, %v1183, 0.0
      %v2587 = vsel %vm2571, %v1185, 0.0
      %v2588 = vsel %vm2572, %v1187, 0.0
      %v2589 = vsel %vm2573, %v1189, 0.0
      %v2590 = vsel %vm2574, %v1191, 0.0
      %v2591 = vsel %vm2575, %v1193, 0.0
      %v2592 = vsel %vm2576, %v1195, 0.0
      %v2593 = vsel %vm2577, %v1197, 0.0
      %v2594 = vsel %vm2578, %v1198, 0.0
      %v2595 = vsel %vm2579, %v1215, 0.0
      %v2596 = vpack.c.bf16 %v2580, %v2580
      %v2597 = vpack.c.bf16 %v2581, %v2581
      %v2598 = vpack.c.bf16 %v2582, %v2582
      %v2599 = vpack.c.bf16 %v2583, %v2583
      %v2600 = vpack.c.bf16 %v2584, %v2584
      %v2601 = vpack.c.bf16 %v2585, %v2585
      %v2602 = vpack.c.bf16 %v2586, %v2586
      %v2603 = vpack.c.bf16 %v2587, %v2587
      %v2604 = vpack.c.bf16 %v2588, %v2588
      %v2605 = vpack.c.bf16 %v2589, %v2589
      %v2606 = vpack.c.bf16 %v2590, %v2590
      %v2607 = vpack.c.bf16 %v2591, %v2591
      %v2608 = vpack.c.bf16 %v2592, %v2592
      %v2609 = vpack.c.bf16 %v2593, %v2593
      %v2610 = vpack.c.bf16 %v2594, %v2594
      %v2611 = vpack.c.bf16 %v2595, %v2595
      %v2628 = vunpack.c.l.b16 %v520
      %v2629 = vunpack.c.l.b16 %v521
      %v2630 = vunpack.c.l.b16 %v522
      %v2631 = vunpack.c.l.b16 %v523
      %v2632 = vunpack.c.l.b16 %v524
      %v2633 = vunpack.c.l.b16 %v525
      %v2634 = vunpack.c.l.b16 %v526
      %v2635 = vunpack.c.l.b16 %v527
      %v2636 = vunpack.c.l.b16 %v528
      %v2637 = vunpack.c.l.b16 %v529
      %v2638 = vunpack.c.l.b16 %v530
      %v2639 = vunpack.c.l.b16 %v531
      %v2640 = vunpack.c.l.b16 %v532
      %v2641 = vunpack.c.l.b16 %v533
      %v2642 = vunpack.c.l.b16 %v534
      %v2643 = vunpack.c.l.b16 %v535
      %v2644 = vpack.c.b16 %v2629, %v2628
      %v2645 = vpack.c.b16 %v2631, %v2630
      %v2646 = vpack.c.b16 %v2633, %v2632
      %v2647 = vpack.c.b16 %v2635, %v2634
      %v2648 = vpack.c.b16 %v2637, %v2636
      %v2649 = vpack.c.b16 %v2639, %v2638
      %v2650 = vpack.c.b16 %v2641, %v2640
      %v2651 = vpack.c.b16 %v2643, %v2642
      %v2668 = vunpack.c.l.b16 %v730
      %v2669 = vunpack.c.l.b16 %v731
      %v2670 = vunpack.c.l.b16 %v732
      %v2671 = vunpack.c.l.b16 %v733
      %v2672 = vunpack.c.l.b16 %v734
      %v2673 = vunpack.c.l.b16 %v735
      %v2674 = vunpack.c.l.b16 %v736
      %v2675 = vunpack.c.l.b16 %v737
      %v2676 = vunpack.c.l.b16 %v738
      %v2677 = vunpack.c.l.b16 %v739
      %v2678 = vunpack.c.l.b16 %v740
      %v2679 = vunpack.c.l.b16 %v741
      %v2680 = vunpack.c.l.b16 %v742
      %v2681 = vunpack.c.l.b16 %v743
      %v2682 = vunpack.c.l.b16 %v744
      %v2683 = vunpack.c.l.b16 %v745
      %v2684 = vpack.c.b16 %v2669, %v2668
      %v2685 = vpack.c.b16 %v2671, %v2670
      %v2686 = vpack.c.b16 %v2673, %v2672
      %v2687 = vpack.c.b16 %v2675, %v2674
      %v2688 = vpack.c.b16 %v2677, %v2676
      %v2689 = vpack.c.b16 %v2679, %v2678
      %v2690 = vpack.c.b16 %v2681, %v2680
      %v2691 = vpack.c.b16 %v2683, %v2682
      %2692 = vrot.lane.b32.xlu0 %v2684, 32
      %v2693 = vpop.permute.xlu0 %2692
      %2694 = vrot.lane.b32.xlu0 %v2685, 32
      %v2695 = vpop.permute.xlu0 %2694
      %2696 = vrot.lane.b32.xlu0 %v2686, 32
      %v2697 = vpop.permute.xlu0 %2696
      %2698 = vrot.lane.b32.xlu0 %v2687, 32
      %v2699 = vpop.permute.xlu0 %2698
      %2700 = vrot.lane.b32.xlu0 %v2688, 32
      %v2701 = vpop.permute.xlu0 %2700
      %2702 = vrot.lane.b32.xlu0 %v2689, 32
      %v2703 = vpop.permute.xlu0 %2702
      %2704 = vrot.lane.b32.xlu0 %v2690, 32
      %v2705 = vpop.permute.xlu0 %2704
      %2706 = vrot.lane.b32.xlu0 %v2691, 32
      %v2707 = vpop.permute.xlu0 %2706
      %v2724 = vunpack.c.l.b16 %v940
      %v2725 = vunpack.c.l.b16 %v941
      %v2726 = vunpack.c.l.b16 %v942
      %v2727 = vunpack.c.l.b16 %v943
      %v2728 = vunpack.c.l.b16 %v944
      %v2729 = vunpack.c.l.b16 %v945
      %v2730 = vunpack.c.l.b16 %v946
      %v2731 = vunpack.c.l.b16 %v947
      %v2732 = vunpack.c.l.b16 %v948
      %v2733 = vunpack.c.l.b16 %v949
      %v2734 = vunpack.c.l.b16 %v950
      %v2735 = vunpack.c.l.b16 %v951
      %v2736 = vunpack.c.l.b16 %v952
      %v2737 = vunpack.c.l.b16 %v953
      %v2738 = vunpack.c.l.b16 %v954
      %v2739 = vunpack.c.l.b16 %v955
      %v2740 = vpack.c.b16 %v2725, %v2724
      %v2741 = vpack.c.b16 %v2727, %v2726
      %v2742 = vpack.c.b16 %v2729, %v2728
      %v2743 = vpack.c.b16 %v2731, %v2730
      %v2744 = vpack.c.b16 %v2733, %v2732
      %v2745 = vpack.c.b16 %v2735, %v2734
      %v2746 = vpack.c.b16 %v2737, %v2736
      %v2747 = vpack.c.b16 %v2739, %v2738
      %2748 = vrot.lane.b32.xlu0 %v2740, 64
      %v2749 = vpop.permute.xlu0 %2748
      %2750 = vrot.lane.b32.xlu0 %v2741, 64
      %v2751 = vpop.permute.xlu0 %2750
      %2752 = vrot.lane.b32.xlu0 %v2742, 64
      %v2753 = vpop.permute.xlu0 %2752
      %2754 = vrot.lane.b32.xlu0 %v2743, 64
      %v2755 = vpop.permute.xlu0 %2754
      %2756 = vrot.lane.b32.xlu0 %v2744, 64
      %v2757 = vpop.permute.xlu0 %2756
      %2758 = vrot.lane.b32.xlu0 %v2745, 64
      %v2759 = vpop.permute.xlu0 %2758
      %2760 = vrot.lane.b32.xlu0 %v2746, 64
      %v2761 = vpop.permute.xlu0 %2760
      %2762 = vrot.lane.b32.xlu0 %v2747, 64
      %v2763 = vpop.permute.xlu0 %2762
      %v2780 = vunpack.c.l.b16 %v1150
      %v2781 = vunpack.c.l.b16 %v1151
      %v2782 = vunpack.c.l.b16 %v1152
      %v2783 = vunpack.c.l.b16 %v1153
      %v2784 = vunpack.c.l.b16 %v1154
      %v2785 = vunpack.c.l.b16 %v1155
      %v2786 = vunpack.c.l.b16 %v1156
      %v2787 = vunpack.c.l.b16 %v1157
      %v2788 = vunpack.c.l.b16 %v1158
      %v2789 = vunpack.c.l.b16 %v1159
      %v2790 = vunpack.c.l.b16 %v1160
      %v2791 = vunpack.c.l.b16 %v1161
      %v2792 = vunpack.c.l.b16 %v1162
      %v2793 = vunpack.c.l.b16 %v1163
      %v2794 = vunpack.c.l.b16 %v1164
      %v2795 = vunpack.c.l.b16 %v1165
      %v2796 = vpack.c.b16 %v2781, %v2780
      %v2797 = vpack.c.b16 %v2783, %v2782
      %v2798 = vpack.c.b16 %v2785, %v2784
      %v2799 = vpack.c.b16 %v2787, %v2786
      %v2800 = vpack.c.b16 %v2789, %v2788
      %v2801 = vpack.c.b16 %v2791, %v2790
      %v2802 = vpack.c.b16 %v2793, %v2792
      %v2803 = vpack.c.b16 %v2795, %v2794
      %2804 = vrot.lane.b32.xlu0 %v2796, 96
      %v2805 = vpop.permute.xlu0 %2804
      %2806 = vrot.lane.b32.xlu0 %v2797, 96
      %v2807 = vpop.permute.xlu0 %2806
      %2808 = vrot.lane.b32.xlu0 %v2798, 96
      %v2809 = vpop.permute.xlu0 %2808
      %2810 = vrot.lane.b32.xlu0 %v2799, 96
      %v2811 = vpop.permute.xlu0 %2810
      %2812 = vrot.lane.b32.xlu0 %v2800, 96
      %v2813 = vpop.permute.xlu0 %2812
      %2814 = vrot.lane.b32.xlu0 %v2801, 96
      %v2815 = vpop.permute.xlu0 %2814
      %2816 = vrot.lane.b32.xlu0 %v2802, 96
      %v2817 = vpop.permute.xlu0 %2816
      %2818 = vrot.lane.b32.xlu0 %v2803, 96
      %v2819 = vpop.permute.xlu0 %2818
      %v2836 = vunpack.c.l.b16 %v1360
      %v2837 = vunpack.c.l.b16 %v1361
      %v2838 = vunpack.c.l.b16 %v1362
      %v2839 = vunpack.c.l.b16 %v1363
      %v2840 = vunpack.c.l.b16 %v1364
      %v2841 = vunpack.c.l.b16 %v1365
      %v2842 = vunpack.c.l.b16 %v1366
      %v2843 = vunpack.c.l.b16 %v1367
      %v2844 = vunpack.c.l.b16 %v1368
      %v2845 = vunpack.c.l.b16 %v1369
      %v2846 = vunpack.c.l.b16 %v1370
      %v2847 = vunpack.c.l.b16 %v1371
      %v2848 = vunpack.c.l.b16 %v1372
      %v2849 = vunpack.c.l.b16 %v1373
      %v2850 = vunpack.c.l.b16 %v1374
      %v2851 = vunpack.c.l.b16 %v1375
      %v2852 = vpack.c.b16 %v2837, %v2836
      %v2853 = vpack.c.b16 %v2839, %v2838
      %v2854 = vpack.c.b16 %v2841, %v2840
      %v2855 = vpack.c.b16 %v2843, %v2842
      %v2856 = vpack.c.b16 %v2845, %v2844
      %v2857 = vpack.c.b16 %v2847, %v2846
      %v2858 = vpack.c.b16 %v2849, %v2848
      %v2859 = vpack.c.b16 %v2851, %v2850
      %v2876 = vunpack.c.l.b16 %v1570
      %v2877 = vunpack.c.l.b16 %v1571
      %v2878 = vunpack.c.l.b16 %v1572
      %v2879 = vunpack.c.l.b16 %v1573
      %v2880 = vunpack.c.l.b16 %v1574
      %v2881 = vunpack.c.l.b16 %v1575
      %v2882 = vunpack.c.l.b16 %v1576
      %v2883 = vunpack.c.l.b16 %v1577
      %v2884 = vunpack.c.l.b16 %v1578
      %v2885 = vunpack.c.l.b16 %v1579
      %v2886 = vunpack.c.l.b16 %v1580
      %v2887 = vunpack.c.l.b16 %v1581
      %v2888 = vunpack.c.l.b16 %v1582
      %v2889 = vunpack.c.l.b16 %v1583
      %v2890 = vunpack.c.l.b16 %v1584
      %v2891 = vunpack.c.l.b16 %v1585
      %v2892 = vpack.c.b16 %v2877, %v2876
      %v2893 = vpack.c.b16 %v2879, %v2878
      %v2894 = vpack.c.b16 %v2881, %v2880
      %v2895 = vpack.c.b16 %v2883, %v2882
      %v2896 = vpack.c.b16 %v2885, %v2884
      %v2897 = vpack.c.b16 %v2887, %v2886
      %v2898 = vpack.c.b16 %v2889, %v2888
      %v2899 = vpack.c.b16 %v2891, %v2890
      %2900 = vrot.lane.b32.xlu0 %v2892, 32
      %v2901 = vpop.permute.xlu0 %2900
      %2902 = vrot.lane.b32.xlu0 %v2893, 32
      %v2903 = vpop.permute.xlu0 %2902
      %2904 = vrot.lane.b32.xlu0 %v2894, 32
      %v2905 = vpop.permute.xlu0 %2904
      %2906 = vrot.lane.b32.xlu0 %v2895, 32
      %v2907 = vpop.permute.xlu0 %2906
      %2908 = vrot.lane.b32.xlu0 %v2896, 32
      %v2909 = vpop.permute.xlu0 %2908
      %2910 = vrot.lane.b32.xlu0 %v2897, 32
      %v2911 = vpop.permute.xlu0 %2910
      %2912 = vrot.lane.b32.xlu0 %v2898, 32
      %v2913 = vpop.permute.xlu0 %2912
      %2914 = vrot.lane.b32.xlu0 %v2899, 32
      %v2915 = vpop.permute.xlu0 %2914
      %v2932 = vunpack.c.l.b16 %v1586
      %v2933 = vunpack.c.l.b16 %v1587
      %v2934 = vunpack.c.l.b16 %v1588
      %v2935 = vunpack.c.l.b16 %v1589
      %v2936 = vunpack.c.l.b16 %v1590
      %v2937 = vunpack.c.l.b16 %v1591
      %v2938 = vunpack.c.l.b16 %v1592
      %v2939 = vunpack.c.l.b16 %v1593
      %v2940 = vunpack.c.l.b16 %v1594
      %v2941 = vunpack.c.l.b16 %v1595
      %v2942 = vunpack.c.l.b16 %v1596
      %v2943 = vunpack.c.l.b16 %v1597
      %v2944 = vunpack.c.l.b16 %v1598
      %v2945 = vunpack.c.l.b16 %v1599
      %v2946 = vunpack.c.l.b16 %v1600
      %v2947 = vunpack.c.l.b16 %v1601
      %v2948 = vpack.c.b16 %v2933, %v2932
      %v2949 = vpack.c.b16 %v2935, %v2934
      %v2950 = vpack.c.b16 %v2937, %v2936
      %v2951 = vpack.c.b16 %v2939, %v2938
      %v2952 = vpack.c.b16 %v2941, %v2940
      %v2953 = vpack.c.b16 %v2943, %v2942
      %v2954 = vpack.c.b16 %v2945, %v2944
      %v2955 = vpack.c.b16 %v2947, %v2946
      %2956 = vrot.lane.b32.xlu0 %v2948, 64
      %v2957 = vpop.permute.xlu0 %2956
      %2958 = vrot.lane.b32.xlu0 %v2949, 64
      %v2959 = vpop.permute.xlu0 %2958
      %2960 = vrot.lane.b32.xlu0 %v2950, 64
      %v2961 = vpop.permute.xlu0 %2960
      %2962 = vrot.lane.b32.xlu0 %v2951, 64
      %v2963 = vpop.permute.xlu0 %2962
      %2964 = vrot.lane.b32.xlu0 %v2952, 64
      %v2965 = vpop.permute.xlu0 %2964
      %2966 = vrot.lane.b32.xlu0 %v2953, 64
      %v2967 = vpop.permute.xlu0 %2966
      %2968 = vrot.lane.b32.xlu0 %v2954, 64
      %v2969 = vpop.permute.xlu0 %2968
      %2970 = vrot.lane.b32.xlu0 %v2955, 64
      %v2971 = vpop.permute.xlu0 %2970
      %v2988 = vunpack.c.l.b16 %v1796
      %v2989 = vunpack.c.l.b16 %v1797
      %v2990 = vunpack.c.l.b16 %v1798
      %v2991 = vunpack.c.l.b16 %v1799
      %v2992 = vunpack.c.l.b16 %v1800
      %v2993 = vunpack.c.l.b16 %v1801
      %v2994 = vunpack.c.l.b16 %v1802
      %v2995 = vunpack.c.l.b16 %v1803
      %v2996 = vunpack.c.l.b16 %v1804
      %v2997 = vunpack.c.l.b16 %v1805
      %v2998 = vunpack.c.l.b16 %v1806
      %v2999 = vunpack.c.l.b16 %v1807
      %v3000 = vunpack.c.l.b16 %v1808
      %v3001 = vunpack.c.l.b16 %v1809
      %v3002 = vunpack.c.l.b16 %v1810
      %v3003 = vunpack.c.l.b16 %v1811
      %v3004 = vpack.c.b16 %v2989, %v2988
      %v3005 = vpack.c.b16 %v2991, %v2990
      %v3006 = vpack.c.b16 %v2993, %v2992
      %v3007 = vpack.c.b16 %v2995, %v2994
      %v3008 = vpack.c.b16 %v2997, %v2996
      %v3009 = vpack.c.b16 %v2999, %v2998
      %v3010 = vpack.c.b16 %v3001, %v3000
      %v3011 = vpack.c.b16 %v3003, %v3002
      %3012 = vrot.lane.b32.xlu0 %v3004, 96
      %v3013 = vpop.permute.xlu0 %3012
      %3014 = vrot.lane.b32.xlu0 %v3005, 96
      %v3015 = vpop.permute.xlu0 %3014
      %3016 = vrot.lane.b32.xlu0 %v3006, 96
      %v3017 = vpop.permute.xlu0 %3016
      %3018 = vrot.lane.b32.xlu0 %v3007, 96
      %v3019 = vpop.permute.xlu0 %3018
      %3020 = vrot.lane.b32.xlu0 %v3008, 96
      %v3021 = vpop.permute.xlu0 %3020
      %3022 = vrot.lane.b32.xlu0 %v3009, 96
      %v3023 = vpop.permute.xlu0 %3022
      %3024 = vrot.lane.b32.xlu0 %v3010, 96
      %v3025 = vpop.permute.xlu0 %3024
      %3026 = vrot.lane.b32.xlu0 %v3011, 96
      %v3027 = vpop.permute.xlu0 %3026
      %v3044 = vunpack.c.l.b16 %v1956
      %v3045 = vunpack.c.l.b16 %v1957
      %v3046 = vunpack.c.l.b16 %v1958
      %v3047 = vunpack.c.l.b16 %v1959
      %v3048 = vunpack.c.l.b16 %v1960
      %v3049 = vunpack.c.l.b16 %v1961
      %v3050 = vunpack.c.l.b16 %v1962
      %v3051 = vunpack.c.l.b16 %v1963
      %v3052 = vunpack.c.l.b16 %v1964
      %v3053 = vunpack.c.l.b16 %v1965
      %v3054 = vunpack.c.l.b16 %v1966
      %v3055 = vunpack.c.l.b16 %v1967
      %v3056 = vunpack.c.l.b16 %v1968
      %v3057 = vunpack.c.l.b16 %v1969
      %v3058 = vunpack.c.l.b16 %v1970
      %v3059 = vunpack.c.l.b16 %v1971
      %v3060 = vpack.c.b16 %v3045, %v3044
      %v3061 = vpack.c.b16 %v3047, %v3046
      %v3062 = vpack.c.b16 %v3049, %v3048
      %v3063 = vpack.c.b16 %v3051, %v3050
      %v3064 = vpack.c.b16 %v3053, %v3052
      %v3065 = vpack.c.b16 %v3055, %v3054
      %v3066 = vpack.c.b16 %v3057, %v3056
      %v3067 = vpack.c.b16 %v3059, %v3058
      %v3084 = vunpack.c.l.b16 %v2116
      %v3085 = vunpack.c.l.b16 %v2117
      %v3086 = vunpack.c.l.b16 %v2118
      %v3087 = vunpack.c.l.b16 %v2119
      %v3088 = vunpack.c.l.b16 %v2120
      %v3089 = vunpack.c.l.b16 %v2121
      %v3090 = vunpack.c.l.b16 %v2122
      %v3091 = vunpack.c.l.b16 %v2123
      %v3092 = vunpack.c.l.b16 %v2124
      %v3093 = vunpack.c.l.b16 %v2125
      %v3094 = vunpack.c.l.b16 %v2126
      %v3095 = vunpack.c.l.b16 %v2127
      %v3096 = vunpack.c.l.b16 %v2128
      %v3097 = vunpack.c.l.b16 %v2129
      %v3098 = vunpack.c.l.b16 %v2130
      %v3099 = vunpack.c.l.b16 %v2131
      %v3100 = vpack.c.b16 %v3085, %v3084
      %v3101 = vpack.c.b16 %v3087, %v3086
      %v3102 = vpack.c.b16 %v3089, %v3088
      %v3103 = vpack.c.b16 %v3091, %v3090
      %v3104 = vpack.c.b16 %v3093, %v3092
      %v3105 = vpack.c.b16 %v3095, %v3094
      %v3106 = vpack.c.b16 %v3097, %v3096
      %v3107 = vpack.c.b16 %v3099, %v3098
      %3108 = vrot.lane.b32.xlu0 %v3100, 32
      %v3109 = vpop.permute.xlu0 %3108
      %3110 = vrot.lane.b32.xlu0 %v3101, 32
      %v3111 = vpop.permute.xlu0 %3110
      %3112 = vrot.lane.b32.xlu0 %v3102, 32
      %v3113 = vpop.permute.xlu0 %3112
      %3114 = vrot.lane.b32.xlu0 %v3103, 32
      %v3115 = vpop.permute.xlu0 %3114
      %3116 = vrot.lane.b32.xlu0 %v3104, 32
      %v3117 = vpop.permute.xlu0 %3116
      %3118 = vrot.lane.b32.xlu0 %v3105, 32
      %v3119 = vpop.permute.xlu0 %3118
      %3120 = vrot.lane.b32.xlu0 %v3106, 32
      %v3121 = vpop.permute.xlu0 %3120
      %3122 = vrot.lane.b32.xlu0 %v3107, 32
      %v3123 = vpop.permute.xlu0 %3122
      %v3140 = vunpack.c.l.b16 %v2276
      %v3141 = vunpack.c.l.b16 %v2277
      %v3142 = vunpack.c.l.b16 %v2278
      %v3143 = vunpack.c.l.b16 %v2279
      %v3144 = vunpack.c.l.b16 %v2280
      %v3145 = vunpack.c.l.b16 %v2281
      %v3146 = vunpack.c.l.b16 %v2282
      %v3147 = vunpack.c.l.b16 %v2283
      %v3148 = vunpack.c.l.b16 %v2284
      %v3149 = vunpack.c.l.b16 %v2285
      %v3150 = vunpack.c.l.b16 %v2286
      %v3151 = vunpack.c.l.b16 %v2287
      %v3152 = vunpack.c.l.b16 %v2288
      %v3153 = vunpack.c.l.b16 %v2289
      %v3154 = vunpack.c.l.b16 %v2290
      %v3155 = vunpack.c.l.b16 %v2291
      %v3156 = vpack.c.b16 %v3141, %v3140
      %v3157 = vpack.c.b16 %v3143, %v3142
      %v3158 = vpack.c.b16 %v3145, %v3144
      %v3159 = vpack.c.b16 %v3147, %v3146
      %v3160 = vpack.c.b16 %v3149, %v3148
      %v3161 = vpack.c.b16 %v3151, %v3150
      %v3162 = vpack.c.b16 %v3153, %v3152
      %v3163 = vpack.c.b16 %v3155, %v3154
      %3164 = vrot.lane.b32.xlu0 %v3156, 64
      %v3165 = vpop.permute.xlu0 %3164
      %3166 = vrot.lane.b32.xlu0 %v3157, 64
      %v3167 = vpop.permute.xlu0 %3166
      %3168 = vrot.lane.b32.xlu0 %v3158, 64
      %v3169 = vpop.permute.xlu0 %3168
      %3170 = vrot.lane.b32.xlu0 %v3159, 64
      %v3171 = vpop.permute.xlu0 %3170
      %3172 = vrot.lane.b32.xlu0 %v3160, 64
      %v3173 = vpop.permute.xlu0 %3172
      %3174 = vrot.lane.b32.xlu0 %v3161, 64
      %v3175 = vpop.permute.xlu0 %3174
      %3176 = vrot.lane.b32.xlu0 %v3162, 64
      %v3177 = vpop.permute.xlu0 %3176
      %3178 = vrot.lane.b32.xlu0 %v3163, 64
      %v3179 = vpop.permute.xlu0 %3178
      %v3196 = vunpack.c.l.b16 %v2436
      %v3197 = vunpack.c.l.b16 %v2437
      %v3198 = vunpack.c.l.b16 %v2438
      %v3199 = vunpack.c.l.b16 %v2439
      %v3200 = vunpack.c.l.b16 %v2440
      %v3201 = vunpack.c.l.b16 %v2441
      %v3202 = vunpack.c.l.b16 %v2442
      %v3203 = vunpack.c.l.b16 %v2443
      %v3204 = vunpack.c.l.b16 %v2444
      %v3205 = vunpack.c.l.b16 %v2445
      %v3206 = vunpack.c.l.b16 %v2446
      %v3207 = vunpack.c.l.b16 %v2447
      %v3208 = vunpack.c.l.b16 %v2448
      %v3209 = vunpack.c.l.b16 %v2449
      %v3210 = vunpack.c.l.b16 %v2450
      %v3211 = vunpack.c.l.b16 %v2451
      %v3212 = vpack.c.b16 %v3197, %v3196
      %v3213 = vpack.c.b16 %v3199, %v3198
      %v3214 = vpack.c.b16 %v3201, %v3200
      %v3215 = vpack.c.b16 %v3203, %v3202
      %v3216 = vpack.c.b16 %v3205, %v3204
      %v3217 = vpack.c.b16 %v3207, %v3206
      %v3218 = vpack.c.b16 %v3209, %v3208
      %v3219 = vpack.c.b16 %v3211, %v3210
      %3220 = vrot.lane.b32.xlu0 %v3212, 96
      %v3221 = vpop.permute.xlu0 %3220
      %3222 = vrot.lane.b32.xlu0 %v3213, 96
      %v3223 = vpop.permute.xlu0 %3222
      %3224 = vrot.lane.b32.xlu0 %v3214, 96
      %v3225 = vpop.permute.xlu0 %3224
      %3226 = vrot.lane.b32.xlu0 %v3215, 96
      %v3227 = vpop.permute.xlu0 %3226
      %3228 = vrot.lane.b32.xlu0 %v3216, 96
      %v3229 = vpop.permute.xlu0 %3228
      %3230 = vrot.lane.b32.xlu0 %v3217, 96
      %v3231 = vpop.permute.xlu0 %3230
      %3232 = vrot.lane.b32.xlu0 %v3218, 96
      %v3233 = vpop.permute.xlu0 %3232
      %3234 = vrot.lane.b32.xlu0 %v3219, 96
      %v3235 = vpop.permute.xlu0 %3234
      %v3252 = vunpack.c.l.b16 %v2596
      %v3253 = vunpack.c.l.b16 %v2597
      %v3254 = vunpack.c.l.b16 %v2598
      %v3255 = vunpack.c.l.b16 %v2599
      %v3256 = vunpack.c.l.b16 %v2600
      %v3257 = vunpack.c.l.b16 %v2601
      %v3258 = vunpack.c.l.b16 %v2602
      %v3259 = vunpack.c.l.b16 %v2603
      %v3260 = vunpack.c.l.b16 %v2604
      %v3261 = vunpack.c.l.b16 %v2605
      %v3262 = vunpack.c.l.b16 %v2606
      %v3263 = vunpack.c.l.b16 %v2607
      %v3264 = vunpack.c.l.b16 %v2608
      %v3265 = vunpack.c.l.b16 %v2609
      %v3266 = vunpack.c.l.b16 %v2610
      %v3267 = vunpack.c.l.b16 %v2611
      %v3268 = vpack.c.b16 %v3253, %v3252
      %v3269 = vpack.c.b16 %v3255, %v3254
      %v3270 = vpack.c.b16 %v3257, %v3256
      %v3271 = vpack.c.b16 %v3259, %v3258
      %v3272 = vpack.c.b16 %v3261, %v3260
      %v3273 = vpack.c.b16 %v3263, %v3262
      %v3274 = vpack.c.b16 %v3265, %v3264
      %v3275 = vpack.c.b16 %v3267, %v3266
      %vm3276 = vcmask 261120
      %v3279 = vsel %vm3276, %v2644, %v2693
      %v3282 = vsel %vm3276, %v2645, %v2695
      %v3285 = vsel %vm3276, %v2646, %v2697
      %v3288 = vsel %vm3276, %v2647, %v2699
      %v3291 = vsel %vm3276, %v2648, %v2701
      %v3294 = vsel %vm3276, %v2649, %v2703
      %v3297 = vsel %vm3276, %v2650, %v2705
      %v3300 = vsel %vm3276, %v2651, %v2707
      %vm3301 = vcmask 523264
      %v3303 = vsel %vm3301, %v3279, %v2749
      %v3305 = vsel %vm3301, %v3282, %v2751
      %v3307 = vsel %vm3301, %v3285, %v2753
      %v3309 = vsel %vm3301, %v3288, %v2755
      %v3311 = vsel %vm3301, %v3291, %v2757
      %v3313 = vsel %vm3301, %v3294, %v2759
      %v3315 = vsel %vm3301, %v3297, %v2761
      %v3317 = vsel %vm3301, %v3300, %v2763
      %vm3318 = vcmask 785408
      %v3320 = vsel %vm3318, %v3303, %v2805
      %v3323 = vsel %vm3318, %v3305, %v2807
      %v3326 = vsel %vm3318, %v3307, %v2809
      %v3329 = vsel %vm3318, %v3309, %v2811
      %v3332 = vsel %vm3318, %v3311, %v2813
      %v3335 = vsel %vm3318, %v3313, %v2815
      %v3338 = vsel %vm3318, %v3315, %v2817
      %v3341 = vsel %vm3318, %v3317, %v2819
      %v3345 = vsel %vm3276, %v2852, %v2901
      %v3348 = vsel %vm3276, %v2853, %v2903
      %v3351 = vsel %vm3276, %v2854, %v2905
      %v3354 = vsel %vm3276, %v2855, %v2907
      %v3357 = vsel %vm3276, %v2856, %v2909
      %v3360 = vsel %vm3276, %v2857, %v2911
      %v3363 = vsel %vm3276, %v2858, %v2913
      %v3366 = vsel %vm3276, %v2859, %v2915
      %v3368 = vsel %vm3301, %v3345, %v2957
      %v3370 = vsel %vm3301, %v3348, %v2959
      %v3372 = vsel %vm3301, %v3351, %v2961
      %v3374 = vsel %vm3301, %v3354, %v2963
      %v3376 = vsel %vm3301, %v3357, %v2965
      %v3378 = vsel %vm3301, %v3360, %v2967
      %v3380 = vsel %vm3301, %v3363, %v2969
      %v3382 = vsel %vm3301, %v3366, %v2971
      %v3384 = vsel %vm3318, %v3368, %v3013
      %v3387 = vsel %vm3318, %v3370, %v3015
      %v3390 = vsel %vm3318, %v3372, %v3017
      %v3393 = vsel %vm3318, %v3374, %v3019
      %v3396 = vsel %vm3318, %v3376, %v3021
      %v3399 = vsel %vm3318, %v3378, %v3023
      %v3402 = vsel %vm3318, %v3380, %v3025
      %v3405 = vsel %vm3318, %v3382, %v3027
      %v3409 = vsel %vm3276, %v3060, %v3109
      %v3412 = vsel %vm3276, %v3061, %v3111
      %v3415 = vsel %vm3276, %v3062, %v3113
      %v3418 = vsel %vm3276, %v3063, %v3115
      %v3421 = vsel %vm3276, %v3064, %v3117
      %v3424 = vsel %vm3276, %v3065, %v3119
      %v3427 = vsel %vm3276, %v3066, %v3121
      %v3430 = vsel %vm3276, %v3067, %v3123
      %v3432 = vsel %vm3301, %v3409, %v3165
      %v3434 = vsel %vm3301, %v3412, %v3167
      %v3436 = vsel %vm3301, %v3415, %v3169
      %v3438 = vsel %vm3301, %v3418, %v3171
      %v3440 = vsel %vm3301, %v3421, %v3173
      %v3442 = vsel %vm3301, %v3424, %v3175
      %v3444 = vsel %vm3301, %v3427, %v3177
      %v3446 = vsel %vm3301, %v3430, %v3179
      %v3448 = vsel %vm3318, %v3432, %v3221
      %v3451 = vsel %vm3318, %v3434, %v3223
      %v3454 = vsel %vm3318, %v3436, %v3225
      %v3457 = vsel %vm3318, %v3438, %v3227
      %v3460 = vsel %vm3318, %v3440, %v3229
      %v3463 = vsel %vm3318, %v3442, %v3231
      %v3466 = vsel %vm3318, %v3444, %v3233
      %v3469 = vsel %vm3318, %v3446, %v3235
      %v3471 = vld [vmem:[%s2] sm:$0xf]
      %v3472 = vld [vmem:[%s2 + $0x4] sm:$0xf]
      %v3473 = vld [vmem:[%s2 + $0x8] sm:$0xf]
      %v3474 = vld [vmem:[%s2 + $0xc] sm:$0xf]
      %v3475 = vld [vmem:[%s2 + $0x10] sm:$0xf]
      %v3476 = vld [vmem:[%s2 + $0x14] sm:$0xf]
      %v3477 = vld [vmem:[%s2 + $0x18] sm:$0xf]
      %v3478 = vld [vmem:[%s2 + $0x1c] sm:$0xf]
      %v3479 = vld [vmem:[%s2 + $0x20] sm:$0xf]
      %v3480 = vld [vmem:[%s2 + $0x24] sm:$0xf]
      %v3481 = vld [vmem:[%s2 + $0x28] sm:$0xf]
      %v3482 = vld [vmem:[%s2 + $0x2c] sm:$0xf]
      %v3483 = vld [vmem:[%s2 + $0x30] sm:$0xf]
      %v3484 = vld [vmem:[%s2 + $0x34] sm:$0xf]
      %v3485 = vld [vmem:[%s2 + $0x38] sm:$0xf]
      %v3486 = vld [vmem:[%s2 + $0x3c] sm:$0xf]
      %v3487 = vld [vmem:[%s2 + $0x40] sm:$0xf]
      %v3488 = vld [vmem:[%s2 + $0x44] sm:$0xf]
      %v3489 = vld [vmem:[%s2 + $0x48] sm:$0xf]
      %v3490 = vld [vmem:[%s2 + $0x4c] sm:$0xf]
      %v3491 = vld [vmem:[%s2 + $0x50] sm:$0xf]
      %v3492 = vld [vmem:[%s2 + $0x54] sm:$0xf]
      %v3493 = vld [vmem:[%s2 + $0x58] sm:$0xf]
      %v3494 = vld [vmem:[%s2 + $0x5c] sm:$0xf]
      %v3495 = vld [vmem:[%s2 + $0x60] sm:$0xf]
      %v3496 = vld [vmem:[%s2 + $0x64] sm:$0xf]
      %v3497 = vld [vmem:[%s2 + $0x68] sm:$0xf]
      %v3498 = vld [vmem:[%s2 + $0x6c] sm:$0xf]
      %v3499 = vld [vmem:[%s2 + $0x70] sm:$0xf]
      %v3500 = vld [vmem:[%s2 + $0x74] sm:$0xf]
      %v3501 = vld [vmem:[%s2 + $0x78] sm:$0xf]
      %v3502 = vld [vmem:[%s2 + $0x7c] sm:$0xf]
      %v3503 = vld [vmem:[%s2 + $0x80] sm:$0xf]
      %v3504 = vld [vmem:[%s2 + $0x84] sm:$0xf]
      %v3505 = vld [vmem:[%s2 + $0x88] sm:$0xf]
      %v3506 = vld [vmem:[%s2 + $0x8c] sm:$0xf]
      %v3507 = vld [vmem:[%s2 + $0x90] sm:$0xf]
      %v3508 = vld [vmem:[%s2 + $0x94] sm:$0xf]
      %v3509 = vld [vmem:[%s2 + $0x98] sm:$0xf]
      %v3510 = vld [vmem:[%s2 + $0x9c] sm:$0xf]
      %v3511 = vld [vmem:[%s2 + $0xa0] sm:$0xf]
      %v3512 = vld [vmem:[%s2 + $0xa4] sm:$0xf]
      %v3513 = vld [vmem:[%s2 + $0xa8] sm:$0xf]
      %v3514 = vld [vmem:[%s2 + $0xac] sm:$0xf]
      %v3515 = vld [vmem:[%s2 + $0xb0] sm:$0xf]
      %v3516 = vld [vmem:[%s2 + $0xb4] sm:$0xf]
      %v3517 = vld [vmem:[%s2 + $0xb8] sm:$0xf]
      %v3518 = vld [vmem:[%s2 + $0xbc] sm:$0xf]
      %v3519 = vld [vmem:[%s2 + $0xc0] sm:$0xf]
      %v3520 = vld [vmem:[%s2 + $0xc4] sm:$0xf]
      %v3521 = vld [vmem:[%s2 + $0xc8] sm:$0xf]
      %v3522 = vld [vmem:[%s2 + $0xcc] sm:$0xf]
      %v3523 = vld [vmem:[%s3] sm:$0x1]
      %v3525 = vperm.slane %v3523, 0
      %v3579 = vunpack.c.l.b16 %v3471
      %v3580 = vunpack.c.l.b16 %v3472
      %v3581 = vunpack.c.l.b16 %v3473
      %v3582 = vunpack.c.l.b16 %v3474
      %v3583 = vunpack.c.l.b16 %v3475
      %v3584 = vunpack.c.l.b16 %v3476
      %v3585 = vunpack.c.l.b16 %v3477
      %v3586 = vunpack.c.l.b16 %v3478
      %v3587 = vunpack.c.l.b16 %v3479
      %v3588 = vunpack.c.l.b16 %v3480
      %v3589 = vunpack.c.l.b16 %v3481
      %v3590 = vunpack.c.l.b16 %v3482
      %v3591 = vunpack.c.l.b16 %v3483
      %v3592 = vunpack.c.l.b16 %v3484
      %v3593 = vunpack.c.l.b16 %v3485
      %v3594 = vunpack.c.l.b16 %v3486
      %v3595 = vunpack.c.l.b16 %v3487
      %v3596 = vunpack.c.l.b16 %v3488
      %v3597 = vunpack.c.l.b16 %v3489
      %v3598 = vunpack.c.l.b16 %v3490
      %v3599 = vunpack.c.l.b16 %v3491
      %v3600 = vunpack.c.l.b16 %v3492
      %v3601 = vunpack.c.l.b16 %v3493
      %v3602 = vunpack.c.l.b16 %v3494
      %v3603 = vunpack.c.l.b16 %v3495
      %v3604 = vunpack.c.l.b16 %v3496
      %v3605 = vunpack.c.l.b16 %v3497
      %v3606 = vunpack.c.l.b16 %v3498
      %v3607 = vunpack.c.l.b16 %v3499
      %v3608 = vunpack.c.l.b16 %v3500
      %v3609 = vunpack.c.l.b16 %v3501
      %v3610 = vunpack.c.l.b16 %v3502
      %v3611 = vunpack.c.l.b16 %v3503
      %v3612 = vunpack.c.l.b16 %v3504
      %v3613 = vunpack.c.l.b16 %v3505
      %v3614 = vunpack.c.l.b16 %v3506
      %v3615 = vunpack.c.l.b16 %v3507
      %v3616 = vunpack.c.l.b16 %v3508
      %v3617 = vunpack.c.l.b16 %v3509
      %v3618 = vunpack.c.l.b16 %v3510
      %v3619 = vunpack.c.l.b16 %v3511
      %v3620 = vunpack.c.l.b16 %v3512
      %v3621 = vunpack.c.l.b16 %v3513
      %v3622 = vunpack.c.l.b16 %v3514
      %v3623 = vunpack.c.l.b16 %v3515
      %v3624 = vunpack.c.l.b16 %v3516
      %v3625 = vunpack.c.l.b16 %v3517
      %v3626 = vunpack.c.l.b16 %v3518
      %v3627 = vunpack.c.l.b16 %v3519
      %v3628 = vunpack.c.l.b16 %v3520
      %v3629 = vunpack.c.l.b16 %v3521
      %v3630 = vunpack.c.l.b16 %v3522
      %v3631 = vpack.c.b16 %v3580, %v3579
      %v3632 = vpack.c.b16 %v3582, %v3581
      %v3633 = vpack.c.b16 %v3584, %v3583
      %v3634 = vpack.c.b16 %v3586, %v3585
      %v3635 = vpack.c.b16 %v3588, %v3587
      %v3636 = vpack.c.b16 %v3590, %v3589
      %v3637 = vpack.c.b16 %v3592, %v3591
      %v3638 = vpack.c.b16 %v3594, %v3593
      %v3639 = vpack.c.b16 %v3596, %v3595
      %v3640 = vpack.c.b16 %v3598, %v3597
      %v3641 = vpack.c.b16 %v3600, %v3599
      %v3642 = vpack.c.b16 %v3602, %v3601
      %v3643 = vpack.c.b16 %v3604, %v3603
      %v3644 = vpack.c.b16 %v3606, %v3605
      %v3645 = vpack.c.b16 %v3608, %v3607
      %v3646 = vpack.c.b16 %v3610, %v3609
      %v3647 = vpack.c.b16 %v3612, %v3611
      %v3648 = vpack.c.b16 %v3614, %v3613
      %v3649 = vpack.c.b16 %v3616, %v3615
      %v3650 = vpack.c.b16 %v3618, %v3617
      %v3651 = vpack.c.b16 %v3620, %v3619
      %v3652 = vpack.c.b16 %v3622, %v3621
      %v3653 = vpack.c.b16 %v3624, %v3623
      %v3654 = vpack.c.b16 %v3626, %v3625
      %v3655 = vpack.c.b16 %v3628, %v3627
      %v3656 = vpack.c.b16 %v3630, %v3629
      %v3684 = vsel %vm3276, %v3268, 0
      %v3687 = vsel %vm3276, %v3269, 0
      %v3690 = vsel %vm3276, %v3270, 0
      %v3693 = vsel %vm3276, %v3271, 0
      %v3696 = vsel %vm3276, %v3272, 0
      %v3699 = vsel %vm3276, %v3273, 0
      %v3702 = vsel %vm3276, %v3274, 0
      %v3705 = vsel %vm3276, %v3275, 0
      %3707 = vmatpush.bf16.msra.mxu0 %v3638
      %3708 = vmatpush.bf16.msra.mxu0 %v3637
      %3709 = vmatpush.bf16.msra.mxu0 %v3636
      %3710 = vmatpush.bf16.msra.mxu0 %v3635
      %3711 = vmatpush.bf16.msra.mxu0 %v3634
      %3712 = vmatpush.bf16.msra.mxu0 %v3633
      %3713 = vmatpush.bf16.msra.mxu0 %v3632
      %3714 = vmatpush.bf16.msra.mxu0 %v3631
      %3715 = vmatmul.bf16.gmra.mxu0 %v3320
      %v3716 = vpop.f32.mrf.mxu0
      %v3717 = vadd.f32 %v3525, %v3716
      %v3718 = vpop.f32.mrf.mxu0
      %v3719 = vadd.f32 %v3525, %v3718
      %3720 = vmatmul.bf16.gmra.mxu0 %v3323
      %v3721 = vpop.f32.mrf.mxu0
      %v3722 = vadd.f32 %v3525, %v3721
      %v3723 = vpop.f32.mrf.mxu0
      %v3724 = vadd.f32 %v3525, %v3723
      %3725 = vmatmul.bf16.gmra.mxu0 %v3326
      %v3726 = vpop.f32.mrf.mxu0
      %v3727 = vadd.f32 %v3525, %v3726
      %v3728 = vpop.f32.mrf.mxu0
      %v3729 = vadd.f32 %v3525, %v3728
      %3730 = vmatmul.bf16.gmra.mxu0 %v3329
      %v3731 = vpop.f32.mrf.mxu0
      %v3732 = vadd.f32 %v3525, %v3731
      %v3733 = vpop.f32.mrf.mxu0
      %v3734 = vadd.f32 %v3525, %v3733
      %3735 = vmatmul.bf16.gmra.mxu0 %v3332
      %v3736 = vpop.f32.mrf.mxu0
      %v3737 = vadd.f32 %v3525, %v3736
      %v3738 = vpop.f32.mrf.mxu0
      %v3739 = vadd.f32 %v3525, %v3738
      %3740 = vmatmul.bf16.gmra.mxu0 %v3335
      %v3741 = vpop.f32.mrf.mxu0
      %v3742 = vadd.f32 %v3525, %v3741
      %v3743 = vpop.f32.mrf.mxu0
      %v3744 = vadd.f32 %v3525, %v3743
      %3745 = vmatmul.bf16.gmra.mxu0 %v3338
      %v3746 = vpop.f32.mrf.mxu0
      %v3747 = vadd.f32 %v3525, %v3746
      %v3748 = vpop.f32.mrf.mxu0
      %v3749 = vadd.f32 %v3525, %v3748
      %3750 = vmatmul.bf16.gmra.mxu0 %v3341
      %v3751 = vpop.f32.mrf.mxu0
      %v3752 = vadd.f32 %v3525, %v3751
      %v3753 = vpop.f32.mrf.mxu0
      %v3754 = vadd.f32 %v3525, %v3753
      %3755 = vdwg.mxu0
      %3756 = vmatpush.bf16.msra.mxu0 %v3646
      %3757 = vmatpush.bf16.msra.mxu0 %v3645
      %3758 = vmatpush.bf16.msra.mxu0 %v3644
      %3759 = vmatpush.bf16.msra.mxu0 %v3643
      %3760 = vmatpush.bf16.msra.mxu0 %v3642
      %3761 = vmatpush.bf16.msra.mxu0 %v3641
      %3762 = vmatpush.bf16.msra.mxu0 %v3640
      %3763 = vmatpush.bf16.msra.mxu0 %v3639
      %3764 = vmatmul.bf16.gmra.mxu0 %v3384
      %v3765 = vpop.f32.mrf.mxu0
      %v3766 = vadd.f32 %v3717, %v3765
      %v3767 = vpop.f32.mrf.mxu0
      %v3768 = vadd.f32 %v3719, %v3767
      %3769 = vmatmul.bf16.gmra.mxu0 %v3387
      %v3770 = vpop.f32.mrf.mxu0
      %v3771 = vadd.f32 %v3722, %v3770
      %v3772 = vpop.f32.mrf.mxu0
      %v3773 = vadd.f32 %v3724, %v3772
      %3774 = vmatmul.bf16.gmra.mxu0 %v3390
      %v3775 = vpop.f32.mrf.mxu0
      %v3776 = vadd.f32 %v3727, %v3775
      %v3777 = vpop.f32.mrf.mxu0
      %v3778 = vadd.f32 %v3729, %v3777
      %3779 = vmatmul.bf16.gmra.mxu0 %v3393
      %v3780 = vpop.f32.mrf.mxu0
      %v3781 = vadd.f32 %v3732, %v3780
      %v3782 = vpop.f32.mrf.mxu0
      %v3783 = vadd.f32 %v3734, %v3782
      %3784 = vmatmul.bf16.gmra.mxu0 %v3396
      %v3785 = vpop.f32.mrf.mxu0
      %v3786 = vadd.f32 %v3737, %v3785
      %v3787 = vpop.f32.mrf.mxu0
      %v3788 = vadd.f32 %v3739, %v3787
      %3789 = vmatmul.bf16.gmra.mxu0 %v3399
      %v3790 = vpop.f32.mrf.mxu0
      %v3791 = vadd.f32 %v3742, %v3790
      %v3792 = vpop.f32.mrf.mxu0
      %v3793 = vadd.f32 %v3744, %v3792
      %3794 = vmatmul.bf16.gmra.mxu0 %v3402
      %v3795 = vpop.f32.mrf.mxu0
      %v3796 = vadd.f32 %v3747, %v3795
      %v3797 = vpop.f32.mrf.mxu0
      %v3798 = vadd.f32 %v3749, %v3797
      %3799 = vmatmul.bf16.gmra.mxu0 %v3405
      %v3800 = vpop.f32.mrf.mxu0
      %v3801 = vadd.f32 %v3752, %v3800
      %v3802 = vpop.f32.mrf.mxu0
      %v3803 = vadd.f32 %v3754, %v3802
      %3804 = vdwg.mxu0
      %3805 = vmatpush.bf16.msra.mxu0 %v3654
      %3806 = vmatpush.bf16.msra.mxu0 %v3653
      %3807 = vmatpush.bf16.msra.mxu0 %v3652
      %3808 = vmatpush.bf16.msra.mxu0 %v3651
      %3809 = vmatpush.bf16.msra.mxu0 %v3650
      %3810 = vmatpush.bf16.msra.mxu0 %v3649
      %3811 = vmatpush.bf16.msra.mxu0 %v3648
      %3812 = vmatpush.bf16.msra.mxu0 %v3647
      %3813 = vmatmul.bf16.gmra.mxu0 %v3448
      %v3814 = vpop.f32.mrf.mxu0
      %v3815 = vadd.f32 %v3766, %v3814
      %v3816 = vpop.f32.mrf.mxu0
      %v3817 = vadd.f32 %v3768, %v3816
      %3818 = vmatmul.bf16.gmra.mxu0 %v3451
      %v3819 = vpop.f32.mrf.mxu0
      %v3820 = vadd.f32 %v3771, %v3819
      %v3821 = vpop.f32.mrf.mxu0
      %v3822 = vadd.f32 %v3773, %v3821
      %3823 = vmatmul.bf16.gmra.mxu0 %v3454
      %v3824 = vpop.f32.mrf.mxu0
      %v3825 = vadd.f32 %v3776, %v3824
      %v3826 = vpop.f32.mrf.mxu0
      %v3827 = vadd.f32 %v3778, %v3826
      %3828 = vmatmul.bf16.gmra.mxu0 %v3457
      %v3829 = vpop.f32.mrf.mxu0
      %v3830 = vadd.f32 %v3781, %v3829
      %v3831 = vpop.f32.mrf.mxu0
      %v3832 = vadd.f32 %v3783, %v3831
      %3833 = vmatmul.bf16.gmra.mxu0 %v3460
      %v3834 = vpop.f32.mrf.mxu0
      %v3835 = vadd.f32 %v3786, %v3834
      %v3836 = vpop.f32.mrf.mxu0
      %v3837 = vadd.f32 %v3788, %v3836
      %3838 = vmatmul.bf16.gmra.mxu0 %v3463
      %v3839 = vpop.f32.mrf.mxu0
      %v3840 = vadd.f32 %v3791, %v3839
      %v3841 = vpop.f32.mrf.mxu0
      %v3842 = vadd.f32 %v3793, %v3841
      %3843 = vmatmul.bf16.gmra.mxu0 %v3466
      %v3844 = vpop.f32.mrf.mxu0
      %v3845 = vadd.f32 %v3796, %v3844
      %v3846 = vpop.f32.mrf.mxu0
      %v3847 = vadd.f32 %v3798, %v3846
      %3848 = vmatmul.bf16.gmra.mxu0 %v3469
      %v3849 = vpop.f32.mrf.mxu0
      %v3850 = vadd.f32 %v3801, %v3849
      %v3851 = vpop.f32.mrf.mxu0
      %v3852 = vadd.f32 %v3803, %v3851
      %3853 = vdwg.mxu0
      %3854 = vmatpush.bf16.msra.mxu0 0
      %3855 = vmatpush.bf16.msra.mxu0 0
      %3856 = vmatpush.bf16.msra.mxu0 0
      %3857 = vmatpush.bf16.msra.mxu0 0
      %3858 = vmatpush.bf16.msra.mxu0 0
      %3859 = vmatpush.bf16.msra.mxu0 0
      %3860 = vmatpush.bf16.msra.mxu0 %v3656
      %3861 = vmatpush.bf16.msra.mxu0 %v3655
      %3862 = vmatmul.bf16.gmra.mxu0 %v3684
      %v3863 = vpop.f32.mrf.mxu0
      %v3864 = vadd.f32 %v3815, %v3863
      %v3865 = vpop.f32.mrf.mxu0
      %v3866 = vadd.f32 %v3817, %v3865
      %3867 = vmatmul.bf16.gmra.mxu0 %v3687
      %v3868 = vpop.f32.mrf.mxu0
      %v3869 = vadd.f32 %v3820, %v3868
      %v3870 = vpop.f32.mrf.mxu0
      %v3871 = vadd.f32 %v3822, %v3870
      %3872 = vmatmul.bf16.gmra.mxu0 %v3690
      %v3873 = vpop.f32.mrf.mxu0
      %v3874 = vadd.f32 %v3825, %v3873
      %v3875 = vpop.f32.mrf.mxu0
      %v3876 = vadd.f32 %v3827, %v3875
      %3877 = vmatmul.bf16.gmra.mxu0 %v3693
      %v3878 = vpop.f32.mrf.mxu0
      %v3879 = vadd.f32 %v3830, %v3878
      %v3880 = vpop.f32.mrf.mxu0
      %v3881 = vadd.f32 %v3832, %v3880
      %3882 = vmatmul.bf16.gmra.mxu0 %v3696
      %v3883 = vpop.f32.mrf.mxu0
      %v3884 = vadd.f32 %v3835, %v3883
      %v3885 = vpop.f32.mrf.mxu0
      %v3886 = vadd.f32 %v3837, %v3885
      %3887 = vmatmul.bf16.gmra.mxu0 %v3699
      %v3888 = vpop.f32.mrf.mxu0
      %v3889 = vadd.f32 %v3840, %v3888
      %v3890 = vpop.f32.mrf.mxu0
      %v3891 = vadd.f32 %v3842, %v3890
      %3892 = vmatmul.bf16.gmra.mxu0 %v3702
      %v3893 = vpop.f32.mrf.mxu0
      %v3894 = vadd.f32 %v3845, %v3893
      %v3895 = vpop.f32.mrf.mxu0
      %v3896 = vadd.f32 %v3847, %v3895
      %3897 = vmatmul.bf16.gmra.mxu0 %v3705
      %v3898 = vpop.f32.mrf.mxu0
      %v3899 = vadd.f32 %v3850, %v3898
      %v3900 = vpop.f32.mrf.mxu0
      %v3901 = vadd.f32 %v3852, %v3900
      %3902 = vdwg.mxu0
      %v3903 = vmax.f32 %v3864, 0.0
      %v3904 = vmax.f32 %v3866, 0.0
      %v3905 = vmax.f32 %v3869, 0.0
      %v3906 = vmax.f32 %v3871, 0.0
      %v3907 = vmax.f32 %v3874, 0.0
      %v3908 = vmax.f32 %v3876, 0.0
      %v3909 = vmax.f32 %v3879, 0.0
      %v3910 = vmax.f32 %v3881, 0.0
      %v3911 = vmax.f32 %v3884, 0.0
      %v3912 = vmax.f32 %v3886, 0.0
      %v3913 = vmax.f32 %v3889, 0.0
      %v3914 = vmax.f32 %v3891, 0.0
      %v3915 = vmax.f32 %v3894, 0.0
      %v3916 = vmax.f32 %v3896, 0.0
      %v3917 = vmax.f32 %v3899, 0.0
      %v3918 = vmax.f32 %v3901, 0.0
      %v3920 = vrot.slane %v3918, 2
      %v3937 = vrot.slane %v3903, 2
      %v3938 = vrot.slane %v3904, 2
      %v3939 = vsel %vm328, %v3937, %v3938
      %v3940 = vrot.slane %v3905, 2
      %v3941 = vsel %vm328, %v3938, %v3940
      %v3942 = vrot.slane %v3906, 2
      %v3943 = vsel %vm328, %v3940, %v3942
      %v3944 = vrot.slane %v3907, 2
      %v3945 = vsel %vm328, %v3942, %v3944
      %v3946 = vrot.slane %v3908, 2
      %v3947 = vsel %vm328, %v3944, %v3946
      %v3948 = vrot.slane %v3909, 2
      %v3949 = vsel %vm328, %v3946, %v3948
      %v3950 = vrot.slane %v3910, 2
      %v3951 = vsel %vm328, %v3948, %v3950
      %v3952 = vrot.slane %v3911, 2
      %v3953 = vsel %vm328, %v3950, %v3952
      %v3954 = vrot.slane %v3912, 2
      %v3955 = vsel %vm328, %v3952, %v3954
      %v3956 = vrot.slane %v3913, 2
      %v3957 = vsel %vm328, %v3954, %v3956
      %v3958 = vrot.slane %v3914, 2
      %v3959 = vsel %vm328, %v3956, %v3958
      %v3960 = vrot.slane %v3915, 2
      %v3961 = vsel %vm328, %v3958, %v3960
      %v3962 = vrot.slane %v3916, 2
      %v3963 = vsel %vm328, %v3960, %v3962
      %v3964 = vrot.slane %v3917, 2
      %v3965 = vsel %vm328, %v3962, %v3964
      %v3966 = vsel %vm328, %v3964, %v3920
      %v3983 = vsel %vm328, %v3920, %v3937
      %v3984 = vsel %vm488, %v3983, 0.0
      %v3985 = vsel %vm489, %v3939, 0.0
      %v3986 = vsel %vm490, %v3941, 0.0
      %v3987 = vsel %vm491, %v3943, 0.0
      %v3988 = vsel %vm492, %v3945, 0.0
      %v3989 = vsel %vm493, %v3947, 0.0
      %v3990 = vsel %vm494, %v3949, 0.0
      %v3991 = vsel %vm495, %v3951, 0.0
      %v3992 = vsel %vm496, %v3953, 0.0
      %v3993 = vsel %vm497, %v3955, 0.0
      %v3994 = vsel %vm498, %v3957, 0.0
      %v3995 = vsel %vm499, %v3959, 0.0
      %v3996 = vsel %vm500, %v3961, 0.0
      %v3997 = vsel %vm501, %v3963, 0.0
      %v3998 = vsel %vm502, %v3965, 0.0
      %v3999 = vsel %vm503, %v3966, 0.0
      %v4000 = vpack.c.bf16 %v3984, %v3984
      %v4001 = vpack.c.bf16 %v3985, %v3985
      %v4002 = vpack.c.bf16 %v3986, %v3986
      %v4003 = vpack.c.bf16 %v3987, %v3987
      %v4004 = vpack.c.bf16 %v3988, %v3988
      %v4005 = vpack.c.bf16 %v3989, %v3989
      %v4006 = vpack.c.bf16 %v3990, %v3990
      %v4007 = vpack.c.bf16 %v3991, %v3991
      %v4008 = vpack.c.bf16 %v3992, %v3992
      %v4009 = vpack.c.bf16 %v3993, %v3993
      %v4010 = vpack.c.bf16 %v3994, %v3994
      %v4011 = vpack.c.bf16 %v3995, %v3995
      %v4012 = vpack.c.bf16 %v3996, %v3996
      %v4013 = vpack.c.bf16 %v3997, %v3997
      %v4014 = vpack.c.bf16 %v3998, %v3998
      %v4015 = vpack.c.bf16 %v3999, %v3999
      %v4016 = vrot.slane %v3918, 3
      %v4018 = vrot.slane %v3903, 3
      %v4019 = vrot.slane %v3904, 3
      %v4020 = vsel %vm538, %v4018, %v4019
      %v4021 = vrot.slane %v3905, 3
      %v4022 = vsel %vm538, %v4019, %v4021
      %v4023 = vrot.slane %v3906, 3
      %v4024 = vsel %vm538, %v4021, %v4023
      %v4025 = vrot.slane %v3907, 3
      %v4026 = vsel %vm538, %v4023, %v4025
      %v4027 = vrot.slane %v3908, 3
      %v4028 = vsel %vm538, %v4025, %v4027
      %v4029 = vrot.slane %v3909, 3
      %v4030 = vsel %vm538, %v4027, %v4029
      %v4031 = vrot.slane %v3910, 3
      %v4032 = vsel %vm538, %v4029, %v4031
      %v4033 = vrot.slane %v3911, 3
      %v4034 = vsel %vm538, %v4031, %v4033
      %v4035 = vrot.slane %v3912, 3
      %v4036 = vsel %vm538, %v4033, %v4035
      %v4037 = vrot.slane %v3913, 3
      %v4038 = vsel %vm538, %v4035, %v4037
      %v4039 = vrot.slane %v3914, 3
      %v4040 = vsel %vm538, %v4037, %v4039
      %v4041 = vrot.slane %v3915, 3
      %v4042 = vsel %vm538, %v4039, %v4041
      %v4043 = vrot.slane %v3916, 3
      %v4044 = vsel %vm538, %v4041, %v4043
      %v4045 = vrot.slane %v3917, 3
      %v4046 = vsel %vm538, %v4043, %v4045
      %v4047 = vsel %vm538, %v4045, %v4016
      %v4064 = vsel %vm538, %v4016, %v4018
      %v4065 = vsel %vm698, %v4064, 0.0
      %v4066 = vsel %vm699, %v4020, 0.0
      %v4067 = vsel %vm700, %v4022, 0.0
      %v4068 = vsel %vm701, %v4024, 0.0
      %v4069 = vsel %vm702, %v4026, 0.0
      %v4070 = vsel %vm703, %v4028, 0.0
      %v4071 = vsel %vm704, %v4030, 0.0
      %v4072 = vsel %vm705, %v4032, 0.0
      %v4073 = vsel %vm706, %v4034, 0.0
      %v4074 = vsel %vm707, %v4036, 0.0
      %v4075 = vsel %vm708, %v4038, 0.0
      %v4076 = vsel %vm709, %v4040, 0.0
      %v4077 = vsel %vm710, %v4042, 0.0
      %v4078 = vsel %vm711, %v4044, 0.0
      %v4079 = vsel %vm712, %v4046, 0.0
      %v4080 = vsel %vm713, %v4047, 0.0
      %v4081 = vpack.c.bf16 %v4065, %v4065
      %v4082 = vpack.c.bf16 %v4066, %v4066
      %v4083 = vpack.c.bf16 %v4067, %v4067
      %v4084 = vpack.c.bf16 %v4068, %v4068
      %v4085 = vpack.c.bf16 %v4069, %v4069
      %v4086 = vpack.c.bf16 %v4070, %v4070
      %v4087 = vpack.c.bf16 %v4071, %v4071
      %v4088 = vpack.c.bf16 %v4072, %v4072
      %v4089 = vpack.c.bf16 %v4073, %v4073
      %v4090 = vpack.c.bf16 %v4074, %v4074
      %v4091 = vpack.c.bf16 %v4075, %v4075
      %v4092 = vpack.c.bf16 %v4076, %v4076
      %v4093 = vpack.c.bf16 %v4077, %v4077
      %v4094 = vpack.c.bf16 %v4078, %v4078
      %v4095 = vpack.c.bf16 %v4079, %v4079
      %v4096 = vpack.c.bf16 %v4080, %v4080
      %v4097 = vrot.slane %v3918, 4
      %v4099 = vrot.slane %v3903, 4
      %v4100 = vrot.slane %v3904, 4
      %v4101 = vsel %vm748, %v4099, %v4100
      %v4102 = vrot.slane %v3905, 4
      %v4103 = vsel %vm748, %v4100, %v4102
      %v4104 = vrot.slane %v3906, 4
      %v4105 = vsel %vm748, %v4102, %v4104
      %v4106 = vrot.slane %v3907, 4
      %v4107 = vsel %vm748, %v4104, %v4106
      %v4108 = vrot.slane %v3908, 4
      %v4109 = vsel %vm748, %v4106, %v4108
      %v4110 = vrot.slane %v3909, 4
      %v4111 = vsel %vm748, %v4108, %v4110
      %v4112 = vrot.slane %v3910, 4
      %v4113 = vsel %vm748, %v4110, %v4112
      %v4114 = vrot.slane %v3911, 4
      %v4115 = vsel %vm748, %v4112, %v4114
      %v4116 = vrot.slane %v3912, 4
      %v4117 = vsel %vm748, %v4114, %v4116
      %v4118 = vrot.slane %v3913, 4
      %v4119 = vsel %vm748, %v4116, %v4118
      %v4120 = vrot.slane %v3914, 4
      %v4121 = vsel %vm748, %v4118, %v4120
      %v4122 = vrot.slane %v3915, 4
      %v4123 = vsel %vm748, %v4120, %v4122
      %v4124 = vrot.slane %v3916, 4
      %v4125 = vsel %vm748, %v4122, %v4124
      %v4126 = vrot.slane %v3917, 4
      %v4127 = vsel %vm748, %v4124, %v4126
      %v4128 = vsel %vm748, %v4126, %v4097
      %v4145 = vsel %vm748, %v4097, %v4099
      %v4146 = vsel %vm908, %v4145, 0.0
      %v4147 = vsel %vm909, %v4101, 0.0
      %v4148 = vsel %vm910, %v4103, 0.0
      %v4149 = vsel %vm911, %v4105, 0.0
      %v4150 = vsel %vm912, %v4107, 0.0
      %v4151 = vsel %vm913, %v4109, 0.0
      %v4152 = vsel %vm914, %v4111, 0.0
      %v4153 = vsel %vm915, %v4113, 0.0
      %v4154 = vsel %vm916, %v4115, 0.0
      %v4155 = vsel %vm917, %v4117, 0.0
      %v4156 = vsel %vm918, %v4119, 0.0
      %v4157 = vsel %vm919, %v4121, 0.0
      %v4158 = vsel %vm920, %v4123, 0.0
      %v4159 = vsel %vm921, %v4125, 0.0
      %v4160 = vsel %vm922, %v4127, 0.0
      %v4161 = vsel %vm923, %v4128, 0.0
      %v4162 = vpack.c.bf16 %v4146, %v4146
      %v4163 = vpack.c.bf16 %v4147, %v4147
      %v4164 = vpack.c.bf16 %v4148, %v4148
      %v4165 = vpack.c.bf16 %v4149, %v4149
      %v4166 = vpack.c.bf16 %v4150, %v4150
      %v4167 = vpack.c.bf16 %v4151, %v4151
      %v4168 = vpack.c.bf16 %v4152, %v4152
      %v4169 = vpack.c.bf16 %v4153, %v4153
      %v4170 = vpack.c.bf16 %v4154, %v4154
      %v4171 = vpack.c.bf16 %v4155, %v4155
      %v4172 = vpack.c.bf16 %v4156, %v4156
      %v4173 = vpack.c.bf16 %v4157, %v4157
      %v4174 = vpack.c.bf16 %v4158, %v4158
      %v4175 = vpack.c.bf16 %v4159, %v4159
      %v4176 = vpack.c.bf16 %v4160, %v4160
      %v4177 = vpack.c.bf16 %v4161, %v4161
      %v4178 = vrot.slane %v3918, 5
      %v4180 = vrot.slane %v3903, 5
      %v4181 = vrot.slane %v3904, 5
      %v4182 = vsel %vm958, %v4180, %v4181
      %v4183 = vrot.slane %v3905, 5
      %v4184 = vsel %vm958, %v4181, %v4183
      %v4185 = vrot.slane %v3906, 5
      %v4186 = vsel %vm958, %v4183, %v4185
      %v4187 = vrot.slane %v3907, 5
      %v4188 = vsel %vm958, %v4185, %v4187
      %v4189 = vrot.slane %v3908, 5
      %v4190 = vsel %vm958, %v4187, %v4189
      %v4191 = vrot.slane %v3909, 5
      %v4192 = vsel %vm958, %v4189, %v4191
      %v4193 = vrot.slane %v3910, 5
      %v4194 = vsel %vm958, %v4191, %v4193
      %v4195 = vrot.slane %v3911, 5
      %v4196 = vsel %vm958, %v4193, %v4195
      %v4197 = vrot.slane %v3912, 5
      %v4198 = vsel %vm958, %v4195, %v4197
      %v4199 = vrot.slane %v3913, 5
      %v4200 = vsel %vm958, %v4197, %v4199
      %v4201 = vrot.slane %v3914, 5
      %v4202 = vsel %vm958, %v4199, %v4201
      %v4203 = vrot.slane %v3915, 5
      %v4204 = vsel %vm958, %v4201, %v4203
      %v4205 = vrot.slane %v3916, 5
      %v4206 = vsel %vm958, %v4203, %v4205
      %v4207 = vrot.slane %v3917, 5
      %v4208 = vsel %vm958, %v4205, %v4207
      %v4209 = vsel %vm958, %v4207, %v4178
      %v4226 = vsel %vm958, %v4178, %v4180
      %v4227 = vsel %vm1118, %v4226, 0.0
      %v4228 = vsel %vm1119, %v4182, 0.0
      %v4229 = vsel %vm1120, %v4184, 0.0
      %v4230 = vsel %vm1121, %v4186, 0.0
      %v4231 = vsel %vm1122, %v4188, 0.0
      %v4232 = vsel %vm1123, %v4190, 0.0
      %v4233 = vsel %vm1124, %v4192, 0.0
      %v4234 = vsel %vm1125, %v4194, 0.0
      %v4235 = vsel %vm1126, %v4196, 0.0
      %v4236 = vsel %vm1127, %v4198, 0.0
      %v4237 = vsel %vm1128, %v4200, 0.0
      %v4238 = vsel %vm1129, %v4202, 0.0
      %v4239 = vsel %vm1130, %v4204, 0.0
      %v4240 = vsel %vm1131, %v4206, 0.0
      %v4241 = vsel %vm1132, %v4208, 0.0
      %v4242 = vsel %vm1133, %v4209, 0.0
      %v4243 = vpack.c.bf16 %v4227, %v4227
      %v4244 = vpack.c.bf16 %v4228, %v4228
      %v4245 = vpack.c.bf16 %v4229, %v4229
      %v4246 = vpack.c.bf16 %v4230, %v4230
      %v4247 = vpack.c.bf16 %v4231, %v4231
      %v4248 = vpack.c.bf16 %v4232, %v4232
      %v4249 = vpack.c.bf16 %v4233, %v4233
      %v4250 = vpack.c.bf16 %v4234, %v4234
      %v4251 = vpack.c.bf16 %v4235, %v4235
      %v4252 = vpack.c.bf16 %v4236, %v4236
      %v4253 = vpack.c.bf16 %v4237, %v4237
      %v4254 = vpack.c.bf16 %v4238, %v4238
      %v4255 = vpack.c.bf16 %v4239, %v4239
      %v4256 = vpack.c.bf16 %v4240, %v4240
      %v4257 = vpack.c.bf16 %v4241, %v4241
      %v4258 = vpack.c.bf16 %v4242, %v4242
      %v4259 = vrot.slane %v3918, 6
      %v4261 = vrot.slane %v3903, 6
      %v4262 = vrot.slane %v3904, 6
      %v4263 = vsel %vm1168, %v4261, %v4262
      %v4264 = vrot.slane %v3905, 6
      %v4265 = vsel %vm1168, %v4262, %v4264
      %v4266 = vrot.slane %v3906, 6
      %v4267 = vsel %vm1168, %v4264, %v4266
      %v4268 = vrot.slane %v3907, 6
      %v4269 = vsel %vm1168, %v4266, %v4268
      %v4270 = vrot.slane %v3908, 6
      %v4271 = vsel %vm1168, %v4268, %v4270
      %v4272 = vrot.slane %v3909, 6
      %v4273 = vsel %vm1168, %v4270, %v4272
      %v4274 = vrot.slane %v3910, 6
      %v4275 = vsel %vm1168, %v4272, %v4274
      %v4276 = vrot.slane %v3911, 6
      %v4277 = vsel %vm1168, %v4274, %v4276
      %v4278 = vrot.slane %v3912, 6
      %v4279 = vsel %vm1168, %v4276, %v4278
      %v4280 = vrot.slane %v3913, 6
      %v4281 = vsel %vm1168, %v4278, %v4280
      %v4282 = vrot.slane %v3914, 6
      %v4283 = vsel %vm1168, %v4280, %v4282
      %v4284 = vrot.slane %v3915, 6
      %v4285 = vsel %vm1168, %v4282, %v4284
      %v4286 = vrot.slane %v3916, 6
      %v4287 = vsel %vm1168, %v4284, %v4286
      %v4288 = vrot.slane %v3917, 6
      %v4289 = vsel %vm1168, %v4286, %v4288
      %v4290 = vsel %vm1168, %v4288, %v4259
      %v4307 = vsel %vm1168, %v4259, %v4261
      %v4308 = vsel %vm1328, %v4307, 0.0
      %v4309 = vsel %vm1329, %v4263, 0.0
      %v4310 = vsel %vm1330, %v4265, 0.0
      %v4311 = vsel %vm1331, %v4267, 0.0
      %v4312 = vsel %vm1332, %v4269, 0.0
      %v4313 = vsel %vm1333, %v4271, 0.0
      %v4314 = vsel %vm1334, %v4273, 0.0
      %v4315 = vsel %vm1335, %v4275, 0.0
      %v4316 = vsel %vm1336, %v4277, 0.0
      %v4317 = vsel %vm1337, %v4279, 0.0
      %v4318 = vsel %vm1338, %v4281, 0.0
      %v4319 = vsel %vm1339, %v4283, 0.0
      %v4320 = vsel %vm1340, %v4285, 0.0
      %v4321 = vsel %vm1341, %v4287, 0.0
      %v4322 = vsel %vm1342, %v4289, 0.0
      %v4323 = vsel %vm1343, %v4290, 0.0
      %v4324 = vpack.c.bf16 %v4308, %v4308
      %v4325 = vpack.c.bf16 %v4309, %v4309
      %v4326 = vpack.c.bf16 %v4310, %v4310
      %v4327 = vpack.c.bf16 %v4311, %v4311
      %v4328 = vpack.c.bf16 %v4312, %v4312
      %v4329 = vpack.c.bf16 %v4313, %v4313
      %v4330 = vpack.c.bf16 %v4314, %v4314
      %v4331 = vpack.c.bf16 %v4315, %v4315
      %v4332 = vpack.c.bf16 %v4316, %v4316
      %v4333 = vpack.c.bf16 %v4317, %v4317
      %v4334 = vpack.c.bf16 %v4318, %v4318
      %v4335 = vpack.c.bf16 %v4319, %v4319
      %v4336 = vpack.c.bf16 %v4320, %v4320
      %v4337 = vpack.c.bf16 %v4321, %v4321
      %v4338 = vpack.c.bf16 %v4322, %v4322
      %v4339 = vpack.c.bf16 %v4323, %v4323
      %v4340 = vrot.slane %v3918, 7
      %v4342 = vrot.slane %v3903, 7
      %v4343 = vrot.slane %v3904, 7
      %v4344 = vsel %vm1378, %v4342, %v4343
      %v4345 = vrot.slane %v3905, 7
      %v4346 = vsel %vm1378, %v4343, %v4345
      %v4347 = vrot.slane %v3906, 7
      %v4348 = vsel %vm1378, %v4345, %v4347
      %v4349 = vrot.slane %v3907, 7
      %v4350 = vsel %vm1378, %v4347, %v4349
      %v4351 = vrot.slane %v3908, 7
      %v4352 = vsel %vm1378, %v4349, %v4351
      %v4353 = vrot.slane %v3909, 7
      %v4354 = vsel %vm1378, %v4351, %v4353
      %v4355 = vrot.slane %v3910, 7
      %v4356 = vsel %vm1378, %v4353, %v4355
      %v4357 = vrot.slane %v3911, 7
      %v4358 = vsel %vm1378, %v4355, %v4357
      %v4359 = vrot.slane %v3912, 7
      %v4360 = vsel %vm1378, %v4357, %v4359
      %v4361 = vrot.slane %v3913, 7
      %v4362 = vsel %vm1378, %v4359, %v4361
      %v4363 = vrot.slane %v3914, 7
      %v4364 = vsel %vm1378, %v4361, %v4363
      %v4365 = vrot.slane %v3915, 7
      %v4366 = vsel %vm1378, %v4363, %v4365
      %v4367 = vrot.slane %v3916, 7
      %v4368 = vsel %vm1378, %v4365, %v4367
      %v4369 = vrot.slane %v3917, 7
      %v4370 = vsel %vm1378, %v4367, %v4369
      %v4371 = vsel %vm1378, %v4369, %v4340
      %v4388 = vsel %vm1378, %v4340, %v4342
      %v4389 = vsel %vm1538, %v4388, 0.0
      %v4390 = vsel %vm1539, %v4344, 0.0
      %v4391 = vsel %vm1540, %v4346, 0.0
      %v4392 = vsel %vm1541, %v4348, 0.0
      %v4393 = vsel %vm1542, %v4350, 0.0
      %v4394 = vsel %vm1543, %v4352, 0.0
      %v4395 = vsel %vm1544, %v4354, 0.0
      %v4396 = vsel %vm1545, %v4356, 0.0
      %v4397 = vsel %vm1546, %v4358, 0.0
      %v4398 = vsel %vm1547, %v4360, 0.0
      %v4399 = vsel %vm1548, %v4362, 0.0
      %v4400 = vsel %vm1549, %v4364, 0.0
      %v4401 = vsel %vm1550, %v4366, 0.0
      %v4402 = vsel %vm1551, %v4368, 0.0
      %v4403 = vsel %vm1552, %v4370, 0.0
      %v4404 = vsel %vm1553, %v4371, 0.0
      %v4405 = vpack.c.bf16 %v4389, %v4389
      %v4406 = vpack.c.bf16 %v4390, %v4390
      %v4407 = vpack.c.bf16 %v4391, %v4391
      %v4408 = vpack.c.bf16 %v4392, %v4392
      %v4409 = vpack.c.bf16 %v4393, %v4393
      %v4410 = vpack.c.bf16 %v4394, %v4394
      %v4411 = vpack.c.bf16 %v4395, %v4395
      %v4412 = vpack.c.bf16 %v4396, %v4396
      %v4413 = vpack.c.bf16 %v4397, %v4397
      %v4414 = vpack.c.bf16 %v4398, %v4398
      %v4415 = vpack.c.bf16 %v4399, %v4399
      %v4416 = vpack.c.bf16 %v4400, %v4400
      %v4417 = vpack.c.bf16 %v4401, %v4401
      %v4418 = vpack.c.bf16 %v4402, %v4402
      %v4419 = vpack.c.bf16 %v4403, %v4403
      %v4420 = vpack.c.bf16 %v4404, %v4404
      %v4421 = vpack.c.bf16 %v3903, %v3903
      %v4422 = vpack.c.bf16 %v3904, %v3904
      %v4423 = vpack.c.bf16 %v3905, %v3905
      %v4424 = vpack.c.bf16 %v3906, %v3906
      %v4425 = vpack.c.bf16 %v3907, %v3907
      %v4426 = vpack.c.bf16 %v3908, %v3908
      %v4427 = vpack.c.bf16 %v3909, %v3909
      %v4428 = vpack.c.bf16 %v3910, %v3910
      %v4429 = vpack.c.bf16 %v3911, %v3911
      %v4430 = vpack.c.bf16 %v3912, %v3912
      %v4431 = vpack.c.bf16 %v3913, %v3913
      %v4432 = vpack.c.bf16 %v3914, %v3914
      %v4433 = vpack.c.bf16 %v3915, %v3915
      %v4434 = vpack.c.bf16 %v3916, %v3916
      %v4435 = vpack.c.bf16 %v3917, %v3917
      %v4436 = vpack.c.bf16 %v3918, %v3918
      %v4437 = vrot.slane %v3903, 1
      %v4438 = vrot.slane %v3904, 1
      %v4439 = vsel %vm1602, %v4437, %v4438
      %v4440 = vrot.slane %v3905, 1
      %v4441 = vsel %vm1602, %v4438, %v4440
      %v4442 = vrot.slane %v3906, 1
      %v4443 = vsel %vm1602, %v4440, %v4442
      %v4444 = vrot.slane %v3907, 1
      %v4445 = vsel %vm1602, %v4442, %v4444
      %v4446 = vrot.slane %v3908, 1
      %v4447 = vsel %vm1602, %v4444, %v4446
      %v4448 = vrot.slane %v3909, 1
      %v4449 = vsel %vm1602, %v4446, %v4448
      %v4450 = vrot.slane %v3910, 1
      %v4451 = vsel %vm1602, %v4448, %v4450
      %v4452 = vrot.slane %v3911, 1
      %v4453 = vsel %vm1602, %v4450, %v4452
      %v4454 = vrot.slane %v3912, 1
      %v4455 = vsel %vm1602, %v4452, %v4454
      %v4456 = vrot.slane %v3913, 1
      %v4457 = vsel %vm1602, %v4454, %v4456
      %v4458 = vrot.slane %v3914, 1
      %v4459 = vsel %vm1602, %v4456, %v4458
      %v4460 = vrot.slane %v3915, 1
      %v4461 = vsel %vm1602, %v4458, %v4460
      %v4462 = vrot.slane %v3916, 1
      %v4463 = vsel %vm1602, %v4460, %v4462
      %v4464 = vrot.slane %v3917, 1
      %v4465 = vsel %vm1602, %v4462, %v4464
      %v4466 = vrot.slane %v3918, 1
      %v4467 = vsel %vm1602, %v4464, %v4466
      %v4485 = vsel %vm1602, %v4466, %v4437
      %v4486 = vsel %vm1764, %v4439, 0.0
      %v4487 = vsel %vm1765, %v4441, 0.0
      %v4488 = vsel %vm1766, %v4443, 0.0
      %v4489 = vsel %vm1767, %v4445, 0.0
      %v4490 = vsel %vm1768, %v4447, 0.0
      %v4491 = vsel %vm1769, %v4449, 0.0
      %v4492 = vsel %vm1770, %v4451, 0.0
      %v4493 = vsel %vm1771, %v4453, 0.0
      %v4494 = vsel %vm1772, %v4455, 0.0
      %v4495 = vsel %vm1773, %v4457, 0.0
      %v4496 = vsel %vm1774, %v4459, 0.0
      %v4497 = vsel %vm1775, %v4461, 0.0
      %v4498 = vsel %vm1776, %v4463, 0.0
      %v4499 = vsel %vm1777, %v4465, 0.0
      %v4500 = vsel %vm1778, %v4467, 0.0
      %v4501 = vsel %vm1779, %v4485, 0.0
      %v4502 = vpack.c.bf16 %v4486, %v4486
      %v4503 = vpack.c.bf16 %v4487, %v4487
      %v4504 = vpack.c.bf16 %v4488, %v4488
      %v4505 = vpack.c.bf16 %v4489, %v4489
      %v4506 = vpack.c.bf16 %v4490, %v4490
      %v4507 = vpack.c.bf16 %v4491, %v4491
      %v4508 = vpack.c.bf16 %v4492, %v4492
      %v4509 = vpack.c.bf16 %v4493, %v4493
      %v4510 = vpack.c.bf16 %v4494, %v4494
      %v4511 = vpack.c.bf16 %v4495, %v4495
      %v4512 = vpack.c.bf16 %v4496, %v4496
      %v4513 = vpack.c.bf16 %v4497, %v4497
      %v4514 = vpack.c.bf16 %v4498, %v4498
      %v4515 = vpack.c.bf16 %v4499, %v4499
      %v4516 = vpack.c.bf16 %v4500, %v4500
      %v4517 = vpack.c.bf16 %v4501, %v4501
      %v4518 = vsel %vm1924, %v3939, 0.0
      %v4519 = vsel %vm1925, %v3941, 0.0
      %v4520 = vsel %vm1926, %v3943, 0.0
      %v4521 = vsel %vm1927, %v3945, 0.0
      %v4522 = vsel %vm1928, %v3947, 0.0
      %v4523 = vsel %vm1929, %v3949, 0.0
      %v4524 = vsel %vm1930, %v3951, 0.0
      %v4525 = vsel %vm1931, %v3953, 0.0
      %v4526 = vsel %vm1932, %v3955, 0.0
      %v4527 = vsel %vm1933, %v3957, 0.0
      %v4528 = vsel %vm1934, %v3959, 0.0
      %v4529 = vsel %vm1935, %v3961, 0.0
      %v4530 = vsel %vm1936, %v3963, 0.0
      %v4531 = vsel %vm1937, %v3965, 0.0
      %v4532 = vsel %vm1938, %v3966, 0.0
      %v4533 = vsel %vm1939, %v3983, 0.0
      %v4534 = vpack.c.bf16 %v4518, %v4518
      %v4535 = vpack.c.bf16 %v4519, %v4519
      %v4536 = vpack.c.bf16 %v4520, %v4520
      %v4537 = vpack.c.bf16 %v4521, %v4521
      %v4538 = vpack.c.bf16 %v4522, %v4522
      %v4539 = vpack.c.bf16 %v4523, %v4523
      %v4540 = vpack.c.bf16 %v4524, %v4524
      %v4541 = vpack.c.bf16 %v4525, %v4525
      %v4542 = vpack.c.bf16 %v4526, %v4526
      %v4543 = vpack.c.bf16 %v4527, %v4527
      %v4544 = vpack.c.bf16 %v4528, %v4528
      %v4545 = vpack.c.bf16 %v4529, %v4529
      %v4546 = vpack.c.bf16 %v4530, %v4530
      %v4547 = vpack.c.bf16 %v4531, %v4531
      %v4548 = vpack.c.bf16 %v4532, %v4532
      %v4549 = vpack.c.bf16 %v4533, %v4533
      %v4550 = vsel %vm2084, %v4020, 0.0
      %v4551 = vsel %vm2085, %v4022, 0.0
      %v4552 = vsel %vm2086, %v4024, 0.0
      %v4553 = vsel %vm2087, %v4026, 0.0
      %v4554 = vsel %vm2088, %v4028, 0.0
      %v4555 = vsel %vm2089, %v4030, 0.0
      %v4556 = vsel %vm2090, %v4032, 0.0
      %v4557 = vsel %vm2091, %v4034, 0.0
      %v4558 = vsel %vm2092, %v4036, 0.0
      %v4559 = vsel %vm2093, %v4038, 0.0
      %v4560 = vsel %vm2094, %v4040, 0.0
      %v4561 = vsel %vm2095, %v4042, 0.0
      %v4562 = vsel %vm2096, %v4044, 0.0
      %v4563 = vsel %vm2097, %v4046, 0.0
      %v4564 = vsel %vm2098, %v4047, 0.0
      %v4565 = vsel %vm2099, %v4064, 0.0
      %v4566 = vpack.c.bf16 %v4550, %v4550
      %v4567 = vpack.c.bf16 %v4551, %v4551
      %v4568 = vpack.c.bf16 %v4552, %v4552
      %v4569 = vpack.c.bf16 %v4553, %v4553
      %v4570 = vpack.c.bf16 %v4554, %v4554
      %v4571 = vpack.c.bf16 %v4555, %v4555
      %v4572 = vpack.c.bf16 %v4556, %v4556
      %v4573 = vpack.c.bf16 %v4557, %v4557
      %v4574 = vpack.c.bf16 %v4558, %v4558
      %v4575 = vpack.c.bf16 %v4559, %v4559
      %v4576 = vpack.c.bf16 %v4560, %v4560
      %v4577 = vpack.c.bf16 %v4561, %v4561
      %v4578 = vpack.c.bf16 %v4562, %v4562
      %v4579 = vpack.c.bf16 %v4563, %v4563
      %v4580 = vpack.c.bf16 %v4564, %v4564
      %v4581 = vpack.c.bf16 %v4565, %v4565
      %v4582 = vsel %vm2244, %v4101, 0.0
      %v4583 = vsel %vm2245, %v4103, 0.0
      %v4584 = vsel %vm2246, %v4105, 0.0
      %v4585 = vsel %vm2247, %v4107, 0.0
      %v4586 = vsel %vm2248, %v4109, 0.0
      %v4587 = vsel %vm2249, %v4111, 0.0
      %v4588 = vsel %vm2250, %v4113, 0.0
      %v4589 = vsel %vm2251, %v4115, 0.0
      %v4590 = vsel %vm2252, %v4117, 0.0
      %v4591 = vsel %vm2253, %v4119, 0.0
      %v4592 = vsel %vm2254, %v4121, 0.0
      %v4593 = vsel %vm2255, %v4123, 0.0
      %v4594 = vsel %vm2256, %v4125, 0.0
      %v4595 = vsel %vm2257, %v4127, 0.0
      %v4596 = vsel %vm2258, %v4128, 0.0
      %v4597 = vsel %vm2259, %v4145, 0.0
      %v4598 = vpack.c.bf16 %v4582, %v4582
      %v4599 = vpack.c.bf16 %v4583, %v4583
      %v4600 = vpack.c.bf16 %v4584, %v4584
      %v4601 = vpack.c.bf16 %v4585, %v4585
      %v4602 = vpack.c.bf16 %v4586, %v4586
      %v4603 = vpack.c.bf16 %v4587, %v4587
      %v4604 = vpack.c.bf16 %v4588, %v4588
      %v4605 = vpack.c.bf16 %v4589, %v4589
      %v4606 = vpack.c.bf16 %v4590, %v4590
      %v4607 = vpack.c.bf16 %v4591, %v4591
      %v4608 = vpack.c.bf16 %v4592, %v4592
      %v4609 = vpack.c.bf16 %v4593, %v4593
      %v4610 = vpack.c.bf16 %v4594, %v4594
      %v4611 = vpack.c.bf16 %v4595, %v4595
      %v4612 = vpack.c.bf16 %v4596, %v4596
      %v4613 = vpack.c.bf16 %v4597, %v4597
      %v4614 = vsel %vm2404, %v4182, 0.0
      %v4615 = vsel %vm2405, %v4184, 0.0
      %v4616 = vsel %vm2406, %v4186, 0.0
      %v4617 = vsel %vm2407, %v4188, 0.0
      %v4618 = vsel %vm2408, %v4190, 0.0
      %v4619 = vsel %vm2409, %v4192, 0.0
      %v4620 = vsel %vm2410, %v4194, 0.0
      %v4621 = vsel %vm2411, %v4196, 0.0
      %v4622 = vsel %vm2412, %v4198, 0.0
      %v4623 = vsel %vm2413, %v4200, 0.0
      %v4624 = vsel %vm2414, %v4202, 0.0
      %v4625 = vsel %vm2415, %v4204, 0.0
      %v4626 = vsel %vm2416, %v4206, 0.0
      %v4627 = vsel %vm2417, %v4208, 0.0
      %v4628 = vsel %vm2418, %v4209, 0.0
      %v4629 = vsel %vm2419, %v4226, 0.0
      %v4630 = vpack.c.bf16 %v4614, %v4614
      %v4631 = vpack.c.bf16 %v4615, %v4615
      %v4632 = vpack.c.bf16 %v4616, %v4616
      %v4633 = vpack.c.bf16 %v4617, %v4617
      %v4634 = vpack.c.bf16 %v4618, %v4618
      %v4635 = vpack.c.bf16 %v4619, %v4619
      %v4636 = vpack.c.bf16 %v4620, %v4620
      %v4637 = vpack.c.bf16 %v4621, %v4621
      %v4638 = vpack.c.bf16 %v4622, %v4622
      %v4639 = vpack.c.bf16 %v4623, %v4623
      %v4640 = vpack.c.bf16 %v4624, %v4624
      %v4641 = vpack.c.bf16 %v4625, %v4625
      %v4642 = vpack.c.bf16 %v4626, %v4626
      %v4643 = vpack.c.bf16 %v4627, %v4627
      %v4644 = vpack.c.bf16 %v4628, %v4628
      %v4645 = vpack.c.bf16 %v4629, %v4629
      %v4646 = vsel %vm2564, %v4263, 0.0
      %v4647 = vsel %vm2565, %v4265, 0.0
      %v4648 = vsel %vm2566, %v4267, 0.0
      %v4649 = vsel %vm2567, %v4269, 0.0
      %v4650 = vsel %vm2568, %v4271, 0.0
      %v4651 = vsel %vm2569, %v4273, 0.0
      %v4652 = vsel %vm2570, %v4275, 0.0
      %v4653 = vsel %vm2571, %v4277, 0.0
      %v4654 = vsel %vm2572, %v4279, 0.0
      %v4655 = vsel %vm2573, %v4281, 0.0
      %v4656 = vsel %vm2574, %v4283, 0.0
      %v4657 = vsel %vm2575, %v4285, 0.0
      %v4658 = vsel %vm2576, %v4287, 0.0
      %v4659 = vsel %vm2577, %v4289, 0.0
      %v4660 = vsel %vm2578, %v4290, 0.0
      %v4661 = vsel %vm2579, %v4307, 0.0
      %v4662 = vpack.c.bf16 %v4646, %v4646
      %v4663 = vpack.c.bf16 %v4647, %v4647
      %v4664 = vpack.c.bf16 %v4648, %v4648
      %v4665 = vpack.c.bf16 %v4649, %v4649
      %v4666 = vpack.c.bf16 %v4650, %v4650
      %v4667 = vpack.c.bf16 %v4651, %v4651
      %v4668 = vpack.c.bf16 %v4652, %v4652
      %v4669 = vpack.c.bf16 %v4653, %v4653
      %v4670 = vpack.c.bf16 %v4654, %v4654
      %v4671 = vpack.c.bf16 %v4655, %v4655
      %v4672 = vpack.c.bf16 %v4656, %v4656
      %v4673 = vpack.c.bf16 %v4657, %v4657
      %v4674 = vpack.c.bf16 %v4658, %v4658
      %v4675 = vpack.c.bf16 %v4659, %v4659
      %v4676 = vpack.c.bf16 %v4660, %v4660
      %v4677 = vpack.c.bf16 %v4661, %v4661
      %v4694 = vunpack.c.l.b16 %v4000
      %v4695 = vunpack.c.l.b16 %v4001
      %v4696 = vunpack.c.l.b16 %v4002
      %v4697 = vunpack.c.l.b16 %v4003
      %v4698 = vunpack.c.l.b16 %v4004
      %v4699 = vunpack.c.l.b16 %v4005
      %v4700 = vunpack.c.l.b16 %v4006
      %v4701 = vunpack.c.l.b16 %v4007
      %v4702 = vunpack.c.l.b16 %v4008
      %v4703 = vunpack.c.l.b16 %v4009
      %v4704 = vunpack.c.l.b16 %v4010
      %v4705 = vunpack.c.l.b16 %v4011
      %v4706 = vunpack.c.l.b16 %v4012
      %v4707 = vunpack.c.l.b16 %v4013
      %v4708 = vunpack.c.l.b16 %v4014
      %v4709 = vunpack.c.l.b16 %v4015
      %v4710 = vpack.c.b16 %v4695, %v4694
      %v4711 = vpack.c.b16 %v4697, %v4696
      %v4712 = vpack.c.b16 %v4699, %v4698
      %v4713 = vpack.c.b16 %v4701, %v4700
      %v4714 = vpack.c.b16 %v4703, %v4702
      %v4715 = vpack.c.b16 %v4705, %v4704
      %v4716 = vpack.c.b16 %v4707, %v4706
      %v4717 = vpack.c.b16 %v4709, %v4708
      %v4734 = vunpack.c.l.b16 %v4081
      %v4735 = vunpack.c.l.b16 %v4082
      %v4736 = vunpack.c.l.b16 %v4083
      %v4737 = vunpack.c.l.b16 %v4084
      %v4738 = vunpack.c.l.b16 %v4085
      %v4739 = vunpack.c.l.b16 %v4086
      %v4740 = vunpack.c.l.b16 %v4087
      %v4741 = vunpack.c.l.b16 %v4088
      %v4742 = vunpack.c.l.b16 %v4089
      %v4743 = vunpack.c.l.b16 %v4090
      %v4744 = vunpack.c.l.b16 %v4091
      %v4745 = vunpack.c.l.b16 %v4092
      %v4746 = vunpack.c.l.b16 %v4093
      %v4747 = vunpack.c.l.b16 %v4094
      %v4748 = vunpack.c.l.b16 %v4095
      %v4749 = vunpack.c.l.b16 %v4096
      %v4750 = vpack.c.b16 %v4735, %v4734
      %v4751 = vpack.c.b16 %v4737, %v4736
      %v4752 = vpack.c.b16 %v4739, %v4738
      %v4753 = vpack.c.b16 %v4741, %v4740
      %v4754 = vpack.c.b16 %v4743, %v4742
      %v4755 = vpack.c.b16 %v4745, %v4744
      %v4756 = vpack.c.b16 %v4747, %v4746
      %v4757 = vpack.c.b16 %v4749, %v4748
      %4758 = vrot.lane.b32.xlu0 %v4750, 32
      %v4759 = vpop.permute.xlu0 %4758
      %4760 = vrot.lane.b32.xlu0 %v4751, 32
      %v4761 = vpop.permute.xlu0 %4760
      %4762 = vrot.lane.b32.xlu0 %v4752, 32
      %v4763 = vpop.permute.xlu0 %4762
      %4764 = vrot.lane.b32.xlu0 %v4753, 32
      %v4765 = vpop.permute.xlu0 %4764
      %4766 = vrot.lane.b32.xlu0 %v4754, 32
      %v4767 = vpop.permute.xlu0 %4766
      %4768 = vrot.lane.b32.xlu0 %v4755, 32
      %v4769 = vpop.permute.xlu0 %4768
      %4770 = vrot.lane.b32.xlu0 %v4756, 32
      %v4771 = vpop.permute.xlu0 %4770
      %4772 = vrot.lane.b32.xlu0 %v4757, 32
      %v4773 = vpop.permute.xlu0 %4772
      %v4790 = vunpack.c.l.b16 %v4162
      %v4791 = vunpack.c.l.b16 %v4163
      %v4792 = vunpack.c.l.b16 %v4164
      %v4793 = vunpack.c.l.b16 %v4165
      %v4794 = vunpack.c.l.b16 %v4166
      %v4795 = vunpack.c.l.b16 %v4167
      %v4796 = vunpack.c.l.b16 %v4168
      %v4797 = vunpack.c.l.b16 %v4169
      %v4798 = vunpack.c.l.b16 %v4170
      %v4799 = vunpack.c.l.b16 %v4171
      %v4800 = vunpack.c.l.b16 %v4172
      %v4801 = vunpack.c.l.b16 %v4173
      %v4802 = vunpack.c.l.b16 %v4174
      %v4803 = vunpack.c.l.b16 %v4175
      %v4804 = vunpack.c.l.b16 %v4176
      %v4805 = vunpack.c.l.b16 %v4177
      %v4806 = vpack.c.b16 %v4791, %v4790
      %v4807 = vpack.c.b16 %v4793, %v4792
      %v4808 = vpack.c.b16 %v4795, %v4794
      %v4809 = vpack.c.b16 %v4797, %v4796
      %v4810 = vpack.c.b16 %v4799, %v4798
      %v4811 = vpack.c.b16 %v4801, %v4800
      %v4812 = vpack.c.b16 %v4803, %v4802
      %v4813 = vpack.c.b16 %v4805, %v4804
      %4814 = vrot.lane.b32.xlu0 %v4806, 64
      %v4815 = vpop.permute.xlu0 %4814
      %4816 = vrot.lane.b32.xlu0 %v4807, 64
      %v4817 = vpop.permute.xlu0 %4816
      %4818 = vrot.lane.b32.xlu0 %v4808, 64
      %v4819 = vpop.permute.xlu0 %4818
      %4820 = vrot.lane.b32.xlu0 %v4809, 64
      %v4821 = vpop.permute.xlu0 %4820
      %4822 = vrot.lane.b32.xlu0 %v4810, 64
      %v4823 = vpop.permute.xlu0 %4822
      %4824 = vrot.lane.b32.xlu0 %v4811, 64
      %v4825 = vpop.permute.xlu0 %4824
      %4826 = vrot.lane.b32.xlu0 %v4812, 64
      %v4827 = vpop.permute.xlu0 %4826
      %4828 = vrot.lane.b32.xlu0 %v4813, 64
      %v4829 = vpop.permute.xlu0 %4828
      %v4846 = vunpack.c.l.b16 %v4243
      %v4847 = vunpack.c.l.b16 %v4244
      %v4848 = vunpack.c.l.b16 %v4245
      %v4849 = vunpack.c.l.b16 %v4246
      %v4850 = vunpack.c.l.b16 %v4247
      %v4851 = vunpack.c.l.b16 %v4248
      %v4852 = vunpack.c.l.b16 %v4249
      %v4853 = vunpack.c.l.b16 %v4250
      %v4854 = vunpack.c.l.b16 %v4251
      %v4855 = vunpack.c.l.b16 %v4252
      %v4856 = vunpack.c.l.b16 %v4253
      %v4857 = vunpack.c.l.b16 %v4254
      %v4858 = vunpack.c.l.b16 %v4255
      %v4859 = vunpack.c.l.b16 %v4256
      %v4860 = vunpack.c.l.b16 %v4257
      %v4861 = vunpack.c.l.b16 %v4258
      %v4862 = vpack.c.b16 %v4847, %v4846
      %v4863 = vpack.c.b16 %v4849, %v4848
      %v4864 = vpack.c.b16 %v4851, %v4850
      %v4865 = vpack.c.b16 %v4853, %v4852
      %v4866 = vpack.c.b16 %v4855, %v4854
      %v4867 = vpack.c.b16 %v4857, %v4856
      %v4868 = vpack.c.b16 %v4859, %v4858
      %v4869 = vpack.c.b16 %v4861, %v4860
      %4870 = vrot.lane.b32.xlu0 %v4862, 96
      %v4871 = vpop.permute.xlu0 %4870
      %4872 = vrot.lane.b32.xlu0 %v4863, 96
      %v4873 = vpop.permute.xlu0 %4872
      %4874 = vrot.lane.b32.xlu0 %v4864, 96
      %v4875 = vpop.permute.xlu0 %4874
      %4876 = vrot.lane.b32.xlu0 %v4865, 96
      %v4877 = vpop.permute.xlu0 %4876
      %4878 = vrot.lane.b32.xlu0 %v4866, 96
      %v4879 = vpop.permute.xlu0 %4878
      %4880 = vrot.lane.b32.xlu0 %v4867, 96
      %v4881 = vpop.permute.xlu0 %4880
      %4882 = vrot.lane.b32.xlu0 %v4868, 96
      %v4883 = vpop.permute.xlu0 %4882
      %4884 = vrot.lane.b32.xlu0 %v4869, 96
      %v4885 = vpop.permute.xlu0 %4884
      %v4902 = vunpack.c.l.b16 %v4324
      %v4903 = vunpack.c.l.b16 %v4325
      %v4904 = vunpack.c.l.b16 %v4326
      %v4905 = vunpack.c.l.b16 %v4327
      %v4906 = vunpack.c.l.b16 %v4328
      %v4907 = vunpack.c.l.b16 %v4329
      %v4908 = vunpack.c.l.b16 %v4330
      %v4909 = vunpack.c.l.b16 %v4331
      %v4910 = vunpack.c.l.b16 %v4332
      %v4911 = vunpack.c.l.b16 %v4333
      %v4912 = vunpack.c.l.b16 %v4334
      %v4913 = vunpack.c.l.b16 %v4335
      %v4914 = vunpack.c.l.b16 %v4336
      %v4915 = vunpack.c.l.b16 %v4337
      %v4916 = vunpack.c.l.b16 %v4338
      %v4917 = vunpack.c.l.b16 %v4339
      %v4918 = vpack.c.b16 %v4903, %v4902
      %v4919 = vpack.c.b16 %v4905, %v4904
      %v4920 = vpack.c.b16 %v4907, %v4906
      %v4921 = vpack.c.b16 %v4909, %v4908
      %v4922 = vpack.c.b16 %v4911, %v4910
      %v4923 = vpack.c.b16 %v4913, %v4912
      %v4924 = vpack.c.b16 %v4915, %v4914
      %v4925 = vpack.c.b16 %v4917, %v4916
      %v4942 = vunpack.c.l.b16 %v4405
      %v4943 = vunpack.c.l.b16 %v4406
      %v4944 = vunpack.c.l.b16 %v4407
      %v4945 = vunpack.c.l.b16 %v4408
      %v4946 = vunpack.c.l.b16 %v4409
      %v4947 = vunpack.c.l.b16 %v4410
      %v4948 = vunpack.c.l.b16 %v4411
      %v4949 = vunpack.c.l.b16 %v4412
      %v4950 = vunpack.c.l.b16 %v4413
      %v4951 = vunpack.c.l.b16 %v4414
      %v4952 = vunpack.c.l.b16 %v4415
      %v4953 = vunpack.c.l.b16 %v4416
      %v4954 = vunpack.c.l.b16 %v4417
      %v4955 = vunpack.c.l.b16 %v4418
      %v4956 = vunpack.c.l.b16 %v4419
      %v4957 = vunpack.c.l.b16 %v4420
      %v4958 = vpack.c.b16 %v4943, %v4942
      %v4959 = vpack.c.b16 %v4945, %v4944
      %v4960 = vpack.c.b16 %v4947, %v4946
      %v4961 = vpack.c.b16 %v4949, %v4948
      %v4962 = vpack.c.b16 %v4951, %v4950
      %v4963 = vpack.c.b16 %v4953, %v4952
      %v4964 = vpack.c.b16 %v4955, %v4954
      %v4965 = vpack.c.b16 %v4957, %v4956
      %4966 = vrot.lane.b32.xlu0 %v4958, 32
      %v4967 = vpop.permute.xlu0 %4966
      %4968 = vrot.lane.b32.xlu0 %v4959, 32
      %v4969 = vpop.permute.xlu0 %4968
      %4970 = vrot.lane.b32.xlu0 %v4960, 32
      %v4971 = vpop.permute.xlu0 %4970
      %4972 = vrot.lane.b32.xlu0 %v4961, 32
      %v4973 = vpop.permute.xlu0 %4972
      %4974 = vrot.lane.b32.xlu0 %v4962, 32
      %v4975 = vpop.permute.xlu0 %4974
      %4976 = vrot.lane.b32.xlu0 %v4963, 32
      %v4977 = vpop.permute.xlu0 %4976
      %4978 = vrot.lane.b32.xlu0 %v4964, 32
      %v4979 = vpop.permute.xlu0 %4978
      %4980 = vrot.lane.b32.xlu0 %v4965, 32
      %v4981 = vpop.permute.xlu0 %4980
      %v4998 = vunpack.c.l.b16 %v4421
      %v4999 = vunpack.c.l.b16 %v4422
      %v5000 = vunpack.c.l.b16 %v4423
      %v5001 = vunpack.c.l.b16 %v4424
      %v5002 = vunpack.c.l.b16 %v4425
      %v5003 = vunpack.c.l.b16 %v4426
      %v5004 = vunpack.c.l.b16 %v4427
      %v5005 = vunpack.c.l.b16 %v4428
      %v5006 = vunpack.c.l.b16 %v4429
      %v5007 = vunpack.c.l.b16 %v4430
      %v5008 = vunpack.c.l.b16 %v4431
      %v5009 = vunpack.c.l.b16 %v4432
      %v5010 = vunpack.c.l.b16 %v4433
      %v5011 = vunpack.c.l.b16 %v4434
      %v5012 = vunpack.c.l.b16 %v4435
      %v5013 = vunpack.c.l.b16 %v4436
      %v5014 = vpack.c.b16 %v4999, %v4998
      %v5015 = vpack.c.b16 %v5001, %v5000
      %v5016 = vpack.c.b16 %v5003, %v5002
      %v5017 = vpack.c.b16 %v5005, %v5004
      %v5018 = vpack.c.b16 %v5007, %v5006
      %v5019 = vpack.c.b16 %v5009, %v5008
      %v5020 = vpack.c.b16 %v5011, %v5010
      %v5021 = vpack.c.b16 %v5013, %v5012
      %5022 = vrot.lane.b32.xlu0 %v5014, 64
      %v5023 = vpop.permute.xlu0 %5022
      %5024 = vrot.lane.b32.xlu0 %v5015, 64
      %v5025 = vpop.permute.xlu0 %5024
      %5026 = vrot.lane.b32.xlu0 %v5016, 64
      %v5027 = vpop.permute.xlu0 %5026
      %5028 = vrot.lane.b32.xlu0 %v5017, 64
      %v5029 = vpop.permute.xlu0 %5028
      %5030 = vrot.lane.b32.xlu0 %v5018, 64
      %v5031 = vpop.permute.xlu0 %5030
      %5032 = vrot.lane.b32.xlu0 %v5019, 64
      %v5033 = vpop.permute.xlu0 %5032
      %5034 = vrot.lane.b32.xlu0 %v5020, 64
      %v5035 = vpop.permute.xlu0 %5034
      %5036 = vrot.lane.b32.xlu0 %v5021, 64
      %v5037 = vpop.permute.xlu0 %5036
      %v5054 = vunpack.c.l.b16 %v4502
      %v5055 = vunpack.c.l.b16 %v4503
      %v5056 = vunpack.c.l.b16 %v4504
      %v5057 = vunpack.c.l.b16 %v4505
      %v5058 = vunpack.c.l.b16 %v4506
      %v5059 = vunpack.c.l.b16 %v4507
      %v5060 = vunpack.c.l.b16 %v4508
      %v5061 = vunpack.c.l.b16 %v4509
      %v5062 = vunpack.c.l.b16 %v4510
      %v5063 = vunpack.c.l.b16 %v4511
      %v5064 = vunpack.c.l.b16 %v4512
      %v5065 = vunpack.c.l.b16 %v4513
      %v5066 = vunpack.c.l.b16 %v4514
      %v5067 = vunpack.c.l.b16 %v4515
      %v5068 = vunpack.c.l.b16 %v4516
      %v5069 = vunpack.c.l.b16 %v4517
      %v5070 = vpack.c.b16 %v5055, %v5054
      %v5071 = vpack.c.b16 %v5057, %v5056
      %v5072 = vpack.c.b16 %v5059, %v5058
      %v5073 = vpack.c.b16 %v5061, %v5060
      %v5074 = vpack.c.b16 %v5063, %v5062
      %v5075 = vpack.c.b16 %v5065, %v5064
      %v5076 = vpack.c.b16 %v5067, %v5066
      %v5077 = vpack.c.b16 %v5069, %v5068
      %5078 = vrot.lane.b32.xlu0 %v5070, 96
      %v5079 = vpop.permute.xlu0 %5078
      %5080 = vrot.lane.b32.xlu0 %v5071, 96
      %v5081 = vpop.permute.xlu0 %5080
      %5082 = vrot.lane.b32.xlu0 %v5072, 96
      %v5083 = vpop.permute.xlu0 %5082
      %5084 = vrot.lane.b32.xlu0 %v5073, 96
      %v5085 = vpop.permute.xlu0 %5084
      %5086 = vrot.lane.b32.xlu0 %v5074, 96
      %v5087 = vpop.permute.xlu0 %5086
      %5088 = vrot.lane.b32.xlu0 %v5075, 96
      %v5089 = vpop.permute.xlu0 %5088
      %5090 = vrot.lane.b32.xlu0 %v5076, 96
      %v5091 = vpop.permute.xlu0 %5090
      %5092 = vrot.lane.b32.xlu0 %v5077, 96
      %v5093 = vpop.permute.xlu0 %5092
      %v5110 = vunpack.c.l.b16 %v4534
      %v5111 = vunpack.c.l.b16 %v4535
      %v5112 = vunpack.c.l.b16 %v4536
      %v5113 = vunpack.c.l.b16 %v4537
      %v5114 = vunpack.c.l.b16 %v4538
      %v5115 = vunpack.c.l.b16 %v4539
      %v5116 = vunpack.c.l.b16 %v4540
      %v5117 = vunpack.c.l.b16 %v4541
      %v5118 = vunpack.c.l.b16 %v4542
      %v5119 = vunpack.c.l.b16 %v4543
      %v5120 = vunpack.c.l.b16 %v4544
      %v5121 = vunpack.c.l.b16 %v4545
      %v5122 = vunpack.c.l.b16 %v4546
      %v5123 = vunpack.c.l.b16 %v4547
      %v5124 = vunpack.c.l.b16 %v4548
      %v5125 = vunpack.c.l.b16 %v4549
      %v5126 = vpack.c.b16 %v5111, %v5110
      %v5127 = vpack.c.b16 %v5113, %v5112
      %v5128 = vpack.c.b16 %v5115, %v5114
      %v5129 = vpack.c.b16 %v5117, %v5116
      %v5130 = vpack.c.b16 %v5119, %v5118
      %v5131 = vpack.c.b16 %v5121, %v5120
      %v5132 = vpack.c.b16 %v5123, %v5122
      %v5133 = vpack.c.b16 %v5125, %v5124
      %v5150 = vunpack.c.l.b16 %v4566
      %v5151 = vunpack.c.l.b16 %v4567
      %v5152 = vunpack.c.l.b16 %v4568
      %v5153 = vunpack.c.l.b16 %v4569
      %v5154 = vunpack.c.l.b16 %v4570
      %v5155 = vunpack.c.l.b16 %v4571
      %v5156 = vunpack.c.l.b16 %v4572
      %v5157 = vunpack.c.l.b16 %v4573
      %v5158 = vunpack.c.l.b16 %v4574
      %v5159 = vunpack.c.l.b16 %v4575
      %v5160 = vunpack.c.l.b16 %v4576
      %v5161 = vunpack.c.l.b16 %v4577
      %v5162 = vunpack.c.l.b16 %v4578
      %v5163 = vunpack.c.l.b16 %v4579
      %v5164 = vunpack.c.l.b16 %v4580
      %v5165 = vunpack.c.l.b16 %v4581
      %v5166 = vpack.c.b16 %v5151, %v5150
      %v5167 = vpack.c.b16 %v5153, %v5152
      %v5168 = vpack.c.b16 %v5155, %v5154
      %v5169 = vpack.c.b16 %v5157, %v5156
      %v5170 = vpack.c.b16 %v5159, %v5158
      %v5171 = vpack.c.b16 %v5161, %v5160
      %v5172 = vpack.c.b16 %v5163, %v5162
      %v5173 = vpack.c.b16 %v5165, %v5164
      %5174 = vrot.lane.b32.xlu0 %v5166, 32
      %v5175 = vpop.permute.xlu0 %5174
      %5176 = vrot.lane.b32.xlu0 %v5167, 32
      %v5177 = vpop.permute.xlu0 %5176
      %5178 = vrot.lane.b32.xlu0 %v5168, 32
      %v5179 = vpop.permute.xlu0 %5178
      %5180 = vrot.lane.b32.xlu0 %v5169, 32
      %v5181 = vpop.permute.xlu0 %5180
      %5182 = vrot.lane.b32.xlu0 %v5170, 32
      %v5183 = vpop.permute.xlu0 %5182
      %5184 = vrot.lane.b32.xlu0 %v5171, 32
      %v5185 = vpop.permute.xlu0 %5184
      %5186 = vrot.lane.b32.xlu0 %v5172, 32
      %v5187 = vpop.permute.xlu0 %5186
      %5188 = vrot.lane.b32.xlu0 %v5173, 32
      %v5189 = vpop.permute.xlu0 %5188
      %v5206 = vunpack.c.l.b16 %v4598
      %v5207 = vunpack.c.l.b16 %v4599
      %v5208 = vunpack.c.l.b16 %v4600
      %v5209 = vunpack.c.l.b16 %v4601
      %v5210 = vunpack.c.l.b16 %v4602
      %v5211 = vunpack.c.l.b16 %v4603
      %v5212 = vunpack.c.l.b16 %v4604
      %v5213 = vunpack.c.l.b16 %v4605
      %v5214 = vunpack.c.l.b16 %v4606
      %v5215 = vunpack.c.l.b16 %v4607
      %v5216 = vunpack.c.l.b16 %v4608
      %v5217 = vunpack.c.l.b16 %v4609
      %v5218 = vunpack.c.l.b16 %v4610
      %v5219 = vunpack.c.l.b16 %v4611
      %v5220 = vunpack.c.l.b16 %v4612
      %v5221 = vunpack.c.l.b16 %v4613
      %v5222 = vpack.c.b16 %v5207, %v5206
      %v5223 = vpack.c.b16 %v5209, %v5208
      %v5224 = vpack.c.b16 %v5211, %v5210
      %v5225 = vpack.c.b16 %v5213, %v5212
      %v5226 = vpack.c.b16 %v5215, %v5214
      %v5227 = vpack.c.b16 %v5217, %v5216
      %v5228 = vpack.c.b16 %v5219, %v5218
      %v5229 = vpack.c.b16 %v5221, %v5220
      %5230 = vrot.lane.b32.xlu0 %v5222, 64
      %v5231 = vpop.permute.xlu0 %5230
      %5232 = vrot.lane.b32.xlu0 %v5223, 64
      %v5233 = vpop.permute.xlu0 %5232
      %5234 = vrot.lane.b32.xlu0 %v5224, 64
      %v5235 = vpop.permute.xlu0 %5234
      %5236 = vrot.lane.b32.xlu0 %v5225, 64
      %v5237 = vpop.permute.xlu0 %5236
      %5238 = vrot.lane.b32.xlu0 %v5226, 64
      %v5239 = vpop.permute.xlu0 %5238
      %5240 = vrot.lane.b32.xlu0 %v5227, 64
      %v5241 = vpop.permute.xlu0 %5240
      %5242 = vrot.lane.b32.xlu0 %v5228, 64
      %v5243 = vpop.permute.xlu0 %5242
      %5244 = vrot.lane.b32.xlu0 %v5229, 64
      %v5245 = vpop.permute.xlu0 %5244
      %v5262 = vunpack.c.l.b16 %v4630
      %v5263 = vunpack.c.l.b16 %v4631
      %v5264 = vunpack.c.l.b16 %v4632
      %v5265 = vunpack.c.l.b16 %v4633
      %v5266 = vunpack.c.l.b16 %v4634
      %v5267 = vunpack.c.l.b16 %v4635
      %v5268 = vunpack.c.l.b16 %v4636
      %v5269 = vunpack.c.l.b16 %v4637
      %v5270 = vunpack.c.l.b16 %v4638
      %v5271 = vunpack.c.l.b16 %v4639
      %v5272 = vunpack.c.l.b16 %v4640
      %v5273 = vunpack.c.l.b16 %v4641
      %v5274 = vunpack.c.l.b16 %v4642
      %v5275 = vunpack.c.l.b16 %v4643
      %v5276 = vunpack.c.l.b16 %v4644
      %v5277 = vunpack.c.l.b16 %v4645
      %v5278 = vpack.c.b16 %v5263, %v5262
      %v5279 = vpack.c.b16 %v5265, %v5264
      %v5280 = vpack.c.b16 %v5267, %v5266
      %v5281 = vpack.c.b16 %v5269, %v5268
      %v5282 = vpack.c.b16 %v5271, %v5270
      %v5283 = vpack.c.b16 %v5273, %v5272
      %v5284 = vpack.c.b16 %v5275, %v5274
      %v5285 = vpack.c.b16 %v5277, %v5276
      %5286 = vrot.lane.b32.xlu0 %v5278, 96
      %v5287 = vpop.permute.xlu0 %5286
      %5288 = vrot.lane.b32.xlu0 %v5279, 96
      %v5289 = vpop.permute.xlu0 %5288
      %5290 = vrot.lane.b32.xlu0 %v5280, 96
      %v5291 = vpop.permute.xlu0 %5290
      %5292 = vrot.lane.b32.xlu0 %v5281, 96
      %v5293 = vpop.permute.xlu0 %5292
      %5294 = vrot.lane.b32.xlu0 %v5282, 96
      %v5295 = vpop.permute.xlu0 %5294
      %5296 = vrot.lane.b32.xlu0 %v5283, 96
      %v5297 = vpop.permute.xlu0 %5296
      %5298 = vrot.lane.b32.xlu0 %v5284, 96
      %v5299 = vpop.permute.xlu0 %5298
      %5300 = vrot.lane.b32.xlu0 %v5285, 96
      %v5301 = vpop.permute.xlu0 %5300
      %v5318 = vunpack.c.l.b16 %v4662
      %v5319 = vunpack.c.l.b16 %v4663
      %v5320 = vunpack.c.l.b16 %v4664
      %v5321 = vunpack.c.l.b16 %v4665
      %v5322 = vunpack.c.l.b16 %v4666
      %v5323 = vunpack.c.l.b16 %v4667
      %v5324 = vunpack.c.l.b16 %v4668
      %v5325 = vunpack.c.l.b16 %v4669
      %v5326 = vunpack.c.l.b16 %v4670
      %v5327 = vunpack.c.l.b16 %v4671
      %v5328 = vunpack.c.l.b16 %v4672
      %v5329 = vunpack.c.l.b16 %v4673
      %v5330 = vunpack.c.l.b16 %v4674
      %v5331 = vunpack.c.l.b16 %v4675
      %v5332 = vunpack.c.l.b16 %v4676
      %v5333 = vunpack.c.l.b16 %v4677
      %v5334 = vpack.c.b16 %v5319, %v5318
      %v5335 = vpack.c.b16 %v5321, %v5320
      %v5336 = vpack.c.b16 %v5323, %v5322
      %v5337 = vpack.c.b16 %v5325, %v5324
      %v5338 = vpack.c.b16 %v5327, %v5326
      %v5339 = vpack.c.b16 %v5329, %v5328
      %v5340 = vpack.c.b16 %v5331, %v5330
      %v5341 = vpack.c.b16 %v5333, %v5332
      %v5344 = vsel %vm3276, %v4710, %v4759
      %v5347 = vsel %vm3276, %v4711, %v4761
      %v5350 = vsel %vm3276, %v4712, %v4763
      %v5353 = vsel %vm3276, %v4713, %v4765
      %v5356 = vsel %vm3276, %v4714, %v4767
      %v5359 = vsel %vm3276, %v4715, %v4769
      %v5362 = vsel %vm3276, %v4716, %v4771
      %v5365 = vsel %vm3276, %v4717, %v4773
      %v5367 = vsel %vm3301, %v5344, %v4815
      %v5369 = vsel %vm3301, %v5347, %v4817
      %v5371 = vsel %vm3301, %v5350, %v4819
      %v5373 = vsel %vm3301, %v5353, %v4821
      %v5375 = vsel %vm3301, %v5356, %v4823
      %v5377 = vsel %vm3301, %v5359, %v4825
      %v5379 = vsel %vm3301, %v5362, %v4827
      %v5381 = vsel %vm3301, %v5365, %v4829
      %v5383 = vsel %vm3318, %v5367, %v4871
      %v5386 = vsel %vm3318, %v5369, %v4873
      %v5389 = vsel %vm3318, %v5371, %v4875
      %v5392 = vsel %vm3318, %v5373, %v4877
      %v5395 = vsel %vm3318, %v5375, %v4879
      %v5398 = vsel %vm3318, %v5377, %v4881
      %v5401 = vsel %vm3318, %v5379, %v4883
      %v5404 = vsel %vm3318, %v5381, %v4885
      %v5408 = vsel %vm3276, %v4918, %v4967
      %v5411 = vsel %vm3276, %v4919, %v4969
      %v5414 = vsel %vm3276, %v4920, %v4971
      %v5417 = vsel %vm3276, %v4921, %v4973
      %v5420 = vsel %vm3276, %v4922, %v4975
      %v5423 = vsel %vm3276, %v4923, %v4977
      %v5426 = vsel %vm3276, %v4924, %v4979
      %v5429 = vsel %vm3276, %v4925, %v4981
      %v5431 = vsel %vm3301, %v5408, %v5023
      %v5433 = vsel %vm3301, %v5411, %v5025
      %v5435 = vsel %vm3301, %v5414, %v5027
      %v5437 = vsel %vm3301, %v5417, %v5029
      %v5439 = vsel %vm3301, %v5420, %v5031
      %v5441 = vsel %vm3301, %v5423, %v5033
      %v5443 = vsel %vm3301, %v5426, %v5035
      %v5445 = vsel %vm3301, %v5429, %v5037
      %v5447 = vsel %vm3318, %v5431, %v5079
      %v5450 = vsel %vm3318, %v5433, %v5081
      %v5453 = vsel %vm3318, %v5435, %v5083
      %v5456 = vsel %vm3318, %v5437, %v5085
      %v5459 = vsel %vm3318, %v5439, %v5087
      %v5462 = vsel %vm3318, %v5441, %v5089
      %v5465 = vsel %vm3318, %v5443, %v5091
      %v5468 = vsel %vm3318, %v5445, %v5093
      %v5472 = vsel %vm3276, %v5126, %v5175
      %v5475 = vsel %vm3276, %v5127, %v5177
      %v5478 = vsel %vm3276, %v5128, %v5179
      %v5481 = vsel %vm3276, %v5129, %v5181
      %v5484 = vsel %vm3276, %v5130, %v5183
      %v5487 = vsel %vm3276, %v5131, %v5185
      %v5490 = vsel %vm3276, %v5132, %v5187
      %v5493 = vsel %vm3276, %v5133, %v5189
      %v5495 = vsel %vm3301, %v5472, %v5231
      %v5497 = vsel %vm3301, %v5475, %v5233
      %v5499 = vsel %vm3301, %v5478, %v5235
      %v5501 = vsel %vm3301, %v5481, %v5237
      %v5503 = vsel %vm3301, %v5484, %v5239
      %v5505 = vsel %vm3301, %v5487, %v5241
      %v5507 = vsel %vm3301, %v5490, %v5243
      %v5509 = vsel %vm3301, %v5493, %v5245
      %v5511 = vsel %vm3318, %v5495, %v5287
      %v5514 = vsel %vm3318, %v5497, %v5289
      %v5517 = vsel %vm3318, %v5499, %v5291
      %v5520 = vsel %vm3318, %v5501, %v5293
      %v5523 = vsel %vm3318, %v5503, %v5295
      %v5526 = vsel %vm3318, %v5505, %v5297
      %v5529 = vsel %vm3318, %v5507, %v5299
      %v5532 = vsel %vm3318, %v5509, %v5301
      %v5534 = vld [vmem:[%s4] sm:$0xf]
      %v5535 = vld [vmem:[%s4 + $0x4] sm:$0xf]
      %v5536 = vld [vmem:[%s4 + $0x8] sm:$0xf]
      %v5537 = vld [vmem:[%s4 + $0xc] sm:$0xf]
      %v5538 = vld [vmem:[%s4 + $0x10] sm:$0xf]
      %v5539 = vld [vmem:[%s4 + $0x14] sm:$0xf]
      %v5540 = vld [vmem:[%s4 + $0x18] sm:$0xf]
      %v5541 = vld [vmem:[%s4 + $0x1c] sm:$0xf]
      %v5542 = vld [vmem:[%s4 + $0x20] sm:$0xf]
      %v5543 = vld [vmem:[%s4 + $0x24] sm:$0xf]
      %v5544 = vld [vmem:[%s4 + $0x28] sm:$0xf]
      %v5545 = vld [vmem:[%s4 + $0x2c] sm:$0xf]
      %v5546 = vld [vmem:[%s4 + $0x30] sm:$0xf]
      %v5547 = vld [vmem:[%s4 + $0x34] sm:$0xf]
      %v5548 = vld [vmem:[%s4 + $0x38] sm:$0xf]
      %v5549 = vld [vmem:[%s4 + $0x3c] sm:$0xf]
      %v5550 = vld [vmem:[%s4 + $0x40] sm:$0xf]
      %v5551 = vld [vmem:[%s4 + $0x44] sm:$0xf]
      %v5552 = vld [vmem:[%s4 + $0x48] sm:$0xf]
      %v5553 = vld [vmem:[%s4 + $0x4c] sm:$0xf]
      %v5554 = vld [vmem:[%s4 + $0x50] sm:$0xf]
      %v5555 = vld [vmem:[%s4 + $0x54] sm:$0xf]
      %v5556 = vld [vmem:[%s4 + $0x58] sm:$0xf]
      %v5557 = vld [vmem:[%s4 + $0x5c] sm:$0xf]
      %v5558 = vld [vmem:[%s4 + $0x60] sm:$0xf]
      %v5559 = vld [vmem:[%s4 + $0x64] sm:$0xf]
      %v5560 = vld [vmem:[%s4 + $0x68] sm:$0xf]
      %v5561 = vld [vmem:[%s4 + $0x6c] sm:$0xf]
      %v5562 = vld [vmem:[%s4 + $0x70] sm:$0xf]
      %v5563 = vld [vmem:[%s4 + $0x74] sm:$0xf]
      %v5564 = vld [vmem:[%s4 + $0x78] sm:$0xf]
      %v5565 = vld [vmem:[%s4 + $0x7c] sm:$0xf]
      %v5566 = vld [vmem:[%s4 + $0x80] sm:$0xf]
      %v5567 = vld [vmem:[%s4 + $0x84] sm:$0xf]
      %v5568 = vld [vmem:[%s4 + $0x88] sm:$0xf]
      %v5569 = vld [vmem:[%s4 + $0x8c] sm:$0xf]
      %v5570 = vld [vmem:[%s4 + $0x90] sm:$0xf]
      %v5571 = vld [vmem:[%s4 + $0x94] sm:$0xf]
      %v5572 = vld [vmem:[%s4 + $0x98] sm:$0xf]
      %v5573 = vld [vmem:[%s4 + $0x9c] sm:$0xf]
      %v5574 = vld [vmem:[%s4 + $0xa0] sm:$0xf]
      %v5575 = vld [vmem:[%s4 + $0xa4] sm:$0xf]
      %v5576 = vld [vmem:[%s4 + $0xa8] sm:$0xf]
      %v5577 = vld [vmem:[%s4 + $0xac] sm:$0xf]
      %v5578 = vld [vmem:[%s4 + $0xb0] sm:$0xf]
      %v5579 = vld [vmem:[%s4 + $0xb4] sm:$0xf]
      %v5580 = vld [vmem:[%s4 + $0xb8] sm:$0xf]
      %v5581 = vld [vmem:[%s4 + $0xbc] sm:$0xf]
      %v5582 = vld [vmem:[%s4 + $0xc0] sm:$0xf]
      %v5583 = vld [vmem:[%s4 + $0xc4] sm:$0xf]
      %v5584 = vld [vmem:[%s4 + $0xc8] sm:$0xf]
      %v5585 = vld [vmem:[%s4 + $0xcc] sm:$0xf]
      %v5586 = vld [vmem:[%s5] sm:$0x1]
      %v5588 = vperm.slane %v5586, 0
      %v5642 = vunpack.c.l.b16 %v5534
      %v5643 = vunpack.c.l.b16 %v5535
      %v5644 = vunpack.c.l.b16 %v5536
      %v5645 = vunpack.c.l.b16 %v5537
      %v5646 = vunpack.c.l.b16 %v5538
      %v5647 = vunpack.c.l.b16 %v5539
      %v5648 = vunpack.c.l.b16 %v5540
      %v5649 = vunpack.c.l.b16 %v5541
      %v5650 = vunpack.c.l.b16 %v5542
      %v5651 = vunpack.c.l.b16 %v5543
      %v5652 = vunpack.c.l.b16 %v5544
      %v5653 = vunpack.c.l.b16 %v5545
      %v5654 = vunpack.c.l.b16 %v5546
      %v5655 = vunpack.c.l.b16 %v5547
      %v5656 = vunpack.c.l.b16 %v5548
      %v5657 = vunpack.c.l.b16 %v5549
      %v5658 = vunpack.c.l.b16 %v5550
      %v5659 = vunpack.c.l.b16 %v5551
      %v5660 = vunpack.c.l.b16 %v5552
      %v5661 = vunpack.c.l.b16 %v5553
      %v5662 = vunpack.c.l.b16 %v5554
      %v5663 = vunpack.c.l.b16 %v5555
      %v5664 = vunpack.c.l.b16 %v5556
      %v5665 = vunpack.c.l.b16 %v5557
      %v5666 = vunpack.c.l.b16 %v5558
      %v5667 = vunpack.c.l.b16 %v5559
      %v5668 = vunpack.c.l.b16 %v5560
      %v5669 = vunpack.c.l.b16 %v5561
      %v5670 = vunpack.c.l.b16 %v5562
      %v5671 = vunpack.c.l.b16 %v5563
      %v5672 = vunpack.c.l.b16 %v5564
      %v5673 = vunpack.c.l.b16 %v5565
      %v5674 = vunpack.c.l.b16 %v5566
      %v5675 = vunpack.c.l.b16 %v5567
      %v5676 = vunpack.c.l.b16 %v5568
      %v5677 = vunpack.c.l.b16 %v5569
      %v5678 = vunpack.c.l.b16 %v5570
      %v5679 = vunpack.c.l.b16 %v5571
      %v5680 = vunpack.c.l.b16 %v5572
      %v5681 = vunpack.c.l.b16 %v5573
      %v5682 = vunpack.c.l.b16 %v5574
      %v5683 = vunpack.c.l.b16 %v5575
      %v5684 = vunpack.c.l.b16 %v5576
      %v5685 = vunpack.c.l.b16 %v5577
      %v5686 = vunpack.c.l.b16 %v5578
      %v5687 = vunpack.c.l.b16 %v5579
      %v5688 = vunpack.c.l.b16 %v5580
      %v5689 = vunpack.c.l.b16 %v5581
      %v5690 = vunpack.c.l.b16 %v5582
      %v5691 = vunpack.c.l.b16 %v5583
      %v5692 = vunpack.c.l.b16 %v5584
      %v5693 = vunpack.c.l.b16 %v5585
      %v5694 = vpack.c.b16 %v5643, %v5642
      %v5695 = vpack.c.b16 %v5645, %v5644
      %v5696 = vpack.c.b16 %v5647, %v5646
      %v5697 = vpack.c.b16 %v5649, %v5648
      %v5698 = vpack.c.b16 %v5651, %v5650
      %v5699 = vpack.c.b16 %v5653, %v5652
      %v5700 = vpack.c.b16 %v5655, %v5654
      %v5701 = vpack.c.b16 %v5657, %v5656
      %v5702 = vpack.c.b16 %v5659, %v5658
      %v5703 = vpack.c.b16 %v5661, %v5660
      %v5704 = vpack.c.b16 %v5663, %v5662
      %v5705 = vpack.c.b16 %v5665, %v5664
      %v5706 = vpack.c.b16 %v5667, %v5666
      %v5707 = vpack.c.b16 %v5669, %v5668
      %v5708 = vpack.c.b16 %v5671, %v5670
      %v5709 = vpack.c.b16 %v5673, %v5672
      %v5710 = vpack.c.b16 %v5675, %v5674
      %v5711 = vpack.c.b16 %v5677, %v5676
      %v5712 = vpack.c.b16 %v5679, %v5678
      %v5713 = vpack.c.b16 %v5681, %v5680
      %v5714 = vpack.c.b16 %v5683, %v5682
      %v5715 = vpack.c.b16 %v5685, %v5684
      %v5716 = vpack.c.b16 %v5687, %v5686
      %v5717 = vpack.c.b16 %v5689, %v5688
      %v5718 = vpack.c.b16 %v5691, %v5690
      %v5719 = vpack.c.b16 %v5693, %v5692
      %v5747 = vsel %vm3276, %v5334, 0
      %v5750 = vsel %vm3276, %v5335, 0
      %v5753 = vsel %vm3276, %v5336, 0
      %v5756 = vsel %vm3276, %v5337, 0
      %v5759 = vsel %vm3276, %v5338, 0
      %v5762 = vsel %vm3276, %v5339, 0
      %v5765 = vsel %vm3276, %v5340, 0
      %v5768 = vsel %vm3276, %v5341, 0
      %5770 = vmatpush.bf16.msra.mxu0 %v5701
      %5771 = vmatpush.bf16.msra.mxu0 %v5700
      %5772 = vmatpush.bf16.msra.mxu0 %v5699
      %5773 = vmatpush.bf16.msra.mxu0 %v5698
      %5774 = vmatpush.bf16.msra.mxu0 %v5697
      %5775 = vmatpush.bf16.msra.mxu0 %v5696
      %5776 = vmatpush.bf16.msra.mxu0 %v5695
      %5777 = vmatpush.bf16.msra.mxu0 %v5694
      %5778 = vmatmul.bf16.gmra.mxu0 %v5383
      %v5779 = vpop.f32.mrf.mxu0
      %v5780 = vadd.f32 %v5588, %v5779
      %v5781 = vpop.f32.mrf.mxu0
      %v5782 = vadd.f32 %v5588, %v5781
      %5783 = vmatmul.bf16.gmra.mxu0 %v5386
      %v5784 = vpop.f32.mrf.mxu0
      %v5785 = vadd.f32 %v5588, %v5784
      %v5786 = vpop.f32.mrf.mxu0
      %v5787 = vadd.f32 %v5588, %v5786
      %5788 = vmatmul.bf16.gmra.mxu0 %v5389
      %v5789 = vpop.f32.mrf.mxu0
      %v5790 = vadd.f32 %v5588, %v5789
      %v5791 = vpop.f32.mrf.mxu0
      %v5792 = vadd.f32 %v5588, %v5791
      %5793 = vmatmul.bf16.gmra.mxu0 %v5392
      %v5794 = vpop.f32.mrf.mxu0
      %v5795 = vadd.f32 %v5588, %v5794
      %v5796 = vpop.f32.mrf.mxu0
      %v5797 = vadd.f32 %v5588, %v5796
      %5798 = vmatmul.bf16.gmra.mxu0 %v5395
      %v5799 = vpop.f32.mrf.mxu0
      %v5800 = vadd.f32 %v5588, %v5799
      %v5801 = vpop.f32.mrf.mxu0
      %v5802 = vadd.f32 %v5588, %v5801
      %5803 = vmatmul.bf16.gmra.mxu0 %v5398
      %v5804 = vpop.f32.mrf.mxu0
      %v5805 = vadd.f32 %v5588, %v5804
      %v5806 = vpop.f32.mrf.mxu0
      %v5807 = vadd.f32 %v5588, %v5806
      %5808 = vmatmul.bf16.gmra.mxu0 %v5401
      %v5809 = vpop.f32.mrf.mxu0
      %v5810 = vadd.f32 %v5588, %v5809
      %v5811 = vpop.f32.mrf.mxu0
      %v5812 = vadd.f32 %v5588, %v5811
      %5813 = vmatmul.bf16.gmra.mxu0 %v5404
      %v5814 = vpop.f32.mrf.mxu0
      %v5815 = vadd.f32 %v5588, %v5814
      %v5816 = vpop.f32.mrf.mxu0
      %v5817 = vadd.f32 %v5588, %v5816
      %5818 = vdwg.mxu0
      %5819 = vmatpush.bf16.msra.mxu0 %v5709
      %5820 = vmatpush.bf16.msra.mxu0 %v5708
      %5821 = vmatpush.bf16.msra.mxu0 %v5707
      %5822 = vmatpush.bf16.msra.mxu0 %v5706
      %5823 = vmatpush.bf16.msra.mxu0 %v5705
      %5824 = vmatpush.bf16.msra.mxu0 %v5704
      %5825 = vmatpush.bf16.msra.mxu0 %v5703
      %5826 = vmatpush.bf16.msra.mxu0 %v5702
      %5827 = vmatmul.bf16.gmra.mxu0 %v5447
      %v5828 = vpop.f32.mrf.mxu0
      %v5829 = vadd.f32 %v5780, %v5828
      %v5830 = vpop.f32.mrf.mxu0
      %v5831 = vadd.f32 %v5782, %v5830
      %5832 = vmatmul.bf16.gmra.mxu0 %v5450
      %v5833 = vpop.f32.mrf.mxu0
      %v5834 = vadd.f32 %v5785, %v5833
      %v5835 = vpop.f32.mrf.mxu0
      %v5836 = vadd.f32 %v5787, %v5835
      %5837 = vmatmul.bf16.gmra.mxu0 %v5453
      %v5838 = vpop.f32.mrf.mxu0
      %v5839 = vadd.f32 %v5790, %v5838
      %v5840 = vpop.f32.mrf.mxu0
      %v5841 = vadd.f32 %v5792, %v5840
      %5842 = vmatmul.bf16.gmra.mxu0 %v5456
      %v5843 = vpop.f32.mrf.mxu0
      %v5844 = vadd.f32 %v5795, %v5843
      %v5845 = vpop.f32.mrf.mxu0
      %v5846 = vadd.f32 %v5797, %v5845
      %5847 = vmatmul.bf16.gmra.mxu0 %v5459
      %v5848 = vpop.f32.mrf.mxu0
      %v5849 = vadd.f32 %v5800, %v5848
      %v5850 = vpop.f32.mrf.mxu0
      %v5851 = vadd.f32 %v5802, %v5850
      %5852 = vmatmul.bf16.gmra.mxu0 %v5462
      %v5853 = vpop.f32.mrf.mxu0
      %v5854 = vadd.f32 %v5805, %v5853
      %v5855 = vpop.f32.mrf.mxu0
      %v5856 = vadd.f32 %v5807, %v5855
      %5857 = vmatmul.bf16.gmra.mxu0 %v5465
      %v5858 = vpop.f32.mrf.mxu0
      %v5859 = vadd.f32 %v5810, %v5858
      %v5860 = vpop.f32.mrf.mxu0
      %v5861 = vadd.f32 %v5812, %v5860
      %5862 = vmatmul.bf16.gmra.mxu0 %v5468
      %v5863 = vpop.f32.mrf.mxu0
      %v5864 = vadd.f32 %v5815, %v5863
      %v5865 = vpop.f32.mrf.mxu0
      %v5866 = vadd.f32 %v5817, %v5865
      %5867 = vdwg.mxu0
      %5868 = vmatpush.bf16.msra.mxu0 %v5717
      %5869 = vmatpush.bf16.msra.mxu0 %v5716
      %5870 = vmatpush.bf16.msra.mxu0 %v5715
      %5871 = vmatpush.bf16.msra.mxu0 %v5714
      %5872 = vmatpush.bf16.msra.mxu0 %v5713
      %5873 = vmatpush.bf16.msra.mxu0 %v5712
      %5874 = vmatpush.bf16.msra.mxu0 %v5711
      %5875 = vmatpush.bf16.msra.mxu0 %v5710
      %5876 = vmatmul.bf16.gmra.mxu0 %v5511
      %v5877 = vpop.f32.mrf.mxu0
      %v5878 = vadd.f32 %v5829, %v5877
      %v5879 = vpop.f32.mrf.mxu0
      %v5880 = vadd.f32 %v5831, %v5879
      %5881 = vmatmul.bf16.gmra.mxu0 %v5514
      %v5882 = vpop.f32.mrf.mxu0
      %v5883 = vadd.f32 %v5834, %v5882
      %v5884 = vpop.f32.mrf.mxu0
      %v5885 = vadd.f32 %v5836, %v5884
      %5886 = vmatmul.bf16.gmra.mxu0 %v5517
      %v5887 = vpop.f32.mrf.mxu0
      %v5888 = vadd.f32 %v5839, %v5887
      %v5889 = vpop.f32.mrf.mxu0
      %v5890 = vadd.f32 %v5841, %v5889
      %5891 = vmatmul.bf16.gmra.mxu0 %v5520
      %v5892 = vpop.f32.mrf.mxu0
      %v5893 = vadd.f32 %v5844, %v5892
      %v5894 = vpop.f32.mrf.mxu0
      %v5895 = vadd.f32 %v5846, %v5894
      %5896 = vmatmul.bf16.gmra.mxu0 %v5523
      %v5897 = vpop.f32.mrf.mxu0
      %v5898 = vadd.f32 %v5849, %v5897
      %v5899 = vpop.f32.mrf.mxu0
      %v5900 = vadd.f32 %v5851, %v5899
      %5901 = vmatmul.bf16.gmra.mxu0 %v5526
      %v5902 = vpop.f32.mrf.mxu0
      %v5903 = vadd.f32 %v5854, %v5902
      %v5904 = vpop.f32.mrf.mxu0
      %v5905 = vadd.f32 %v5856, %v5904
      %5906 = vmatmul.bf16.gmra.mxu0 %v5529
      %v5907 = vpop.f32.mrf.mxu0
      %v5908 = vadd.f32 %v5859, %v5907
      %v5909 = vpop.f32.mrf.mxu0
      %v5910 = vadd.f32 %v5861, %v5909
      %5911 = vmatmul.bf16.gmra.mxu0 %v5532
      %v5912 = vpop.f32.mrf.mxu0
      %v5913 = vadd.f32 %v5864, %v5912
      %v5914 = vpop.f32.mrf.mxu0
      %v5915 = vadd.f32 %v5866, %v5914
      %5916 = vdwg.mxu0
      %5917 = vmatpush.bf16.msra.mxu0 0
      %5918 = vmatpush.bf16.msra.mxu0 0
      %5919 = vmatpush.bf16.msra.mxu0 0
      %5920 = vmatpush.bf16.msra.mxu0 0
      %5921 = vmatpush.bf16.msra.mxu0 0
      %5922 = vmatpush.bf16.msra.mxu0 0
      %5923 = vmatpush.bf16.msra.mxu0 %v5719
      %5924 = vmatpush.bf16.msra.mxu0 %v5718
      %5925 = vmatmul.bf16.gmra.mxu0 %v5747
      %v5926 = vpop.f32.mrf.mxu0
      %v5927 = vadd.f32 %v5878, %v5926
      %v5928 = vpop.f32.mrf.mxu0
      %v5929 = vadd.f32 %v5880, %v5928
      %5930 = vmatmul.bf16.gmra.mxu0 %v5750
      %v5931 = vpop.f32.mrf.mxu0
      %v5932 = vadd.f32 %v5883, %v5931
      %v5933 = vpop.f32.mrf.mxu0
      %v5934 = vadd.f32 %v5885, %v5933
      %5935 = vmatmul.bf16.gmra.mxu0 %v5753
      %v5936 = vpop.f32.mrf.mxu0
      %v5937 = vadd.f32 %v5888, %v5936
      %v5938 = vpop.f32.mrf.mxu0
      %v5939 = vadd.f32 %v5890, %v5938
      %5940 = vmatmul.bf16.gmra.mxu0 %v5756
      %v5941 = vpop.f32.mrf.mxu0
      %v5942 = vadd.f32 %v5893, %v5941
      %v5943 = vpop.f32.mrf.mxu0
      %v5944 = vadd.f32 %v5895, %v5943
      %5945 = vmatmul.bf16.gmra.mxu0 %v5759
      %v5946 = vpop.f32.mrf.mxu0
      %v5947 = vadd.f32 %v5898, %v5946
      %v5948 = vpop.f32.mrf.mxu0
      %v5949 = vadd.f32 %v5900, %v5948
      %5950 = vmatmul.bf16.gmra.mxu0 %v5762
      %v5951 = vpop.f32.mrf.mxu0
      %v5952 = vadd.f32 %v5903, %v5951
      %v5953 = vpop.f32.mrf.mxu0
      %v5954 = vadd.f32 %v5905, %v5953
      %5955 = vmatmul.bf16.gmra.mxu0 %v5765
      %v5956 = vpop.f32.mrf.mxu0
      %v5957 = vadd.f32 %v5908, %v5956
      %v5958 = vpop.f32.mrf.mxu0
      %v5959 = vadd.f32 %v5910, %v5958
      %5960 = vmatmul.bf16.gmra.mxu0 %v5768
      %v5961 = vpop.f32.mrf.mxu0
      %v5962 = vadd.f32 %v5913, %v5961
      %v5963 = vpop.f32.mrf.mxu0
      %v5964 = vadd.f32 %v5915, %v5963
      %5965 = vdwg.mxu0
      %v5966 = vadd.f32 %v5927, %v278
      %v5967 = vadd.f32 %v5929, %v279
      %v5968 = vadd.f32 %v5932, %v280
      %v5969 = vadd.f32 %v5934, %v281
      %v5970 = vadd.f32 %v5937, %v282
      %v5971 = vadd.f32 %v5939, %v283
      %v5972 = vadd.f32 %v5942, %v284
      %v5973 = vadd.f32 %v5944, %v285
      %v5974 = vadd.f32 %v5947, %v286
      %v5975 = vadd.f32 %v5949, %v287
      %v5976 = vadd.f32 %v5952, %v288
      %v5977 = vadd.f32 %v5954, %v289
      %v5978 = vadd.f32 %v5957, %v290
      %v5979 = vadd.f32 %v5959, %v291
      %v5980 = vadd.f32 %v5962, %v292
      %v5981 = vadd.f32 %v5964, %v293
      %5982 = vst.msk [vmem:[%s275] sm:$0xff] %vm3276, %v5966
      %5983 = vst.msk [vmem:[%s275 + $0x8] sm:$0xff] %vm3276, %v5967
      %5984 = vst.msk [vmem:[%s275 + $0x10] sm:$0xff] %vm3276, %v5968
      %5985 = vst.msk [vmem:[%s275 + $0x18] sm:$0xff] %vm3276, %v5969
      %5986 = vst.msk [vmem:[%s275 + $0x20] sm:$0xff] %vm3276, %v5970
      %5987 = vst.msk [vmem:[%s275 + $0x28] sm:$0xff] %vm3276, %v5971
      %5988 = vst.msk [vmem:[%s275 + $0x30] sm:$0xff] %vm3276, %v5972
      %5989 = vst.msk [vmem:[%s275 + $0x38] sm:$0xff] %vm3276, %v5973
      %5990 = vst.msk [vmem:[%s275 + $0x40] sm:$0xff] %vm3276, %v5974
      %5991 = vst.msk [vmem:[%s275 + $0x48] sm:$0xff] %vm3276, %v5975
      %5992 = vst.msk [vmem:[%s275 + $0x50] sm:$0xff] %vm3276, %v5976
      %5993 = vst.msk [vmem:[%s275 + $0x58] sm:$0xff] %vm3276, %v5977
      %5994 = vst.msk [vmem:[%s275 + $0x60] sm:$0xff] %vm3276, %v5978
      %5995 = vst.msk [vmem:[%s275 + $0x68] sm:$0xff] %vm3276, %v5979
      %5996 = vst.msk [vmem:[%s275 + $0x70] sm:$0xff] %vm3276, %v5980
      %5997 = vst.msk [vmem:[%s275 + $0x78] sm:$0xff] %vm3276, %v5981
      %s5998 = smul.u32 16, %s17
      %p5999 = scmp.lt.s32.totalorder %s5998, 31
      %s6000 = scalar_select %p5999, %s5998, 31
      %s6001 = smul.addr %s6000, 8
      %s6002 = scalar_lea.vmem %s6, %s6001
      // Predicated region
      $region45: #{tpu_custom_call.1} parent=43 // pred_check
        %p6003 = pneg %p171
      $region46: #{tpu_custom_call.1} parent=43 // pred_check_branch
        %6005 = sbr.rel (%p6003) target = $region48
      $region47: #{tpu_custom_call.1} parent=43 // pred_region
        %s6006 = smul.u32 16, %s17
      $region48: #{tpu_custom_call.1} parent=43 // pred_fallthru
        _
    $region44: #{tpu_custom_call.1} parent=5 // pred_fallthru
      _
    %p6007 = scmp.le.s32.totalorder 2, %s12
    // Predicated region
    $region49: #{tpu_custom_call.1} parent=5 // pred_check
      %p6008 = pneg %p6007
    $region50: #{tpu_custom_call.1} parent=5 // pred_check_branch
      %6010 = sbr.rel (%p6008) target = $region52
    $region51: #{tpu_custom_call.1} parent=5 // pred_region
      %s6011 = ssub.s32 %s12, 2
      // Predicated region
      $region53: #{tpu_custom_call.1} parent=51 // pred_check
        %p6012 = pneg %p177
      $region54: #{tpu_custom_call.1} parent=51 // pred_check_branch
        %6014 = sbr.rel (%p6012) target = $region56
      $region55: #{tpu_custom_call.1} parent=51 // pred_region
        %s6015 = smul.u32 16, %s18
        %p6016 = scmp.lt.s32.totalorder %s6015, 31
        %s6017 = scalar_select %p6016, %s6015, 31
        %s6018 = smul.addr %s6017, 8
        %s6019 = scalar_lea.vmem %s6, %s6018
      $region56: #{tpu_custom_call.1} parent=51 // pred_fallthru
        _
    $region52: #{tpu_custom_call.1} parent=5 // pred_fallthru
      _
  $region6: #{tpu_custom_call.1} parent=0 // loop_footer
    %s16 = sadd.s32 1, %s12
  $region7: #{tpu_custom_call.1} parent=0 // loop_footer_branch
    %11 = sbr.rel target = $region3
  $region8: #{tpu_custom_call.1} parent=0 // loop_exit
    _

</llo_original>
